<compile_context>
chip_gen: v5e
topology: v5e:2x2
jax: 0.10.0
libtpu: 0.0.40
codegen_flags: <defaults>
</compile_context>

<pallas_src>
import jax
import jax.numpy as jnp
from jax.experimental import pallas as pl
from jax.experimental.pallas import tpu as pltpu

KSIZE = 7
PAD = 3


def _spatial_attention_kernel(w_ref, x_ref, o_ref, avgp_ref, maxp_ref):
    # w_ref   : SMEM (2*KSIZE*KSIZE,) flattened conv weights, layout [map, kh, kw]
    #           map 0 -> channel-mean map, map 1 -> channel-max map
    # x_ref   : VMEM (NB, C, H, W)  unpadded input (whole batch tile)
    # o_ref   : VMEM (NB, H, W)     sigmoid attention map
    # avgp_ref / maxp_ref : VMEM (NB, Hp, Wp) f32 scratch (zero-padded maps)
    NB, C, H, W = x_ref.shape

    def load_channel(c):
        # static windowed read + value squeeze (avoids any exotic ref indexing)
        return x_ref[:, c:c + 1, :, :][:, 0].astype(jnp.float32)   # (NB, H, W)

    # ---- channel mean / max, streamed over C (running sum & running max,
    #      never materializes the (C, H, W) slab).             [review #7]
    x0 = load_channel(0)
    run_sum = x0
    run_max = x0
    for c in range(1, C):           # C is small & static here; for large C use
        xc = load_channel(c)        # a grid axis / fori_loop instead.
        run_sum = run_sum + xc
        run_max = jnp.maximum(run_max, xc)
    avg = run_sum * (1.0 / C)

    # ---- zero-pad ONLY the two derived (H, W) maps, in VMEM scratch.
    #      (mean(0) = max(0) = 0, so this equals padding x spatially.) [review #1]
    avgp_ref[...] = jnp.zeros_like(avgp_ref)
    maxp_ref[...] = jnp.zeros_like(maxp_ref)
    avgp_ref[:, PAD:PAD + H, PAD:PAD + W] = avg
    maxp_ref[:, PAD:PAD + H, PAD:PAD + W] = run_max

    # ---- 7x7 "valid" conv over the two derived channels + sigmoid (VPU).
    # 4 independent partial accumulators break the 98-add serial chain. [review #3]
    acc = [jnp.zeros((NB, H, W), jnp.float32) for _ in range(4)]
    tap = 0
    for base, map_ref in ((0, avgp_ref), (KSIZE * KSIZE, maxp_ref)):
        map_p = map_ref[...]                                   # (NB, Hp, Wp)
        # Hoist the lane-axis (kw) shifts out of the kh loop: 7 lane-shifted
        # slabs per map instead of 49 shifted 2-D slices.      [review #2]
        shifted = [map_p[:, :, kw:kw + W] for kw in range(KSIZE)]  # (NB, Hp, W)
        for kh in range(KSIZE):
            for kw in range(KSIZE):
                w = w_ref[base + kh * KSIZE + kw]              # SMEM scalar
                acc[tap % 4] = acc[tap % 4] + w * shifted[kw][:, kh:kh + H, :]
                tap += 1

    y = jax.nn.sigmoid((acc[0] + acc[1]) + (acc[2] + acc[3]))   # (NB, H, W)
    o_ref[...] = y.astype(o_ref.dtype)


def spatial_attention(x, conv_w, *, batch_block=None):
    """x: (N, C, H, W), conv_w: (1, 2, 7, 7) -> (N, 1, H, W) attention map."""
    N, C, H, W = x.shape
    Hp, Wp = H + 2 * PAD, W + 2 * PAD
    # Fold the batch into one block (grid of 1 at this size); batch_block caps
    # the per-step working set at production sizes.            [review #5]
    NB = N if batch_block is None else max(1, min(batch_block, N))
    w_flat = conv_w.reshape(-1).astype(jnp.float32)             # (2*7*7,)

    out = pl.pallas_call(
        _spatial_attention_kernel,
        out_shape=jax.ShapeDtypeStruct((N, H, W), x.dtype),
        grid=(pl.cdiv(N, NB),),
        in_specs=[
            pl.BlockSpec(memory_space=pltpu.MemorySpace.SMEM),      # conv weights
            pl.BlockSpec((NB, C, H, W), lambda b: (b, 0, 0, 0)),    # unpadded x
        ],
        out_specs=pl.BlockSpec((NB, H, W), lambda b: (b, 0, 0)),
        scratch_shapes=[
            pltpu.VMEM((NB, Hp, Wp), jnp.float32),   # padded channel-mean map
            pltpu.VMEM((NB, Hp, Wp), jnp.float32),   # padded channel-max map
        ],
        compiler_params=pltpu.CompilerParams(
            dimension_semantics=("parallel",),       # megacore over batch tiles
            vmem_limit_bytes=48 * 1024 * 1024,       # explicit, < 64 MiB (v7x-safe)
        ),
    )(w_flat, x)
    return out.reshape(N, 1, H, W)


def spatial_attention_ref(x, conv_w):
    avg = jnp.mean(x, axis=1, keepdims=True)
    mx = jnp.max(x, axis=1, keepdims=True)
    cat = jnp.concatenate([avg, mx], axis=1)
    y = jax.lax.conv_general_dilated(
        cat, conv_w, window_strides=(1, 1), padding=[(PAD, PAD), (PAD, PAD)],
        dimension_numbers=("NCHW", "OIHW", "NCHW"),
        precision=jax.lax.Precision.HIGHEST)
    return jax.nn.sigmoid(y)


if __name__ == "__main__":
    key = jax.random.PRNGKey(0)
    kx, kw = jax.random.split(key)

    N, C, H, W = 2, 4, 16, 16
    x = jax.random.normal(kx, (N, C, H, W), dtype=jnp.float32)
    # Deterministic synthetic weights (Conv2d(2, 1, 7, bias=False) shape).
    fan_in = 2 * KSIZE * KSIZE
    conv_w = jax.random.normal(kw, (1, 2, KSIZE, KSIZE), dtype=jnp.float32) * (
        (2.0 / fan_in) ** 0.5)

    out = spatial_attention(x, conv_w)
    out = jax.block_until_ready(out)

    ref = spatial_attention_ref(x, conv_w)
    assert out.shape == (N, 1, H, W)
    assert jnp.allclose(out, ref, atol=1e-5, rtol=1e-5)

    print("KERNEL_OK")
</pallas_src>

<mosaic_0001>
module attributes {stable_mosaic.version = 11 : i64} {
  func.func @_spatial_attention_kernel(%arg0: i32, %arg1: memref<98xf32, #tpu.memory_space<smem>>, %arg2: memref<2x4x16x16xf32, #tpu.memory_space<vmem>>, %arg3: memref<2x16x16xf32, #tpu.memory_space<vmem>>, %arg4: memref<2x22x22xf32, #tpu.memory_space<vmem>>, %arg5: memref<2x22x22xf32, #tpu.memory_space<vmem>>) attributes {dimension_semantics = [#tpu.dimension_semantics<parallel>], iteration_bounds = array<i64: 1>, scalar_prefetch = 0 : i64, scratch_operands = 2 : i64, tpu.core_type = #tpu.core_type<tc>, window_params = [{transform_indices = @transform_0, window_bounds = array<i64: 98>}, {transform_indices = @transform_1, window_bounds = array<i64: 2, 4, 16, 16>}, {transform_indices = @transform_2, window_bounds = array<i64: 2, 16, 16>}]} {
    %c0 = arith.constant 0 : index
    %c0_0 = arith.constant 0 : index
    %c0_1 = arith.constant 0 : index
    %c0_2 = arith.constant 0 : index
    %0 = vector.load %arg2[%c0, %c0_0, %c0_1, %c0_2] : memref<2x4x16x16xf32, #tpu.memory_space<vmem>>, vector<2x1x16x16xf32>
    %1 = vector.shape_cast %0 : vector<2x1x16x16xf32> to vector<2x16x16xf32>
    %c0_3 = arith.constant 0 : index
    %c1 = arith.constant 1 : index
    %c0_4 = arith.constant 0 : index
    %c0_5 = arith.constant 0 : index
    %2 = vector.load %arg2[%c0_3, %c1, %c0_4, %c0_5] : memref<2x4x16x16xf32, #tpu.memory_space<vmem>>, vector<2x1x16x16xf32>
    %3 = vector.shape_cast %2 : vector<2x1x16x16xf32> to vector<2x16x16xf32>
    %4 = arith.addf %1, %3 : vector<2x16x16xf32>
    %5 = arith.maximumf %1, %3 : vector<2x16x16xf32>
    %c0_6 = arith.constant 0 : index
    %c2 = arith.constant 2 : index
    %c0_7 = arith.constant 0 : index
    %c0_8 = arith.constant 0 : index
    %6 = vector.load %arg2[%c0_6, %c2, %c0_7, %c0_8] : memref<2x4x16x16xf32, #tpu.memory_space<vmem>>, vector<2x1x16x16xf32>
    %7 = vector.shape_cast %6 : vector<2x1x16x16xf32> to vector<2x16x16xf32>
    %8 = arith.addf %4, %7 : vector<2x16x16xf32>
    %9 = arith.maximumf %5, %7 : vector<2x16x16xf32>
    %c0_9 = arith.constant 0 : index
    %c3 = arith.constant 3 : index
    %c0_10 = arith.constant 0 : index
    %c0_11 = arith.constant 0 : index
    %10 = vector.load %arg2[%c0_9, %c3, %c0_10, %c0_11] : memref<2x4x16x16xf32, #tpu.memory_space<vmem>>, vector<2x1x16x16xf32>
    %11 = vector.shape_cast %10 : vector<2x1x16x16xf32> to vector<2x16x16xf32>
    %12 = arith.addf %8, %11 : vector<2x16x16xf32>
    %13 = arith.maximumf %9, %11 : vector<2x16x16xf32>
    %cst = arith.constant 2.500000e-01 : f32
    %14 = vector.broadcast %cst : f32 to vector<2x16x16xf32>
    %15 = arith.mulf %12, %14 : vector<2x16x16xf32>
    %cst_12 = arith.constant 0.000000e+00 : f32
    %16 = vector.broadcast %cst_12 : f32 to vector<2x22x22xf32>
    %c0_13 = arith.constant 0 : index
    %c0_14 = arith.constant 0 : index
    %c0_15 = arith.constant 0 : index
    %17 = vector.load %arg4[%c0_13, %c0_14, %c0_15] : memref<2x22x22xf32, #tpu.memory_space<vmem>>, vector<2x22x22xf32>
    tpu.vector_store %arg4[%c0_13, %c0_14, %c0_15], %16 {strides = array<i32>} : memref<2x22x22xf32, #tpu.memory_space<vmem>>, vector<2x22x22xf32>,
    %cst_16 = arith.constant 0.000000e+00 : f32
    %18 = vector.broadcast %cst_16 : f32 to vector<2x22x22xf32>
    %c0_17 = arith.constant 0 : index
    %c0_18 = arith.constant 0 : index
    %c0_19 = arith.constant 0 : index
    %19 = vector.load %arg5[%c0_17, %c0_18, %c0_19] : memref<2x22x22xf32, #tpu.memory_space<vmem>>, vector<2x22x22xf32>
    tpu.vector_store %arg5[%c0_17, %c0_18, %c0_19], %18 {strides = array<i32>} : memref<2x22x22xf32, #tpu.memory_space<vmem>>, vector<2x22x22xf32>,
    %c0_20 = arith.constant 0 : index
    %c3_21 = arith.constant 3 : index
    %c3_22 = arith.constant 3 : index
    %20 = vector.load %arg4[%c0_20, %c3_21, %c3_22] : memref<2x22x22xf32, #tpu.memory_space<vmem>>, vector<2x16x16xf32>
    tpu.vector_store %arg4[%c0_20, %c3_21, %c3_22], %15 {strides = array<i32>} : memref<2x22x22xf32, #tpu.memory_space<vmem>>, vector<2x16x16xf32>,
    %c0_23 = arith.constant 0 : index
    %c3_24 = arith.constant 3 : index
    %c3_25 = arith.constant 3 : index
    %21 = vector.load %arg5[%c0_23, %c3_24, %c3_25] : memref<2x22x22xf32, #tpu.memory_space<vmem>>, vector<2x16x16xf32>
    tpu.vector_store %arg5[%c0_23, %c3_24, %c3_25], %13 {strides = array<i32>} : memref<2x22x22xf32, #tpu.memory_space<vmem>>, vector<2x16x16xf32>,
    %cst_26 = arith.constant 0.000000e+00 : f32
    %22 = vector.broadcast %cst_26 : f32 to vector<2x16x16xf32>
    %cst_27 = arith.constant 0.000000e+00 : f32
    %23 = vector.broadcast %cst_27 : f32 to vector<2x16x16xf32>
    %cst_28 = arith.constant 0.000000e+00 : f32
    %24 = vector.broadcast %cst_28 : f32 to vector<2x16x16xf32>
    %cst_29 = arith.constant 0.000000e+00 : f32
    %25 = vector.broadcast %cst_29 : f32 to vector<2x16x16xf32>
    %c0_30 = arith.constant 0 : index
    %c0_31 = arith.constant 0 : index
    %c0_32 = arith.constant 0 : index
    %26 = vector.load %arg4[%c0_30, %c0_31, %c0_32] : memref<2x22x22xf32, #tpu.memory_space<vmem>>, vector<2x22x22xf32>
    %27 = vector.extract_strided_slice %26 {offsets = [0, 0, 0], sizes = [2, 22, 16], strides = [1, 1, 1]} : vector<2x22x22xf32> to vector<2x22x16xf32>
    %28 = vector.extract_strided_slice %26 {offsets = [0, 0, 1], sizes = [2, 22, 16], strides = [1, 1, 1]} : vector<2x22x22xf32> to vector<2x22x16xf32>
    %29 = vector.extract_strided_slice %26 {offsets = [0, 0, 2], sizes = [2, 22, 16], strides = [1, 1, 1]} : vector<2x22x22xf32> to vector<2x22x16xf32>
    %30 = vector.extract_strided_slice %26 {offsets = [0, 0, 3], sizes = [2, 22, 16], strides = [1, 1, 1]} : vector<2x22x22xf32> to vector<2x22x16xf32>
    %31 = vector.extract_strided_slice %26 {offsets = [0, 0, 4], sizes = [2, 22, 16], strides = [1, 1, 1]} : vector<2x22x22xf32> to vector<2x22x16xf32>
    %32 = vector.extract_strided_slice %26 {offsets = [0, 0, 5], sizes = [2, 22, 16], strides = [1, 1, 1]} : vector<2x22x22xf32> to vector<2x22x16xf32>
    %33 = vector.extract_strided_slice %26 {offsets = [0, 0, 6], sizes = [2, 22, 16], strides = [1, 1, 1]} : vector<2x22x22xf32> to vector<2x22x16xf32>
    %c0_33 = arith.constant 0 : index
    %34 = memref.load %arg1[%c0_33] : memref<98xf32, #tpu.memory_space<smem>>
    %35 = vector.extract_strided_slice %27 {offsets = [0, 0, 0], sizes = [2, 16, 16], strides = [1, 1, 1]} : vector<2x22x16xf32> to vector<2x16x16xf32>
    %36 = vector.broadcast %34 : f32 to vector<2x16x16xf32>
    %37 = arith.mulf %36, %35 : vector<2x16x16xf32>
    %38 = arith.addf %22, %37 : vector<2x16x16xf32>
    %c1_34 = arith.constant 1 : index
    %39 = memref.load %arg1[%c1_34] : memref<98xf32, #tpu.memory_space<smem>>
    %40 = vector.extract_strided_slice %28 {offsets = [0, 0, 0], sizes = [2, 16, 16], strides = [1, 1, 1]} : vector<2x22x16xf32> to vector<2x16x16xf32>
    %41 = vector.broadcast %39 : f32 to vector<2x16x16xf32>
    %42 = arith.mulf %41, %40 : vector<2x16x16xf32>
    %43 = arith.addf %23, %42 : vector<2x16x16xf32>
    %c2_35 = arith.constant 2 : index
    %44 = memref.load %arg1[%c2_35] : memref<98xf32, #tpu.memory_space<smem>>
    %45 = vector.extract_strided_slice %29 {offsets = [0, 0, 0], sizes = [2, 16, 16], strides = [1, 1, 1]} : vector<2x22x16xf32> to vector<2x16x16xf32>
    %46 = vector.broadcast %44 : f32 to vector<2x16x16xf32>
    %47 = arith.mulf %46, %45 : vector<2x16x16xf32>
    %48 = arith.addf %24, %47 : vector<2x16x16xf32>
    %c3_36 = arith.constant 3 : index
    %49 = memref.load %arg1[%c3_36] : memref<98xf32, #tpu.memory_space<smem>>
    %50 = vector.extract_strided_slice %30 {offsets = [0, 0, 0], sizes = [2, 16, 16], strides = [1, 1, 1]} : vector<2x22x16xf32> to vector<2x16x16xf32>
    %51 = vector.broadcast %49 : f32 to vector<2x16x16xf32>
    %52 = arith.mulf %51, %50 : vector<2x16x16xf32>
    %53 = arith.addf %25, %52 : vector<2x16x16xf32>
    %c4 = arith.constant 4 : index
    %54 = memref.load %arg1[%c4] : memref<98xf32, #tpu.memory_space<smem>>
    %55 = vector.extract_strided_slice %31 {offsets = [0, 0, 0], sizes = [2, 16, 16], strides = [1, 1, 1]} : vector<2x22x16xf32> to vector<2x16x16xf32>
    %56 = vector.broadcast %54 : f32 to vector<2x16x16xf32>
    %57 = arith.mulf %56, %55 : vector<2x16x16xf32>
    %58 = arith.addf %38, %57 : vector<2x16x16xf32>
    %c5 = arith.constant 5 : index
    %59 = memref.load %arg1[%c5] : memref<98xf32, #tpu.memory_space<smem>>
    %60 = vector.extract_strided_slice %32 {offsets = [0, 0, 0], sizes = [2, 16, 16], strides = [1, 1, 1]} : vector<2x22x16xf32> to vector<2x16x16xf32>
    %61 = vector.broadcast %59 : f32 to vector<2x16x16xf32>
    %62 = arith.mulf %61, %60 : vector<2x16x16xf32>
    %63 = arith.addf %43, %62 : vector<2x16x16xf32>
    %c6 = arith.constant 6 : index
    %64 = memref.load %arg1[%c6] : memref<98xf32, #tpu.memory_space<smem>>
    %65 = vector.extract_strided_slice %33 {offsets = [0, 0, 0], sizes = [2, 16, 16], strides = [1, 1, 1]} : vector<2x22x16xf32> to vector<2x16x16xf32>
    %66 = vector.broadcast %64 : f32 to vector<2x16x16xf32>
    %67 = arith.mulf %66, %65 : vector<2x16x16xf32>
    %68 = arith.addf %48, %67 : vector<2x16x16xf32>
    %c7 = arith.constant 7 : index
    %69 = memref.load %arg1[%c7] : memref<98xf32, #tpu.memory_space<smem>>
    %70 = vector.extract_strided_slice %27 {offsets = [0, 1, 0], sizes = [2, 16, 16], strides = [1, 1, 1]} : vector<2x22x16xf32> to vector<2x16x16xf32>
    %71 = vector.broadcast %69 : f32 to vector<2x16x16xf32>
    %72 = arith.mulf %71, %70 : vector<2x16x16xf32>
    %73 = arith.addf %53, %72 : vector<2x16x16xf32>
    %c8 = arith.constant 8 : index
    %74 = memref.load %arg1[%c8] : memref<98xf32, #tpu.memory_space<smem>>
    %75 = vector.extract_strided_slice %28 {offsets = [0, 1, 0], sizes = [2, 16, 16], strides = [1, 1, 1]} : vector<2x22x16xf32> to vector<2x16x16xf32>
    %76 = vector.broadcast %74 : f32 to vector<2x16x16xf32>
    %77 = arith.mulf %76, %75 : vector<2x16x16xf32>
    %78 = arith.addf %58, %77 : vector<2x16x16xf32>
    %c9 = arith.constant 9 : index
    %79 = memref.load %arg1[%c9] : memref<98xf32, #tpu.memory_space<smem>>
    %80 = vector.extract_strided_slice %29 {offsets = [0, 1, 0], sizes = [2, 16, 16], strides = [1, 1, 1]} : vector<2x22x16xf32> to vector<2x16x16xf32>
    %81 = vector.broadcast %79 : f32 to vector<2x16x16xf32>
    %82 = arith.mulf %81, %80 : vector<2x16x16xf32>
    %83 = arith.addf %63, %82 : vector<2x16x16xf32>
    %c10 = arith.constant 10 : index
    %84 = memref.load %arg1[%c10] : memref<98xf32, #tpu.memory_space<smem>>
    %85 = vector.extract_strided_slice %30 {offsets = [0, 1, 0], sizes = [2, 16, 16], strides = [1, 1, 1]} : vector<2x22x16xf32> to vector<2x16x16xf32>
    %86 = vector.broadcast %84 : f32 to vector<2x16x16xf32>
    %87 = arith.mulf %86, %85 : vector<2x16x16xf32>
    %88 = arith.addf %68, %87 : vector<2x16x16xf32>
    %c11 = arith.constant 11 : index
    %89 = memref.load %arg1[%c11] : memref<98xf32, #tpu.memory_space<smem>>
    %90 = vector.extract_strided_slice %31 {offsets = [0, 1, 0], sizes = [2, 16, 16], strides = [1, 1, 1]} : vector<2x22x16xf32> to vector<2x16x16xf32>
    %91 = vector.broadcast %89 : f32 to vector<2x16x16xf32>
    %92 = arith.mulf %91, %90 : vector<2x16x16xf32>
    %93 = arith.addf %73, %92 : vector<2x16x16xf32>
    %c12 = arith.constant 12 : index
    %94 = memref.load %arg1[%c12] : memref<98xf32, #tpu.memory_space<smem>>
    %95 = vector.extract_strided_slice %32 {offsets = [0, 1, 0], sizes = [2, 16, 16], strides = [1, 1, 1]} : vector<2x22x16xf32> to vector<2x16x16xf32>
    %96 = vector.broadcast %94 : f32 to vector<2x16x16xf32>
    %97 = arith.mulf %96, %95 : vector<2x16x16xf32>
    %98 = arith.addf %78, %97 : vector<2x16x16xf32>
    %c13 = arith.constant 13 : index
    %99 = memref.load %arg1[%c13] : memref<98xf32, #tpu.memory_space<smem>>
    %100 = vector.extract_strided_slice %33 {offsets = [0, 1, 0], sizes = [2, 16, 16], strides = [1, 1, 1]} : vector<2x22x16xf32> to vector<2x16x16xf32>
    %101 = vector.broadcast %99 : f32 to vector<2x16x16xf32>
    %102 = arith.mulf %101, %100 : vector<2x16x16xf32>
    %103 = arith.addf %83, %102 : vector<2x16x16xf32>
    %c14 = arith.constant 14 : index
    %104 = memref.load %arg1[%c14] : memref<98xf32, #tpu.memory_space<smem>>
    %105 = vector.extract_strided_slice %27 {offsets = [0, 2, 0], sizes = [2, 16, 16], strides = [1, 1, 1]} : vector<2x22x16xf32> to vector<2x16x16xf32>
    %106 = vector.broadcast %104 : f32 to vector<2x16x16xf32>
    %107 = arith.mulf %106, %105 : vector<2x16x16xf32>
    %108 = arith.addf %88, %107 : vector<2x16x16xf32>
    %c15 = arith.constant 15 : index
    %109 = memref.load %arg1[%c15] : memref<98xf32, #tpu.memory_space<smem>>
    %110 = vector.extract_strided_slice %28 {offsets = [0, 2, 0], sizes = [2, 16, 16], strides = [1, 1, 1]} : vector<2x22x16xf32> to vector<2x16x16xf32>
    %111 = vector.broadcast %109 : f32 to vector<2x16x16xf32>
    %112 = arith.mulf %111, %110 : vector<2x16x16xf32>
    %113 = arith.addf %93, %112 : vector<2x16x16xf32>
    %c16 = arith.constant 16 : index
    %114 = memref.load %arg1[%c16] : memref<98xf32, #tpu.memory_space<smem>>
    %115 = vector.extract_strided_slice %29 {offsets = [0, 2, 0], sizes = [2, 16, 16], strides = [1, 1, 1]} : vector<2x22x16xf32> to vector<2x16x16xf32>
    %116 = vector.broadcast %114 : f32 to vector<2x16x16xf32>
    %117 = arith.mulf %116, %115 : vector<2x16x16xf32>
    %118 = arith.addf %98, %117 : vector<2x16x16xf32>
    %c17 = arith.constant 17 : index
    %119 = memref.load %arg1[%c17] : memref<98xf32, #tpu.memory_space<smem>>
    %120 = vector.extract_strided_slice %30 {offsets = [0, 2, 0], sizes = [2, 16, 16], strides = [1, 1, 1]} : vector<2x22x16xf32> to vector<2x16x16xf32>
    %121 = vector.broadcast %119 : f32 to vector<2x16x16xf32>
    %122 = arith.mulf %121, %120 : vector<2x16x16xf32>
    %123 = arith.addf %103, %122 : vector<2x16x16xf32>
    %c18 = arith.constant 18 : index
    %124 = memref.load %arg1[%c18] : memref<98xf32, #tpu.memory_space<smem>>
    %125 = vector.extract_strided_slice %31 {offsets = [0, 2, 0], sizes = [2, 16, 16], strides = [1, 1, 1]} : vector<2x22x16xf32> to vector<2x16x16xf32>
    %126 = vector.broadcast %124 : f32 to vector<2x16x16xf32>
    %127 = arith.mulf %126, %125 : vector<2x16x16xf32>
    %128 = arith.addf %108, %127 : vector<2x16x16xf32>
    %c19 = arith.constant 19 : index
    %129 = memref.load %arg1[%c19] : memref<98xf32, #tpu.memory_space<smem>>
    %130 = vector.extract_strided_slice %32 {offsets = [0, 2, 0], sizes = [2, 16, 16], strides = [1, 1, 1]} : vector<2x22x16xf32> to vector<2x16x16xf32>
    %131 = vector.broadcast %129 : f32 to vector<2x16x16xf32>
    %132 = arith.mulf %131, %130 : vector<2x16x16xf32>
    %133 = arith.addf %113, %132 : vector<2x16x16xf32>
    %c20 = arith.constant 20 : index
    %134 = memref.load %arg1[%c20] : memref<98xf32, #tpu.memory_space<smem>>
    %135 = vector.extract_strided_slice %33 {offsets = [0, 2, 0], sizes = [2, 16, 16], strides = [1, 1, 1]} : vector<2x22x16xf32> to vector<2x16x16xf32>
    %136 = vector.broadcast %134 : f32 to vector<2x16x16xf32>
    %137 = arith.mulf %136, %135 : vector<2x16x16xf32>
    %138 = arith.addf %118, %137 : vector<2x16x16xf32>
    %c21 = arith.constant 21 : index
    %139 = memref.load %arg1[%c21] : memref<98xf32, #tpu.memory_space<smem>>
    %140 = vector.extract_strided_slice %27 {offsets = [0, 3, 0], sizes = [2, 16, 16], strides = [1, 1, 1]} : vector<2x22x16xf32> to vector<2x16x16xf32>
    %141 = vector.broadcast %139 : f32 to vector<2x16x16xf32>
    %142 = arith.mulf %141, %140 : vector<2x16x16xf32>
    %143 = arith.addf %123, %142 : vector<2x16x16xf32>
    %c22 = arith.constant 22 : index
    %144 = memref.load %arg1[%c22] : memref<98xf32, #tpu.memory_space<smem>>
    %145 = vector.extract_strided_slice %28 {offsets = [0, 3, 0], sizes = [2, 16, 16], strides = [1, 1, 1]} : vector<2x22x16xf32> to vector<2x16x16xf32>
    %146 = vector.broadcast %144 : f32 to vector<2x16x16xf32>
    %147 = arith.mulf %146, %145 : vector<2x16x16xf32>
    %148 = arith.addf %128, %147 : vector<2x16x16xf32>
    %c23 = arith.constant 23 : index
    %149 = memref.load %arg1[%c23] : memref<98xf32, #tpu.memory_space<smem>>
    %150 = vector.extract_strided_slice %29 {offsets = [0, 3, 0], sizes = [2, 16, 16], strides = [1, 1, 1]} : vector<2x22x16xf32> to vector<2x16x16xf32>
    %151 = vector.broadcast %149 : f32 to vector<2x16x16xf32>
    %152 = arith.mulf %151, %150 : vector<2x16x16xf32>
    %153 = arith.addf %133, %152 : vector<2x16x16xf32>
    %c24 = arith.constant 24 : index
    %154 = memref.load %arg1[%c24] : memref<98xf32, #tpu.memory_space<smem>>
    %155 = vector.extract_strided_slice %30 {offsets = [0, 3, 0], sizes = [2, 16, 16], strides = [1, 1, 1]} : vector<2x22x16xf32> to vector<2x16x16xf32>
    %156 = vector.broadcast %154 : f32 to vector<2x16x16xf32>
    %157 = arith.mulf %156, %155 : vector<2x16x16xf32>
    %158 = arith.addf %138, %157 : vector<2x16x16xf32>
    %c25 = arith.constant 25 : index
    %159 = memref.load %arg1[%c25] : memref<98xf32, #tpu.memory_space<smem>>
    %160 = vector.extract_strided_slice %31 {offsets = [0, 3, 0], sizes = [2, 16, 16], strides = [1, 1, 1]} : vector<2x22x16xf32> to vector<2x16x16xf32>
    %161 = vector.broadcast %159 : f32 to vector<2x16x16xf32>
    %162 = arith.mulf %161, %160 : vector<2x16x16xf32>
    %163 = arith.addf %143, %162 : vector<2x16x16xf32>
    %c26 = arith.constant 26 : index
    %164 = memref.load %arg1[%c26] : memref<98xf32, #tpu.memory_space<smem>>
    %165 = vector.extract_strided_slice %32 {offsets = [0, 3, 0], sizes = [2, 16, 16], strides = [1, 1, 1]} : vector<2x22x16xf32> to vector<2x16x16xf32>
    %166 = vector.broadcast %164 : f32 to vector<2x16x16xf32>
    %167 = arith.mulf %166, %165 : vector<2x16x16xf32>
    %168 = arith.addf %148, %167 : vector<2x16x16xf32>
    %c27 = arith.constant 27 : index
    %169 = memref.load %arg1[%c27] : memref<98xf32, #tpu.memory_space<smem>>
    %170 = vector.extract_strided_slice %33 {offsets = [0, 3, 0], sizes = [2, 16, 16], strides = [1, 1, 1]} : vector<2x22x16xf32> to vector<2x16x16xf32>
    %171 = vector.broadcast %169 : f32 to vector<2x16x16xf32>
    %172 = arith.mulf %171, %170 : vector<2x16x16xf32>
    %173 = arith.addf %153, %172 : vector<2x16x16xf32>
    %c28 = arith.constant 28 : index
    %174 = memref.load %arg1[%c28] : memref<98xf32, #tpu.memory_space<smem>>
    %175 = vector.extract_strided_slice %27 {offsets = [0, 4, 0], sizes = [2, 16, 16], strides = [1, 1, 1]} : vector<2x22x16xf32> to vector<2x16x16xf32>
    %176 = vector.broadcast %174 : f32 to vector<2x16x16xf32>
    %177 = arith.mulf %176, %175 : vector<2x16x16xf32>
    %178 = arith.addf %158, %177 : vector<2x16x16xf32>
    %c29 = arith.constant 29 : index
    %179 = memref.load %arg1[%c29] : memref<98xf32, #tpu.memory_space<smem>>
    %180 = vector.extract_strided_slice %28 {offsets = [0, 4, 0], sizes = [2, 16, 16], strides = [1, 1, 1]} : vector<2x22x16xf32> to vector<2x16x16xf32>
    %181 = vector.broadcast %179 : f32 to vector<2x16x16xf32>
    %182 = arith.mulf %181, %180 : vector<2x16x16xf32>
    %183 = arith.addf %163, %182 : vector<2x16x16xf32>
    %c30 = arith.constant 30 : index
    %184 = memref.load %arg1[%c30] : memref<98xf32, #tpu.memory_space<smem>>
    %185 = vector.extract_strided_slice %29 {offsets = [0, 4, 0], sizes = [2, 16, 16], strides = [1, 1, 1]} : vector<2x22x16xf32> to vector<2x16x16xf32>
    %186 = vector.broadcast %184 : f32 to vector<2x16x16xf32>
    %187 = arith.mulf %186, %185 : vector<2x16x16xf32>
    %188 = arith.addf %168, %187 : vector<2x16x16xf32>
    %c31 = arith.constant 31 : index
    %189 = memref.load %arg1[%c31] : memref<98xf32, #tpu.memory_space<smem>>
    %190 = vector.extract_strided_slice %30 {offsets = [0, 4, 0], sizes = [2, 16, 16], strides = [1, 1, 1]} : vector<2x22x16xf32> to vector<2x16x16xf32>
    %191 = vector.broadcast %189 : f32 to vector<2x16x16xf32>
    %192 = arith.mulf %191, %190 : vector<2x16x16xf32>
    %193 = arith.addf %173, %192 : vector<2x16x16xf32>
    %c32 = arith.constant 32 : index
    %194 = memref.load %arg1[%c32] : memref<98xf32, #tpu.memory_space<smem>>
    %195 = vector.extract_strided_slice %31 {offsets = [0, 4, 0], sizes = [2, 16, 16], strides = [1, 1, 1]} : vector<2x22x16xf32> to vector<2x16x16xf32>
    %196 = vector.broadcast %194 : f32 to vector<2x16x16xf32>
    %197 = arith.mulf %196, %195 : vector<2x16x16xf32>
    %198 = arith.addf %178, %197 : vector<2x16x16xf32>
    %c33 = arith.constant 33 : index
    %199 = memref.load %arg1[%c33] : memref<98xf32, #tpu.memory_space<smem>>
    %200 = vector.extract_strided_slice %32 {offsets = [0, 4, 0], sizes = [2, 16, 16], strides = [1, 1, 1]} : vector<2x22x16xf32> to vector<2x16x16xf32>
    %201 = vector.broadcast %199 : f32 to vector<2x16x16xf32>
    %202 = arith.mulf %201, %200 : vector<2x16x16xf32>
    %203 = arith.addf %183, %202 : vector<2x16x16xf32>
    %c34 = arith.constant 34 : index
    %204 = memref.load %arg1[%c34] : memref<98xf32, #tpu.memory_space<smem>>
    %205 = vector.extract_strided_slice %33 {offsets = [0, 4, 0], sizes = [2, 16, 16], strides = [1, 1, 1]} : vector<2x22x16xf32> to vector<2x16x16xf32>
    %206 = vector.broadcast %204 : f32 to vector<2x16x16xf32>
    %207 = arith.mulf %206, %205 : vector<2x16x16xf32>
    %208 = arith.addf %188, %207 : vector<2x16x16xf32>
    %c35 = arith.constant 35 : index
    %209 = memref.load %arg1[%c35] : memref<98xf32, #tpu.memory_space<smem>>
    %210 = vector.extract_strided_slice %27 {offsets = [0, 5, 0], sizes = [2, 16, 16], strides = [1, 1, 1]} : vector<2x22x16xf32> to vector<2x16x16xf32>
    %211 = vector.broadcast %209 : f32 to vector<2x16x16xf32>
    %212 = arith.mulf %211, %210 : vector<2x16x16xf32>
    %213 = arith.addf %193, %212 : vector<2x16x16xf32>
    %c36 = arith.constant 36 : index
    %214 = memref.load %arg1[%c36] : memref<98xf32, #tpu.memory_space<smem>>
    %215 = vector.extract_strided_slice %28 {offsets = [0, 5, 0], sizes = [2, 16, 16], strides = [1, 1, 1]} : vector<2x22x16xf32> to vector<2x16x16xf32>
    %216 = vector.broadcast %214 : f32 to vector<2x16x16xf32>
    %217 = arith.mulf %216, %215 : vector<2x16x16xf32>
    %218 = arith.addf %198, %217 : vector<2x16x16xf32>
    %c37 = arith.constant 37 : index
    %219 = memref.load %arg1[%c37] : memref<98xf32, #tpu.memory_space<smem>>
    %220 = vector.extract_strided_slice %29 {offsets = [0, 5, 0], sizes = [2, 16, 16], strides = [1, 1, 1]} : vector<2x22x16xf32> to vector<2x16x16xf32>
    %221 = vector.broadcast %219 : f32 to vector<2x16x16xf32>
    %222 = arith.mulf %221, %220 : vector<2x16x16xf32>
    %223 = arith.addf %203, %222 : vector<2x16x16xf32>
    %c38 = arith.constant 38 : index
    %224 = memref.load %arg1[%c38] : memref<98xf32, #tpu.memory_space<smem>>
    %225 = vector.extract_strided_slice %30 {offsets = [0, 5, 0], sizes = [2, 16, 16], strides = [1, 1, 1]} : vector<2x22x16xf32> to vector<2x16x16xf32>
    %226 = vector.broadcast %224 : f32 to vector<2x16x16xf32>
    %227 = arith.mulf %226, %225 : vector<2x16x16xf32>
    %228 = arith.addf %208, %227 : vector<2x16x16xf32>
    %c39 = arith.constant 39 : index
    %229 = memref.load %arg1[%c39] : memref<98xf32, #tpu.memory_space<smem>>
    %230 = vector.extract_strided_slice %31 {offsets = [0, 5, 0], sizes = [2, 16, 16], strides = [1, 1, 1]} : vector<2x22x16xf32> to vector<2x16x16xf32>
    %231 = vector.broadcast %229 : f32 to vector<2x16x16xf32>
    %232 = arith.mulf %231, %230 : vector<2x16x16xf32>
    %233 = arith.addf %213, %232 : vector<2x16x16xf32>
    %c40 = arith.constant 40 : index
    %234 = memref.load %arg1[%c40] : memref<98xf32, #tpu.memory_space<smem>>
    %235 = vector.extract_strided_slice %32 {offsets = [0, 5, 0], sizes = [2, 16, 16], strides = [1, 1, 1]} : vector<2x22x16xf32> to vector<2x16x16xf32>
    %236 = vector.broadcast %234 : f32 to vector<2x16x16xf32>
    %237 = arith.mulf %236, %235 : vector<2x16x16xf32>
    %238 = arith.addf %218, %237 : vector<2x16x16xf32>
    %c41 = arith.constant 41 : index
    %239 = memref.load %arg1[%c41] : memref<98xf32, #tpu.memory_space<smem>>
    %240 = vector.extract_strided_slice %33 {offsets = [0, 5, 0], sizes = [2, 16, 16], strides = [1, 1, 1]} : vector<2x22x16xf32> to vector<2x16x16xf32>
    %241 = vector.broadcast %239 : f32 to vector<2x16x16xf32>
    %242 = arith.mulf %241, %240 : vector<2x16x16xf32>
    %243 = arith.addf %223, %242 : vector<2x16x16xf32>
    %c42 = arith.constant 42 : index
    %244 = memref.load %arg1[%c42] : memref<98xf32, #tpu.memory_space<smem>>
    %245 = vector.extract_strided_slice %27 {offsets = [0, 6, 0], sizes = [2, 16, 16], strides = [1, 1, 1]} : vector<2x22x16xf32> to vector<2x16x16xf32>
    %246 = vector.broadcast %244 : f32 to vector<2x16x16xf32>
    %247 = arith.mulf %246, %245 : vector<2x16x16xf32>
    %248 = arith.addf %228, %247 : vector<2x16x16xf32>
    %c43 = arith.constant 43 : index
    %249 = memref.load %arg1[%c43] : memref<98xf32, #tpu.memory_space<smem>>
    %250 = vector.extract_strided_slice %28 {offsets = [0, 6, 0], sizes = [2, 16, 16], strides = [1, 1, 1]} : vector<2x22x16xf32> to vector<2x16x16xf32>
    %251 = vector.broadcast %249 : f32 to vector<2x16x16xf32>
    %252 = arith.mulf %251, %250 : vector<2x16x16xf32>
    %253 = arith.addf %233, %252 : vector<2x16x16xf32>
    %c44 = arith.constant 44 : index
    %254 = memref.load %arg1[%c44] : memref<98xf32, #tpu.memory_space<smem>>
    %255 = vector.extract_strided_slice %29 {offsets = [0, 6, 0], sizes = [2, 16, 16], strides = [1, 1, 1]} : vector<2x22x16xf32> to vector<2x16x16xf32>
    %256 = vector.broadcast %254 : f32 to vector<2x16x16xf32>
    %257 = arith.mulf %256, %255 : vector<2x16x16xf32>
    %258 = arith.addf %238, %257 : vector<2x16x16xf32>
    %c45 = arith.constant 45 : index
    %259 = memref.load %arg1[%c45] : memref<98xf32, #tpu.memory_space<smem>>
    %260 = vector.extract_strided_slice %30 {offsets = [0, 6, 0], sizes = [2, 16, 16], strides = [1, 1, 1]} : vector<2x22x16xf32> to vector<2x16x16xf32>
    %261 = vector.broadcast %259 : f32 to vector<2x16x16xf32>
    %262 = arith.mulf %261, %260 : vector<2x16x16xf32>
    %263 = arith.addf %243, %262 : vector<2x16x16xf32>
    %c46 = arith.constant 46 : index
    %264 = memref.load %arg1[%c46] : memref<98xf32, #tpu.memory_space<smem>>
    %265 = vector.extract_strided_slice %31 {offsets = [0, 6, 0], sizes = [2, 16, 16], strides = [1, 1, 1]} : vector<2x22x16xf32> to vector<2x16x16xf32>
    %266 = vector.broadcast %264 : f32 to vector<2x16x16xf32>
    %267 = arith.mulf %266, %265 : vector<2x16x16xf32>
    %268 = arith.addf %248, %267 : vector<2x16x16xf32>
    %c47 = arith.constant 47 : index
    %269 = memref.load %arg1[%c47] : memref<98xf32, #tpu.memory_space<smem>>
    %270 = vector.extract_strided_slice %32 {offsets = [0, 6, 0], sizes = [2, 16, 16], strides = [1, 1, 1]} : vector<2x22x16xf32> to vector<2x16x16xf32>
    %271 = vector.broadcast %269 : f32 to vector<2x16x16xf32>
    %272 = arith.mulf %271, %270 : vector<2x16x16xf32>
    %273 = arith.addf %253, %272 : vector<2x16x16xf32>
    %c48 = arith.constant 48 : index
    %274 = memref.load %arg1[%c48] : memref<98xf32, #tpu.memory_space<smem>>
    %275 = vector.extract_strided_slice %33 {offsets = [0, 6, 0], sizes = [2, 16, 16], strides = [1, 1, 1]} : vector<2x22x16xf32> to vector<2x16x16xf32>
    %276 = vector.broadcast %274 : f32 to vector<2x16x16xf32>
    %277 = arith.mulf %276, %275 : vector<2x16x16xf32>
    %278 = arith.addf %258, %277 : vector<2x16x16xf32>
    %c0_37 = arith.constant 0 : index
    %c0_38 = arith.constant 0 : index
    %c0_39 = arith.constant 0 : index
    %279 = vector.load %arg5[%c0_37, %c0_38, %c0_39] : memref<2x22x22xf32, #tpu.memory_space<vmem>>, vector<2x22x22xf32>
    %280 = vector.extract_strided_slice %279 {offsets = [0, 0, 0], sizes = [2, 22, 16], strides = [1, 1, 1]} : vector<2x22x22xf32> to vector<2x22x16xf32>
    %281 = vector.extract_strided_slice %279 {offsets = [0, 0, 1], sizes = [2, 22, 16], strides = [1, 1, 1]} : vector<2x22x22xf32> to vector<2x22x16xf32>
    %282 = vector.extract_strided_slice %279 {offsets = [0, 0, 2], sizes = [2, 22, 16], strides = [1, 1, 1]} : vector<2x22x22xf32> to vector<2x22x16xf32>
    %283 = vector.extract_strided_slice %279 {offsets = [0, 0, 3], sizes = [2, 22, 16], strides = [1, 1, 1]} : vector<2x22x22xf32> to vector<2x22x16xf32>
    %284 = vector.extract_strided_slice %279 {offsets = [0, 0, 4], sizes = [2, 22, 16], strides = [1, 1, 1]} : vector<2x22x22xf32> to vector<2x22x16xf32>
    %285 = vector.extract_strided_slice %279 {offsets = [0, 0, 5], sizes = [2, 22, 16], strides = [1, 1, 1]} : vector<2x22x22xf32> to vector<2x22x16xf32>
    %286 = vector.extract_strided_slice %279 {offsets = [0, 0, 6], sizes = [2, 22, 16], strides = [1, 1, 1]} : vector<2x22x22xf32> to vector<2x22x16xf32>
    %c49 = arith.constant 49 : index
    %287 = memref.load %arg1[%c49] : memref<98xf32, #tpu.memory_space<smem>>
    %288 = vector.extract_strided_slice %280 {offsets = [0, 0, 0], sizes = [2, 16, 16], strides = [1, 1, 1]} : vector<2x22x16xf32> to vector<2x16x16xf32>
    %289 = vector.broadcast %287 : f32 to vector<2x16x16xf32>
    %290 = arith.mulf %289, %288 : vector<2x16x16xf32>
    %291 = arith.addf %263, %290 : vector<2x16x16xf32>
    %c50 = arith.constant 50 : index
    %292 = memref.load %arg1[%c50] : memref<98xf32, #tpu.memory_space<smem>>
    %293 = vector.extract_strided_slice %281 {offsets = [0, 0, 0], sizes = [2, 16, 16], strides = [1, 1, 1]} : vector<2x22x16xf32> to vector<2x16x16xf32>
    %294 = vector.broadcast %292 : f32 to vector<2x16x16xf32>
    %295 = arith.mulf %294, %293 : vector<2x16x16xf32>
    %296 = arith.addf %268, %295 : vector<2x16x16xf32>
    %c51 = arith.constant 51 : index
    %297 = memref.load %arg1[%c51] : memref<98xf32, #tpu.memory_space<smem>>
    %298 = vector.extract_strided_slice %282 {offsets = [0, 0, 0], sizes = [2, 16, 16], strides = [1, 1, 1]} : vector<2x22x16xf32> to vector<2x16x16xf32>
    %299 = vector.broadcast %297 : f32 to vector<2x16x16xf32>
    %300 = arith.mulf %299, %298 : vector<2x16x16xf32>
    %301 = arith.addf %273, %300 : vector<2x16x16xf32>
    %c52 = arith.constant 52 : index
    %302 = memref.load %arg1[%c52] : memref<98xf32, #tpu.memory_space<smem>>
    %303 = vector.extract_strided_slice %283 {offsets = [0, 0, 0], sizes = [2, 16, 16], strides = [1, 1, 1]} : vector<2x22x16xf32> to vector<2x16x16xf32>
    %304 = vector.broadcast %302 : f32 to vector<2x16x16xf32>
    %305 = arith.mulf %304, %303 : vector<2x16x16xf32>
    %306 = arith.addf %278, %305 : vector<2x16x16xf32>
    %c53 = arith.constant 53 : index
    %307 = memref.load %arg1[%c53] : memref<98xf32, #tpu.memory_space<smem>>
    %308 = vector.extract_strided_slice %284 {offsets = [0, 0, 0], sizes = [2, 16, 16], strides = [1, 1, 1]} : vector<2x22x16xf32> to vector<2x16x16xf32>
    %309 = vector.broadcast %307 : f32 to vector<2x16x16xf32>
    %310 = arith.mulf %309, %308 : vector<2x16x16xf32>
    %311 = arith.addf %291, %310 : vector<2x16x16xf32>
    %c54 = arith.constant 54 : index
    %312 = memref.load %arg1[%c54] : memref<98xf32, #tpu.memory_space<smem>>
    %313 = vector.extract_strided_slice %285 {offsets = [0, 0, 0], sizes = [2, 16, 16], strides = [1, 1, 1]} : vector<2x22x16xf32> to vector<2x16x16xf32>
    %314 = vector.broadcast %312 : f32 to vector<2x16x16xf32>
    %315 = arith.mulf %314, %313 : vector<2x16x16xf32>
    %316 = arith.addf %296, %315 : vector<2x16x16xf32>
    %c55 = arith.constant 55 : index
    %317 = memref.load %arg1[%c55] : memref<98xf32, #tpu.memory_space<smem>>
    %318 = vector.extract_strided_slice %286 {offsets = [0, 0, 0], sizes = [2, 16, 16], strides = [1, 1, 1]} : vector<2x22x16xf32> to vector<2x16x16xf32>
    %319 = vector.broadcast %317 : f32 to vector<2x16x16xf32>
    %320 = arith.mulf %319, %318 : vector<2x16x16xf32>
    %321 = arith.addf %301, %320 : vector<2x16x16xf32>
    %c56 = arith.constant 56 : index
    %322 = memref.load %arg1[%c56] : memref<98xf32, #tpu.memory_space<smem>>
    %323 = vector.extract_strided_slice %280 {offsets = [0, 1, 0], sizes = [2, 16, 16], strides = [1, 1, 1]} : vector<2x22x16xf32> to vector<2x16x16xf32>
    %324 = vector.broadcast %322 : f32 to vector<2x16x16xf32>
    %325 = arith.mulf %324, %323 : vector<2x16x16xf32>
    %326 = arith.addf %306, %325 : vector<2x16x16xf32>
    %c57 = arith.constant 57 : index
    %327 = memref.load %arg1[%c57] : memref<98xf32, #tpu.memory_space<smem>>
    %328 = vector.extract_strided_slice %281 {offsets = [0, 1, 0], sizes = [2, 16, 16], strides = [1, 1, 1]} : vector<2x22x16xf32> to vector<2x16x16xf32>
    %329 = vector.broadcast %327 : f32 to vector<2x16x16xf32>
    %330 = arith.mulf %329, %328 : vector<2x16x16xf32>
    %331 = arith.addf %311, %330 : vector<2x16x16xf32>
    %c58 = arith.constant 58 : index
    %332 = memref.load %arg1[%c58] : memref<98xf32, #tpu.memory_space<smem>>
    %333 = vector.extract_strided_slice %282 {offsets = [0, 1, 0], sizes = [2, 16, 16], strides = [1, 1, 1]} : vector<2x22x16xf32> to vector<2x16x16xf32>
    %334 = vector.broadcast %332 : f32 to vector<2x16x16xf32>
    %335 = arith.mulf %334, %333 : vector<2x16x16xf32>
    %336 = arith.addf %316, %335 : vector<2x16x16xf32>
    %c59 = arith.constant 59 : index
    %337 = memref.load %arg1[%c59] : memref<98xf32, #tpu.memory_space<smem>>
    %338 = vector.extract_strided_slice %283 {offsets = [0, 1, 0], sizes = [2, 16, 16], strides = [1, 1, 1]} : vector<2x22x16xf32> to vector<2x16x16xf32>
    %339 = vector.broadcast %337 : f32 to vector<2x16x16xf32>
    %340 = arith.mulf %339, %338 : vector<2x16x16xf32>
    %341 = arith.addf %321, %340 : vector<2x16x16xf32>
    %c60 = arith.constant 60 : index
    %342 = memref.load %arg1[%c60] : memref<98xf32, #tpu.memory_space<smem>>
    %343 = vector.extract_strided_slice %284 {offsets = [0, 1, 0], sizes = [2, 16, 16], strides = [1, 1, 1]} : vector<2x22x16xf32> to vector<2x16x16xf32>
    %344 = vector.broadcast %342 : f32 to vector<2x16x16xf32>
    %345 = arith.mulf %344, %343 : vector<2x16x16xf32>
    %346 = arith.addf %326, %345 : vector<2x16x16xf32>
    %c61 = arith.constant 61 : index
    %347 = memref.load %arg1[%c61] : memref<98xf32, #tpu.memory_space<smem>>
    %348 = vector.extract_strided_slice %285 {offsets = [0, 1, 0], sizes = [2, 16, 16], strides = [1, 1, 1]} : vector<2x22x16xf32> to vector<2x16x16xf32>
    %349 = vector.broadcast %347 : f32 to vector<2x16x16xf32>
    %350 = arith.mulf %349, %348 : vector<2x16x16xf32>
    %351 = arith.addf %331, %350 : vector<2x16x16xf32>
    %c62 = arith.constant 62 : index
    %352 = memref.load %arg1[%c62] : memref<98xf32, #tpu.memory_space<smem>>
    %353 = vector.extract_strided_slice %286 {offsets = [0, 1, 0], sizes = [2, 16, 16], strides = [1, 1, 1]} : vector<2x22x16xf32> to vector<2x16x16xf32>
    %354 = vector.broadcast %352 : f32 to vector<2x16x16xf32>
    %355 = arith.mulf %354, %353 : vector<2x16x16xf32>
    %356 = arith.addf %336, %355 : vector<2x16x16xf32>
    %c63 = arith.constant 63 : index
    %357 = memref.load %arg1[%c63] : memref<98xf32, #tpu.memory_space<smem>>
    %358 = vector.extract_strided_slice %280 {offsets = [0, 2, 0], sizes = [2, 16, 16], strides = [1, 1, 1]} : vector<2x22x16xf32> to vector<2x16x16xf32>
    %359 = vector.broadcast %357 : f32 to vector<2x16x16xf32>
    %360 = arith.mulf %359, %358 : vector<2x16x16xf32>
    %361 = arith.addf %341, %360 : vector<2x16x16xf32>
    %c64 = arith.constant 64 : index
    %362 = memref.load %arg1[%c64] : memref<98xf32, #tpu.memory_space<smem>>
    %363 = vector.extract_strided_slice %281 {offsets = [0, 2, 0], sizes = [2, 16, 16], strides = [1, 1, 1]} : vector<2x22x16xf32> to vector<2x16x16xf32>
    %364 = vector.broadcast %362 : f32 to vector<2x16x16xf32>
    %365 = arith.mulf %364, %363 : vector<2x16x16xf32>
    %366 = arith.addf %346, %365 : vector<2x16x16xf32>
    %c65 = arith.constant 65 : index
    %367 = memref.load %arg1[%c65] : memref<98xf32, #tpu.memory_space<smem>>
    %368 = vector.extract_strided_slice %282 {offsets = [0, 2, 0], sizes = [2, 16, 16], strides = [1, 1, 1]} : vector<2x22x16xf32> to vector<2x16x16xf32>
    %369 = vector.broadcast %367 : f32 to vector<2x16x16xf32>
    %370 = arith.mulf %369, %368 : vector<2x16x16xf32>
    %371 = arith.addf %351, %370 : vector<2x16x16xf32>
    %c66 = arith.constant 66 : index
    %372 = memref.load %arg1[%c66] : memref<98xf32, #tpu.memory_space<smem>>
    %373 = vector.extract_strided_slice %283 {offsets = [0, 2, 0], sizes = [2, 16, 16], strides = [1, 1, 1]} : vector<2x22x16xf32> to vector<2x16x16xf32>
    %374 = vector.broadcast %372 : f32 to vector<2x16x16xf32>
    %375 = arith.mulf %374, %373 : vector<2x16x16xf32>
    %376 = arith.addf %356, %375 : vector<2x16x16xf32>
    %c67 = arith.constant 67 : index
    %377 = memref.load %arg1[%c67] : memref<98xf32, #tpu.memory_space<smem>>
    %378 = vector.extract_strided_slice %284 {offsets = [0, 2, 0], sizes = [2, 16, 16], strides = [1, 1, 1]} : vector<2x22x16xf32> to vector<2x16x16xf32>
    %379 = vector.broadcast %377 : f32 to vector<2x16x16xf32>
    %380 = arith.mulf %379, %378 : vector<2x16x16xf32>
    %381 = arith.addf %361, %380 : vector<2x16x16xf32>
    %c68 = arith.constant 68 : index
    %382 = memref.load %arg1[%c68] : memref<98xf32, #tpu.memory_space<smem>>
    %383 = vector.extract_strided_slice %285 {offsets = [0, 2, 0], sizes = [2, 16, 16], strides = [1, 1, 1]} : vector<2x22x16xf32> to vector<2x16x16xf32>
    %384 = vector.broadcast %382 : f32 to vector<2x16x16xf32>
    %385 = arith.mulf %384, %383 : vector<2x16x16xf32>
    %386 = arith.addf %366, %385 : vector<2x16x16xf32>
    %c69 = arith.constant 69 : index
    %387 = memref.load %arg1[%c69] : memref<98xf32, #tpu.memory_space<smem>>
    %388 = vector.extract_strided_slice %286 {offsets = [0, 2, 0], sizes = [2, 16, 16], strides = [1, 1, 1]} : vector<2x22x16xf32> to vector<2x16x16xf32>
    %389 = vector.broadcast %387 : f32 to vector<2x16x16xf32>
    %390 = arith.mulf %389, %388 : vector<2x16x16xf32>
    %391 = arith.addf %371, %390 : vector<2x16x16xf32>
    %c70 = arith.constant 70 : index
    %392 = memref.load %arg1[%c70] : memref<98xf32, #tpu.memory_space<smem>>
    %393 = vector.extract_strided_slice %280 {offsets = [0, 3, 0], sizes = [2, 16, 16], strides = [1, 1, 1]} : vector<2x22x16xf32> to vector<2x16x16xf32>
    %394 = vector.broadcast %392 : f32 to vector<2x16x16xf32>
    %395 = arith.mulf %394, %393 : vector<2x16x16xf32>
    %396 = arith.addf %376, %395 : vector<2x16x16xf32>
    %c71 = arith.constant 71 : index
    %397 = memref.load %arg1[%c71] : memref<98xf32, #tpu.memory_space<smem>>
    %398 = vector.extract_strided_slice %281 {offsets = [0, 3, 0], sizes = [2, 16, 16], strides = [1, 1, 1]} : vector<2x22x16xf32> to vector<2x16x16xf32>
    %399 = vector.broadcast %397 : f32 to vector<2x16x16xf32>
    %400 = arith.mulf %399, %398 : vector<2x16x16xf32>
    %401 = arith.addf %381, %400 : vector<2x16x16xf32>
    %c72 = arith.constant 72 : index
    %402 = memref.load %arg1[%c72] : memref<98xf32, #tpu.memory_space<smem>>
    %403 = vector.extract_strided_slice %282 {offsets = [0, 3, 0], sizes = [2, 16, 16], strides = [1, 1, 1]} : vector<2x22x16xf32> to vector<2x16x16xf32>
    %404 = vector.broadcast %402 : f32 to vector<2x16x16xf32>
    %405 = arith.mulf %404, %403 : vector<2x16x16xf32>
    %406 = arith.addf %386, %405 : vector<2x16x16xf32>
    %c73 = arith.constant 73 : index
    %407 = memref.load %arg1[%c73] : memref<98xf32, #tpu.memory_space<smem>>
    %408 = vector.extract_strided_slice %283 {offsets = [0, 3, 0], sizes = [2, 16, 16], strides = [1, 1, 1]} : vector<2x22x16xf32> to vector<2x16x16xf32>
    %409 = vector.broadcast %407 : f32 to vector<2x16x16xf32>
    %410 = arith.mulf %409, %408 : vector<2x16x16xf32>
    %411 = arith.addf %391, %410 : vector<2x16x16xf32>
    %c74 = arith.constant 74 : index
    %412 = memref.load %arg1[%c74] : memref<98xf32, #tpu.memory_space<smem>>
    %413 = vector.extract_strided_slice %284 {offsets = [0, 3, 0], sizes = [2, 16, 16], strides = [1, 1, 1]} : vector<2x22x16xf32> to vector<2x16x16xf32>
    %414 = vector.broadcast %412 : f32 to vector<2x16x16xf32>
    %415 = arith.mulf %414, %413 : vector<2x16x16xf32>
    %416 = arith.addf %396, %415 : vector<2x16x16xf32>
    %c75 = arith.constant 75 : index
    %417 = memref.load %arg1[%c75] : memref<98xf32, #tpu.memory_space<smem>>
    %418 = vector.extract_strided_slice %285 {offsets = [0, 3, 0], sizes = [2, 16, 16], strides = [1, 1, 1]} : vector<2x22x16xf32> to vector<2x16x16xf32>
    %419 = vector.broadcast %417 : f32 to vector<2x16x16xf32>
    %420 = arith.mulf %419, %418 : vector<2x16x16xf32>
    %421 = arith.addf %401, %420 : vector<2x16x16xf32>
    %c76 = arith.constant 76 : index
    %422 = memref.load %arg1[%c76] : memref<98xf32, #tpu.memory_space<smem>>
    %423 = vector.extract_strided_slice %286 {offsets = [0, 3, 0], sizes = [2, 16, 16], strides = [1, 1, 1]} : vector<2x22x16xf32> to vector<2x16x16xf32>
    %424 = vector.broadcast %422 : f32 to vector<2x16x16xf32>
    %425 = arith.mulf %424, %423 : vector<2x16x16xf32>
    %426 = arith.addf %406, %425 : vector<2x16x16xf32>
    %c77 = arith.constant 77 : index
    %427 = memref.load %arg1[%c77] : memref<98xf32, #tpu.memory_space<smem>>
    %428 = vector.extract_strided_slice %280 {offsets = [0, 4, 0], sizes = [2, 16, 16], strides = [1, 1, 1]} : vector<2x22x16xf32> to vector<2x16x16xf32>
    %429 = vector.broadcast %427 : f32 to vector<2x16x16xf32>
    %430 = arith.mulf %429, %428 : vector<2x16x16xf32>
    %431 = arith.addf %411, %430 : vector<2x16x16xf32>
    %c78 = arith.constant 78 : index
    %432 = memref.load %arg1[%c78] : memref<98xf32, #tpu.memory_space<smem>>
    %433 = vector.extract_strided_slice %281 {offsets = [0, 4, 0], sizes = [2, 16, 16], strides = [1, 1, 1]} : vector<2x22x16xf32> to vector<2x16x16xf32>
    %434 = vector.broadcast %432 : f32 to vector<2x16x16xf32>
    %435 = arith.mulf %434, %433 : vector<2x16x16xf32>
    %436 = arith.addf %416, %435 : vector<2x16x16xf32>
    %c79 = arith.constant 79 : index
    %437 = memref.load %arg1[%c79] : memref<98xf32, #tpu.memory_space<smem>>
    %438 = vector.extract_strided_slice %282 {offsets = [0, 4, 0], sizes = [2, 16, 16], strides = [1, 1, 1]} : vector<2x22x16xf32> to vector<2x16x16xf32>
    %439 = vector.broadcast %437 : f32 to vector<2x16x16xf32>
    %440 = arith.mulf %439, %438 : vector<2x16x16xf32>
    %441 = arith.addf %421, %440 : vector<2x16x16xf32>
    %c80 = arith.constant 80 : index
    %442 = memref.load %arg1[%c80] : memref<98xf32, #tpu.memory_space<smem>>
    %443 = vector.extract_strided_slice %283 {offsets = [0, 4, 0], sizes = [2, 16, 16], strides = [1, 1, 1]} : vector<2x22x16xf32> to vector<2x16x16xf32>
    %444 = vector.broadcast %442 : f32 to vector<2x16x16xf32>
    %445 = arith.mulf %444, %443 : vector<2x16x16xf32>
    %446 = arith.addf %426, %445 : vector<2x16x16xf32>
    %c81 = arith.constant 81 : index
    %447 = memref.load %arg1[%c81] : memref<98xf32, #tpu.memory_space<smem>>
    %448 = vector.extract_strided_slice %284 {offsets = [0, 4, 0], sizes = [2, 16, 16], strides = [1, 1, 1]} : vector<2x22x16xf32> to vector<2x16x16xf32>
    %449 = vector.broadcast %447 : f32 to vector<2x16x16xf32>
    %450 = arith.mulf %449, %448 : vector<2x16x16xf32>
    %451 = arith.addf %431, %450 : vector<2x16x16xf32>
    %c82 = arith.constant 82 : index
    %452 = memref.load %arg1[%c82] : memref<98xf32, #tpu.memory_space<smem>>
    %453 = vector.extract_strided_slice %285 {offsets = [0, 4, 0], sizes = [2, 16, 16], strides = [1, 1, 1]} : vector<2x22x16xf32> to vector<2x16x16xf32>
    %454 = vector.broadcast %452 : f32 to vector<2x16x16xf32>
    %455 = arith.mulf %454, %453 : vector<2x16x16xf32>
    %456 = arith.addf %436, %455 : vector<2x16x16xf32>
    %c83 = arith.constant 83 : index
    %457 = memref.load %arg1[%c83] : memref<98xf32, #tpu.memory_space<smem>>
    %458 = vector.extract_strided_slice %286 {offsets = [0, 4, 0], sizes = [2, 16, 16], strides = [1, 1, 1]} : vector<2x22x16xf32> to vector<2x16x16xf32>
    %459 = vector.broadcast %457 : f32 to vector<2x16x16xf32>
    %460 = arith.mulf %459, %458 : vector<2x16x16xf32>
    %461 = arith.addf %441, %460 : vector<2x16x16xf32>
    %c84 = arith.constant 84 : index
    %462 = memref.load %arg1[%c84] : memref<98xf32, #tpu.memory_space<smem>>
    %463 = vector.extract_strided_slice %280 {offsets = [0, 5, 0], sizes = [2, 16, 16], strides = [1, 1, 1]} : vector<2x22x16xf32> to vector<2x16x16xf32>
    %464 = vector.broadcast %462 : f32 to vector<2x16x16xf32>
    %465 = arith.mulf %464, %463 : vector<2x16x16xf32>
    %466 = arith.addf %446, %465 : vector<2x16x16xf32>
    %c85 = arith.constant 85 : index
    %467 = memref.load %arg1[%c85] : memref<98xf32, #tpu.memory_space<smem>>
    %468 = vector.extract_strided_slice %281 {offsets = [0, 5, 0], sizes = [2, 16, 16], strides = [1, 1, 1]} : vector<2x22x16xf32> to vector<2x16x16xf32>
    %469 = vector.broadcast %467 : f32 to vector<2x16x16xf32>
    %470 = arith.mulf %469, %468 : vector<2x16x16xf32>
    %471 = arith.addf %451, %470 : vector<2x16x16xf32>
    %c86 = arith.constant 86 : index
    %472 = memref.load %arg1[%c86] : memref<98xf32, #tpu.memory_space<smem>>
    %473 = vector.extract_strided_slice %282 {offsets = [0, 5, 0], sizes = [2, 16, 16], strides = [1, 1, 1]} : vector<2x22x16xf32> to vector<2x16x16xf32>
    %474 = vector.broadcast %472 : f32 to vector<2x16x16xf32>
    %475 = arith.mulf %474, %473 : vector<2x16x16xf32>
    %476 = arith.addf %456, %475 : vector<2x16x16xf32>
    %c87 = arith.constant 87 : index
    %477 = memref.load %arg1[%c87] : memref<98xf32, #tpu.memory_space<smem>>
    %478 = vector.extract_strided_slice %283 {offsets = [0, 5, 0], sizes = [2, 16, 16], strides = [1, 1, 1]} : vector<2x22x16xf32> to vector<2x16x16xf32>
    %479 = vector.broadcast %477 : f32 to vector<2x16x16xf32>
    %480 = arith.mulf %479, %478 : vector<2x16x16xf32>
    %481 = arith.addf %461, %480 : vector<2x16x16xf32>
    %c88 = arith.constant 88 : index
    %482 = memref.load %arg1[%c88] : memref<98xf32, #tpu.memory_space<smem>>
    %483 = vector.extract_strided_slice %284 {offsets = [0, 5, 0], sizes = [2, 16, 16], strides = [1, 1, 1]} : vector<2x22x16xf32> to vector<2x16x16xf32>
    %484 = vector.broadcast %482 : f32 to vector<2x16x16xf32>
    %485 = arith.mulf %484, %483 : vector<2x16x16xf32>
    %486 = arith.addf %466, %485 : vector<2x16x16xf32>
    %c89 = arith.constant 89 : index
    %487 = memref.load %arg1[%c89] : memref<98xf32, #tpu.memory_space<smem>>
    %488 = vector.extract_strided_slice %285 {offsets = [0, 5, 0], sizes = [2, 16, 16], strides = [1, 1, 1]} : vector<2x22x16xf32> to vector<2x16x16xf32>
    %489 = vector.broadcast %487 : f32 to vector<2x16x16xf32>
    %490 = arith.mulf %489, %488 : vector<2x16x16xf32>
    %491 = arith.addf %471, %490 : vector<2x16x16xf32>
    %c90 = arith.constant 90 : index
    %492 = memref.load %arg1[%c90] : memref<98xf32, #tpu.memory_space<smem>>
    %493 = vector.extract_strided_slice %286 {offsets = [0, 5, 0], sizes = [2, 16, 16], strides = [1, 1, 1]} : vector<2x22x16xf32> to vector<2x16x16xf32>
    %494 = vector.broadcast %492 : f32 to vector<2x16x16xf32>
    %495 = arith.mulf %494, %493 : vector<2x16x16xf32>
    %496 = arith.addf %476, %495 : vector<2x16x16xf32>
    %c91 = arith.constant 91 : index
    %497 = memref.load %arg1[%c91] : memref<98xf32, #tpu.memory_space<smem>>
    %498 = vector.extract_strided_slice %280 {offsets = [0, 6, 0], sizes = [2, 16, 16], strides = [1, 1, 1]} : vector<2x22x16xf32> to vector<2x16x16xf32>
    %499 = vector.broadcast %497 : f32 to vector<2x16x16xf32>
    %500 = arith.mulf %499, %498 : vector<2x16x16xf32>
    %501 = arith.addf %481, %500 : vector<2x16x16xf32>
    %c92 = arith.constant 92 : index
    %502 = memref.load %arg1[%c92] : memref<98xf32, #tpu.memory_space<smem>>
    %503 = vector.extract_strided_slice %281 {offsets = [0, 6, 0], sizes = [2, 16, 16], strides = [1, 1, 1]} : vector<2x22x16xf32> to vector<2x16x16xf32>
    %504 = vector.broadcast %502 : f32 to vector<2x16x16xf32>
    %505 = arith.mulf %504, %503 : vector<2x16x16xf32>
    %506 = arith.addf %486, %505 : vector<2x16x16xf32>
    %c93 = arith.constant 93 : index
    %507 = memref.load %arg1[%c93] : memref<98xf32, #tpu.memory_space<smem>>
    %508 = vector.extract_strided_slice %282 {offsets = [0, 6, 0], sizes = [2, 16, 16], strides = [1, 1, 1]} : vector<2x22x16xf32> to vector<2x16x16xf32>
    %509 = vector.broadcast %507 : f32 to vector<2x16x16xf32>
    %510 = arith.mulf %509, %508 : vector<2x16x16xf32>
    %511 = arith.addf %491, %510 : vector<2x16x16xf32>
    %c94 = arith.constant 94 : index
    %512 = memref.load %arg1[%c94] : memref<98xf32, #tpu.memory_space<smem>>
    %513 = vector.extract_strided_slice %283 {offsets = [0, 6, 0], sizes = [2, 16, 16], strides = [1, 1, 1]} : vector<2x22x16xf32> to vector<2x16x16xf32>
    %514 = vector.broadcast %512 : f32 to vector<2x16x16xf32>
    %515 = arith.mulf %514, %513 : vector<2x16x16xf32>
    %516 = arith.addf %496, %515 : vector<2x16x16xf32>
    %c95 = arith.constant 95 : index
    %517 = memref.load %arg1[%c95] : memref<98xf32, #tpu.memory_space<smem>>
    %518 = vector.extract_strided_slice %284 {offsets = [0, 6, 0], sizes = [2, 16, 16], strides = [1, 1, 1]} : vector<2x22x16xf32> to vector<2x16x16xf32>
    %519 = vector.broadcast %517 : f32 to vector<2x16x16xf32>
    %520 = arith.mulf %519, %518 : vector<2x16x16xf32>
    %521 = arith.addf %501, %520 : vector<2x16x16xf32>
    %c96 = arith.constant 96 : index
    %522 = memref.load %arg1[%c96] : memref<98xf32, #tpu.memory_space<smem>>
    %523 = vector.extract_strided_slice %285 {offsets = [0, 6, 0], sizes = [2, 16, 16], strides = [1, 1, 1]} : vector<2x22x16xf32> to vector<2x16x16xf32>
    %524 = vector.broadcast %522 : f32 to vector<2x16x16xf32>
    %525 = arith.mulf %524, %523 : vector<2x16x16xf32>
    %526 = arith.addf %506, %525 : vector<2x16x16xf32>
    %c97 = arith.constant 97 : index
    %527 = memref.load %arg1[%c97] : memref<98xf32, #tpu.memory_space<smem>>
    %528 = vector.extract_strided_slice %286 {offsets = [0, 6, 0], sizes = [2, 16, 16], strides = [1, 1, 1]} : vector<2x22x16xf32> to vector<2x16x16xf32>
    %529 = vector.broadcast %527 : f32 to vector<2x16x16xf32>
    %530 = arith.mulf %529, %528 : vector<2x16x16xf32>
    %531 = arith.addf %511, %530 : vector<2x16x16xf32>
    %532 = arith.addf %526, %531 : vector<2x16x16xf32>
    %533 = arith.addf %516, %521 : vector<2x16x16xf32>
    %534 = arith.addf %532, %533 : vector<2x16x16xf32>
    %535 = arith.negf %534 : vector<2x16x16xf32>
    %536 = math.exp %535 : vector<2x16x16xf32>
    %cst_40 = arith.constant 1.000000e+00 : f32
    %537 = vector.broadcast %cst_40 : f32 to vector<2x16x16xf32>
    %538 = arith.addf %537, %536 : vector<2x16x16xf32>
    %539 = arith.divf %537, %538 : vector<2x16x16xf32>
    %c0_41 = arith.constant 0 : index
    %c0_42 = arith.constant 0 : index
    %c0_43 = arith.constant 0 : index
    %540 = vector.load %arg3[%c0_41, %c0_42, %c0_43] : memref<2x16x16xf32, #tpu.memory_space<vmem>>, vector<2x16x16xf32>
    tpu.vector_store %arg3[%c0_41, %c0_42, %c0_43], %539 {strides = array<i32>} : memref<2x16x16xf32, #tpu.memory_space<vmem>>, vector<2x16x16xf32>,
    return
  }
  func.func @transform_0(%arg0: i32) -> i32 {
    %c0_i32 = arith.constant 0 : i32
    %c0_i32_0 = arith.constant 0 : i32
    return %c0_i32 : i32
  }
  func.func @transform_1(%arg0: i32) -> (i32, i32, i32, i32) {
    %c0_i32 = arith.constant 0 : i32
    %c0_i32_0 = arith.constant 0 : i32
    %c0_i32_1 = arith.constant 0 : i32
    %c0_i32_2 = arith.constant 0 : i32
    return %arg0, %c0_i32, %c0_i32_0, %c0_i32_1 : i32, i32, i32, i32
  }
  func.func @transform_2(%arg0: i32) -> (i32, i32, i32) {
    %c0_i32 = arith.constant 0 : i32
    %c0_i32_0 = arith.constant 0 : i32
    %c0_i32_1 = arith.constant 0 : i32
    return %arg0, %c0_i32, %c0_i32_0 : i32, i32, i32
  }
}

</mosaic_0001>

<llo_original>
// kernel: tpu_custom_call.1
$region0: #{tpu_custom_call.1}
  #allocation0 [shape = 'u32[]', space=smem, size = 0x4, offset = 0x4, fixed_abs, tag = 'smem constant byte address 0x4 - core index']
  #allocation1 [shape = 'u32[72,128]{1,0:T(1,128)}', space=vmem, size = 0x9000, scoped, tag = 'internal scratch']
  #allocation2 [shape = 'f32[2,22,22]{2,1,0:T(8,128)}', space=vmem, size = 0x6000, scoped, tag = 'scratch operand']
  #allocation3 [shape = 'f32[2,22,22]{2,1,0:T(8,128)}', space=vmem, size = 0x6000, scoped, tag = 'scratch operand']
  %s0 = inlined_call_operand.hbm [shape: f32[98], index: 0, kind: input, shape index: {}]
  %s1 = inlined_call_operand.hbm [shape: f32[2,4,16,16], index: 1, kind: input, shape index: {}]
  %s2 = inlined_call_operand.hbm [shape: f32[2,16,16], index: 2, kind: output, shape index: {}]
  %s3 = sld [smem:[#allocation0]]
  $region26: #{tpu_custom_call.1} parent=0
    _
  %s5 = ssub.s32 1, %s3
  %s6 = scalar_select 0, %s5, %s3
  $region1: #{tpu_custom_call.1} parent=0
    #allocation4 [shape = 'u8[512]{0}', space=smem, size = 0x200, scoped, tag = 'input window, operand 0, single buffered']
    #allocation5 [shape = 's32[1]{0}', space=sflag, size = 0x4, scoped, tag = 'scoped memory for tpu_custom_call.1']
    #allocation6 [shape = 's32[1]{0}', space=sflag, size = 0x4, scoped, tag = 'scoped memory for tpu_custom_call.1']
    #allocation7 [shape = 's32[1]{0}', space=sflag, size = 0x4, scoped, tag = 'scoped memory for tpu_custom_call.1']
    #allocation8 [shape = 'u8[65536]{0}', space=vmem, size = 0x10000, scoped, tag = 'input window, operand 1, single buffered']
    #allocation9 [shape = 'u8[16384]{0}', space=vmem, size = 0x4000, scoped, tag = 'output window, operand 0, single buffered']
    %7 = vsyncpa [#allocation7], 0
    %8 = vsyncpa [#allocation5], 0
    %9 = vsyncpa [#allocation6], 0
    // Predicated region
    $region2: #{tpu_custom_call.1} parent=1 // pred_check
      _
    $region3: #{tpu_custom_call.1} parent=1 // pred_check_branch
      %11 = sbr.rel (0) target = $region5
    $region4: #{tpu_custom_call.1} parent=1 // pred_region
      %13 = vsyncadd [#allocation7], 0
      %s15 = sshll.u32 %s0, 4
      %s16 = int_to_ptr.hbm [resolvable:$true] %s15
      %18 = dma.hbm_to_smem %s16, 16, [#allocation4], [#allocation7]
    $region5: #{tpu_custom_call.1} parent=1 // pred_fallthru
      _
    // Predicated region
    $region6: #{tpu_custom_call.1} parent=1 // pred_check
      _
    $region7: #{tpu_custom_call.1} parent=1 // pred_check_branch
      %20 = sbr.rel (0) target = $region9
    $region8: #{tpu_custom_call.1} parent=1 // pred_region
      %22 = vsyncadd [#allocation5], 0
      %s23 = sshll.u32 %s1, 4
      %s24 = int_to_ptr.hbm [resolvable:$true] %s23
      %s25 = sshll.u32 [#allocation8], 4
      %s26 = int_to_ptr.vmem [resolvable:$true] %s25
      %31 = dma.hbm_to_vmem [thread:$0]  %s24, 2048, %s26, [#allocation5], 128, 128, 8
    $region9: #{tpu_custom_call.1} parent=1 // pred_fallthru
      _
    // Predicated region
    $region10: #{tpu_custom_call.1} parent=1 // pred_check
      _
    $region11: #{tpu_custom_call.1} parent=1 // pred_check_branch
      %33 = sbr.rel (0) target = $region13
    $region12: #{tpu_custom_call.1} parent=1 // pred_region
      %35 = dma.done [#allocation7], 16
    $region13: #{tpu_custom_call.1} parent=1 // pred_fallthru
      _
    // Predicated region
    $region14: #{tpu_custom_call.1} parent=1 // pred_check
      _
    $region15: #{tpu_custom_call.1} parent=1 // pred_check_branch
      %37 = sbr.rel (0) target = $region17
    $region16: #{tpu_custom_call.1} parent=1 // pred_region
      %39 = dma.done [#allocation5], 2048
    $region17: #{tpu_custom_call.1} parent=1 // pred_fallthru
      _
    %40 = sfence
    %v41 = vld [vmem:[#allocation8] sm:$0xff]
    %v42 = vld [vmem:[#allocation8 + $0x8] sm:$0xff]
    %v43 = vld [vmem:[#allocation8 + $0x40] sm:$0xff]
    %v44 = vld [vmem:[#allocation8 + $0x48] sm:$0xff]
    %s45 = scalar_lea.vmem [#allocation8], 16
    %v46 = vld [vmem:[%s45] sm:$0xff]
    %v47 = vld [vmem:[%s45 + $0x8] sm:$0xff]
    %v48 = vld [vmem:[%s45 + $0x40] sm:$0xff]
    %v49 = vld [vmem:[%s45 + $0x48] sm:$0xff]
    %v50 = vadd.f32 %v41, %v46
    %v51 = vadd.f32 %v42, %v47
    %v52 = vadd.f32 %v43, %v48
    %v53 = vadd.f32 %v44, %v49
    %v54 = vmax.f32 %v41, %v46
    %v55 = vmax.f32 %v42, %v47
    %v56 = vmax.f32 %v43, %v48
    %v57 = vmax.f32 %v44, %v49
    %s58 = scalar_lea.vmem [#allocation8], 32
    %v59 = vld [vmem:[%s58] sm:$0xff]
    %v60 = vld [vmem:[%s58 + $0x8] sm:$0xff]
    %v61 = vld [vmem:[%s58 + $0x40] sm:$0xff]
    %v62 = vld [vmem:[%s58 + $0x48] sm:$0xff]
    %v63 = vadd.f32 %v50, %v59
    %v64 = vadd.f32 %v51, %v60
    %v65 = vadd.f32 %v52, %v61
    %v66 = vadd.f32 %v53, %v62
    %v67 = vmax.f32 %v54, %v59
    %v68 = vmax.f32 %v55, %v60
    %v69 = vmax.f32 %v56, %v61
    %v70 = vmax.f32 %v57, %v62
    %s71 = scalar_lea.vmem [#allocation8], 48
    %v72 = vld [vmem:[%s71] sm:$0xff]
    %v73 = vld [vmem:[%s71 + $0x8] sm:$0xff]
    %v74 = vld [vmem:[%s71 + $0x40] sm:$0xff]
    %v75 = vld [vmem:[%s71 + $0x48] sm:$0xff]
    %v76 = vadd.f32 %v63, %v72
    %v77 = vadd.f32 %v64, %v73
    %v78 = vadd.f32 %v65, %v74
    %v79 = vadd.f32 %v66, %v75
    %v80 = vmax.f32 %v67, %v72
    %v81 = vmax.f32 %v68, %v73
    %v82 = vmax.f32 %v69, %v74
    %v83 = vmax.f32 %v70, %v75
    %v84 = vmul.f32 %v76, 0.25
    %v85 = vmul.f32 %v77, 0.25
    %v86 = vmul.f32 %v78, 0.25
    %v87 = vmul.f32 %v79, 0.25
    %vm88 = vcmask 179200
    %89 = vst.msk [vmem:[#allocation2] sm:$0xff] %vm88, 0.0
    %90 = vst.msk [vmem:[#allocation2 + $0x8] sm:$0xff] %vm88, 0.0
    %vm91 = vcmask 177152
    %92 = vst.msk [vmem:[#allocation2 + $0x10] sm:$0x3f] %vm91, 0.0
    %93 = vst.msk [vmem:[#allocation2 + $0x18] sm:$0xff] %vm88, 0.0
    %94 = vst.msk [vmem:[#allocation2 + $0x20] sm:$0xff] %vm88, 0.0
    %95 = vst.msk [vmem:[#allocation2 + $0x28] sm:$0x3f] %vm91, 0.0
    %96 = vst.msk [vmem:[#allocation3] sm:$0xff] %vm88, 0.0
    %97 = vst.msk [vmem:[#allocation3 + $0x8] sm:$0xff] %vm88, 0.0
    %98 = vst.msk [vmem:[#allocation3 + $0x10] sm:$0x3f] %vm91, 0.0
    %99 = vst.msk [vmem:[#allocation3 + $0x18] sm:$0xff] %vm88, 0.0
    %100 = vst.msk [vmem:[#allocation3 + $0x20] sm:$0xff] %vm88, 0.0
    %101 = vst.msk [vmem:[#allocation3 + $0x28] sm:$0x3f] %vm91, 0.0
    %106 = vrot.lane.b32.xlu0 %v84, 3
    %v107 = vpop.permute.xlu0 %106
    %108 = vrot.lane.b32.xlu0 %v85, 3
    %v109 = vpop.permute.xlu0 %108
    %110 = vrot.lane.b32.xlu0 %v86, 3
    %v111 = vpop.permute.xlu0 %110
    %112 = vrot.lane.b32.xlu0 %v87, 3
    %v113 = vpop.permute.xlu0 %112
    %vm118 = vcmask 154648
    %119 = vst.msk [vmem:[#allocation2 + $0x3] sm:$0xff] %vm118, %v107
    %120 = vst.msk [vmem:[#allocation2 + $0xb] sm:$0xff] %vm118, %v109
    %121 = vst.msk [vmem:[#allocation2 + $0x1b] sm:$0xff] %vm118, %v111
    %122 = vst.msk [vmem:[#allocation2 + $0x23] sm:$0xff] %vm118, %v113
    %127 = vrot.lane.b32.xlu0 %v80, 3
    %v128 = vpop.permute.xlu0 %127
    %129 = vrot.lane.b32.xlu0 %v81, 3
    %v130 = vpop.permute.xlu0 %129
    %131 = vrot.lane.b32.xlu0 %v82, 3
    %v132 = vpop.permute.xlu0 %131
    %133 = vrot.lane.b32.xlu0 %v83, 3
    %v134 = vpop.permute.xlu0 %133
    %139 = vst.msk [vmem:[#allocation3 + $0x3] sm:$0xff] %vm118, %v128
    %140 = vst.msk [vmem:[#allocation3 + $0xb] sm:$0xff] %vm118, %v130
    %141 = vst.msk [vmem:[#allocation3 + $0x1b] sm:$0xff] %vm118, %v132
    %142 = vst.msk [vmem:[#allocation3 + $0x23] sm:$0xff] %vm118, %v134
    %v143 = vld [vmem:[#allocation2] sm:$0xff]
    %v144 = vld [vmem:[#allocation2 + $0x8] sm:$0xff]
    %v145 = vld [vmem:[#allocation2 + $0x10] sm:$0x3f]
    %v146 = vld [vmem:[#allocation2 + $0x18] sm:$0xff]
    %v147 = vld [vmem:[#allocation2 + $0x20] sm:$0xff]
    %v148 = vld [vmem:[#allocation2 + $0x28] sm:$0x3f]
    %s149 = sld [smem:[#allocation4]]
    %v150 = vstv %s149
    %v151 = vmul.f32 %v150, %v143
    %v152 = vmul.f32 %v150, %v144
    %v153 = vmul.f32 %v150, %v146
    %v154 = vmul.f32 %v150, %v147
    %v155 = vadd.f32 %v151, 0.0
    %v156 = vadd.f32 %v152, 0.0
    %v157 = vadd.f32 %v153, 0.0
    %v158 = vadd.f32 %v154, 0.0
    %s159 = sld [smem:[#allocation4 + $0x1]]
    %v160 = vstv %s159
    %v161 = vmul.f32 %v160, %v143
    %v162 = vmul.f32 %v160, %v144
    %v163 = vmul.f32 %v160, %v146
    %v164 = vmul.f32 %v160, %v147
    %v165 = vadd.f32 %v161, 0.0
    %v166 = vadd.f32 %v162, 0.0
    %v167 = vadd.f32 %v163, 0.0
    %v168 = vadd.f32 %v164, 0.0
    %s169 = sld [smem:[#allocation4 + $0x2]]
    %v170 = vstv %s169
    %v171 = vmul.f32 %v170, %v143
    %v172 = vmul.f32 %v170, %v144
    %v173 = vmul.f32 %v170, %v146
    %v174 = vmul.f32 %v170, %v147
    %v175 = vadd.f32 %v171, 0.0
    %v176 = vadd.f32 %v172, 0.0
    %v177 = vadd.f32 %v173, 0.0
    %v178 = vadd.f32 %v174, 0.0
    %s179 = sld [smem:[#allocation4 + $0x3]]
    %v180 = vstv %s179
    %v181 = vmul.f32 %v180, %v143
    %v182 = vmul.f32 %v180, %v144
    %v183 = vmul.f32 %v180, %v146
    %v184 = vmul.f32 %v180, %v147
    %v185 = vadd.f32 %v181, 0.0
    %v186 = vadd.f32 %v182, 0.0
    %v187 = vadd.f32 %v183, 0.0
    %v188 = vadd.f32 %v184, 0.0
    %s189 = sld [smem:[#allocation4 + $0x4]]
    %v190 = vstv %s189
    %v191 = vmul.f32 %v190, %v143
    %v192 = vmul.f32 %v190, %v144
    %v193 = vmul.f32 %v190, %v146
    %v194 = vmul.f32 %v190, %v147
    %199 = vrot.lane.b32.xlu0 %v191, 124
    %v200 = vpop.permute.xlu0 %199
    %201 = vrot.lane.b32.xlu0 %v192, 124
    %v202 = vpop.permute.xlu0 %201
    %203 = vrot.lane.b32.xlu0 %v193, 124
    %v204 = vpop.permute.xlu0 %203
    %205 = vrot.lane.b32.xlu0 %v194, 124
    %v206 = vpop.permute.xlu0 %205
    %v211 = vadd.f32 %v155, %v200
    %v212 = vadd.f32 %v156, %v202
    %v213 = vadd.f32 %v157, %v204
    %v214 = vadd.f32 %v158, %v206
    %s215 = sld [smem:[#allocation4 + $0x5]]
    %v216 = vstv %s215
    %v217 = vmul.f32 %v216, %v143
    %v218 = vmul.f32 %v216, %v144
    %v219 = vmul.f32 %v216, %v146
    %v220 = vmul.f32 %v216, %v147
    %225 = vrot.lane.b32.xlu0 %v217, 124
    %v226 = vpop.permute.xlu0 %225
    %227 = vrot.lane.b32.xlu0 %v218, 124
    %v228 = vpop.permute.xlu0 %227
    %229 = vrot.lane.b32.xlu0 %v219, 124
    %v230 = vpop.permute.xlu0 %229
    %231 = vrot.lane.b32.xlu0 %v220, 124
    %v232 = vpop.permute.xlu0 %231
    %v237 = vadd.f32 %v165, %v226
    %v238 = vadd.f32 %v166, %v228
    %v239 = vadd.f32 %v167, %v230
    %v240 = vadd.f32 %v168, %v232
    %s241 = sld [smem:[#allocation4 + $0x6]]
    %v242 = vstv %s241
    %v243 = vmul.f32 %v242, %v143
    %v244 = vmul.f32 %v242, %v144
    %v245 = vmul.f32 %v242, %v146
    %v246 = vmul.f32 %v242, %v147
    %251 = vrot.lane.b32.xlu0 %v243, 124
    %v252 = vpop.permute.xlu0 %251
    %253 = vrot.lane.b32.xlu0 %v244, 124
    %v254 = vpop.permute.xlu0 %253
    %255 = vrot.lane.b32.xlu0 %v245, 124
    %v256 = vpop.permute.xlu0 %255
    %257 = vrot.lane.b32.xlu0 %v246, 124
    %v258 = vpop.permute.xlu0 %257
    %v263 = vadd.f32 %v175, %v252
    %v264 = vadd.f32 %v176, %v254
    %v265 = vadd.f32 %v177, %v256
    %v266 = vadd.f32 %v178, %v258
    %s267 = sld [smem:[#allocation4 + $0x7]]
    %v268 = vstv %s267
    %v269 = vmul.f32 %v268, %v143
    %v270 = vmul.f32 %v268, %v144
    %v271 = vmul.f32 %v268, %v145
    %v272 = vmul.f32 %v268, %v146
    %v273 = vmul.f32 %v268, %v147
    %v274 = vmul.f32 %v268, %v148
    %vm281 = vcmask 1046528
    %v282 = vrot.slane %v269, 1
    %v283 = vrot.slane %v270, 1
    %v284 = vsel %vm281, %v282, %v283
    %v285 = vrot.slane %v271, 1
    %v286 = vsel %vm281, %v283, %v285
    %v287 = vrot.slane %v272, 1
    %v288 = vrot.slane %v273, 1
    %v289 = vsel %vm281, %v287, %v288
    %v290 = vrot.slane %v274, 1
    %v291 = vsel %vm281, %v288, %v290
    %292 = vrot.lane.b32.xlu0 %v284, 3
    %v293 = vpop.permute.xlu0 %292
    %294 = vrot.lane.b32.xlu0 %v286, 3
    %v295 = vpop.permute.xlu0 %294
    %296 = vrot.lane.b32.xlu0 %v289, 3
    %v297 = vpop.permute.xlu0 %296
    %298 = vrot.lane.b32.xlu0 %v291, 3
    %v299 = vpop.permute.xlu0 %298
    %v304 = vadd.f32 %v185, %v293
    %v305 = vadd.f32 %v186, %v295
    %v306 = vadd.f32 %v187, %v297
    %v307 = vadd.f32 %v188, %v299
    %s308 = sld [smem:[#allocation4 + $0x8]]
    %v309 = vstv %s308
    %v310 = vmul.f32 %v309, %v143
    %v311 = vmul.f32 %v309, %v144
    %v312 = vmul.f32 %v309, %v145
    %v313 = vmul.f32 %v309, %v146
    %v314 = vmul.f32 %v309, %v147
    %v315 = vmul.f32 %v309, %v148
    %v322 = vrot.slane %v310, 1
    %v323 = vrot.slane %v311, 1
    %v324 = vsel %vm281, %v322, %v323
    %v325 = vrot.slane %v312, 1
    %v326 = vsel %vm281, %v323, %v325
    %v327 = vrot.slane %v313, 1
    %v328 = vrot.slane %v314, 1
    %v329 = vsel %vm281, %v327, %v328
    %v330 = vrot.slane %v315, 1
    %v331 = vsel %vm281, %v328, %v330
    %332 = vrot.lane.b32.xlu0 %v324, 127
    %v333 = vpop.permute.xlu0 %332
    %334 = vrot.lane.b32.xlu0 %v326, 127
    %v335 = vpop.permute.xlu0 %334
    %336 = vrot.lane.b32.xlu0 %v329, 127
    %v337 = vpop.permute.xlu0 %336
    %338 = vrot.lane.b32.xlu0 %v331, 127
    %v339 = vpop.permute.xlu0 %338
    %v344 = vadd.f32 %v211, %v333
    %v345 = vadd.f32 %v212, %v335
    %v346 = vadd.f32 %v213, %v337
    %v347 = vadd.f32 %v214, %v339
    %s348 = sld [smem:[#allocation4 + $0x9]]
    %v349 = vstv %s348
    %v350 = vmul.f32 %v349, %v143
    %v351 = vmul.f32 %v349, %v144
    %v352 = vmul.f32 %v349, %v145
    %v353 = vmul.f32 %v349, %v146
    %v354 = vmul.f32 %v349, %v147
    %v355 = vmul.f32 %v349, %v148
    %v362 = vrot.slane %v350, 1
    %v363 = vrot.slane %v351, 1
    %v364 = vsel %vm281, %v362, %v363
    %v365 = vrot.slane %v352, 1
    %v366 = vsel %vm281, %v363, %v365
    %v367 = vrot.slane %v353, 1
    %v368 = vrot.slane %v354, 1
    %v369 = vsel %vm281, %v367, %v368
    %v370 = vrot.slane %v355, 1
    %v371 = vsel %vm281, %v368, %v370
    %372 = vrot.lane.b32.xlu0 %v364, 127
    %v373 = vpop.permute.xlu0 %372
    %374 = vrot.lane.b32.xlu0 %v366, 127
    %v375 = vpop.permute.xlu0 %374
    %376 = vrot.lane.b32.xlu0 %v369, 127
    %v377 = vpop.permute.xlu0 %376
    %378 = vrot.lane.b32.xlu0 %v371, 127
    %v379 = vpop.permute.xlu0 %378
    %v384 = vadd.f32 %v237, %v373
    %v385 = vadd.f32 %v238, %v375
    %v386 = vadd.f32 %v239, %v377
    %v387 = vadd.f32 %v240, %v379
    %s388 = sld [smem:[#allocation4 + $0xa]]
    %v389 = vstv %s388
    %v390 = vmul.f32 %v389, %v143
    %v391 = vmul.f32 %v389, %v144
    %v392 = vmul.f32 %v389, %v145
    %v393 = vmul.f32 %v389, %v146
    %v394 = vmul.f32 %v389, %v147
    %v395 = vmul.f32 %v389, %v148
    %v402 = vrot.slane %v390, 1
    %v403 = vrot.slane %v391, 1
    %v404 = vsel %vm281, %v402, %v403
    %v405 = vrot.slane %v392, 1
    %v406 = vsel %vm281, %v403, %v405
    %v407 = vrot.slane %v393, 1
    %v408 = vrot.slane %v394, 1
    %v409 = vsel %vm281, %v407, %v408
    %v410 = vrot.slane %v395, 1
    %v411 = vsel %vm281, %v408, %v410
    %412 = vrot.lane.b32.xlu0 %v404, 127
    %v413 = vpop.permute.xlu0 %412
    %414 = vrot.lane.b32.xlu0 %v406, 127
    %v415 = vpop.permute.xlu0 %414
    %416 = vrot.lane.b32.xlu0 %v409, 127
    %v417 = vpop.permute.xlu0 %416
    %418 = vrot.lane.b32.xlu0 %v411, 127
    %v419 = vpop.permute.xlu0 %418
    %v424 = vadd.f32 %v263, %v413
    %v425 = vadd.f32 %v264, %v415
    %v426 = vadd.f32 %v265, %v417
    %v427 = vadd.f32 %v266, %v419
    %s428 = sld [smem:[#allocation4 + $0xb]]
    %v429 = vstv %s428
    %v430 = vmul.f32 %v429, %v143
    %v431 = vmul.f32 %v429, %v144
    %v432 = vmul.f32 %v429, %v145
    %v433 = vmul.f32 %v429, %v146
    %v434 = vmul.f32 %v429, %v147
    %v435 = vmul.f32 %v429, %v148
    %v442 = vrot.slane %v430, 1
    %v443 = vrot.slane %v431, 1
    %v444 = vsel %vm281, %v442, %v443
    %v445 = vrot.slane %v432, 1
    %v446 = vsel %vm281, %v443, %v445
    %v447 = vrot.slane %v433, 1
    %v448 = vrot.slane %v434, 1
    %v449 = vsel %vm281, %v447, %v448
    %v450 = vrot.slane %v435, 1
    %v451 = vsel %vm281, %v448, %v450
    %452 = vrot.lane.b32.xlu0 %v444, 127
    %v453 = vpop.permute.xlu0 %452
    %454 = vrot.lane.b32.xlu0 %v446, 127
    %v455 = vpop.permute.xlu0 %454
    %456 = vrot.lane.b32.xlu0 %v449, 127
    %v457 = vpop.permute.xlu0 %456
    %458 = vrot.lane.b32.xlu0 %v451, 127
    %v459 = vpop.permute.xlu0 %458
    %v464 = vadd.f32 %v304, %v453
    %v465 = vadd.f32 %v305, %v455
    %v466 = vadd.f32 %v306, %v457
    %v467 = vadd.f32 %v307, %v459
    %s468 = sld [smem:[#allocation4 + $0xc]]
    %v469 = vstv %s468
    %v470 = vmul.f32 %v469, %v143
    %v471 = vmul.f32 %v469, %v144
    %v472 = vmul.f32 %v469, %v145
    %v473 = vmul.f32 %v469, %v146
    %v474 = vmul.f32 %v469, %v147
    %v475 = vmul.f32 %v469, %v148
    %v482 = vrot.slane %v470, 1
    %v483 = vrot.slane %v471, 1
    %v484 = vsel %vm281, %v482, %v483
    %v485 = vrot.slane %v472, 1
    %v486 = vsel %vm281, %v483, %v485
    %v487 = vrot.slane %v473, 1
    %v488 = vrot.slane %v474, 1
    %v489 = vsel %vm281, %v487, %v488
    %v490 = vrot.slane %v475, 1
    %v491 = vsel %vm281, %v488, %v490
    %492 = vrot.lane.b32.xlu0 %v484, 123
    %v493 = vpop.permute.xlu0 %492
    %494 = vrot.lane.b32.xlu0 %v486, 123
    %v495 = vpop.permute.xlu0 %494
    %496 = vrot.lane.b32.xlu0 %v489, 123
    %v497 = vpop.permute.xlu0 %496
    %498 = vrot.lane.b32.xlu0 %v491, 123
    %v499 = vpop.permute.xlu0 %498
    %v504 = vadd.f32 %v344, %v493
    %v505 = vadd.f32 %v345, %v495
    %v506 = vadd.f32 %v346, %v497
    %v507 = vadd.f32 %v347, %v499
    %s508 = sld [smem:[#allocation4 + $0xd]]
    %v509 = vstv %s508
    %v510 = vmul.f32 %v509, %v143
    %v511 = vmul.f32 %v509, %v144
    %v512 = vmul.f32 %v509, %v145
    %v513 = vmul.f32 %v509, %v146
    %v514 = vmul.f32 %v509, %v147
    %v515 = vmul.f32 %v509, %v148
    %v522 = vrot.slane %v510, 1
    %v523 = vrot.slane %v511, 1
    %v524 = vsel %vm281, %v522, %v523
    %v525 = vrot.slane %v512, 1
    %v526 = vsel %vm281, %v523, %v525
    %v527 = vrot.slane %v513, 1
    %v528 = vrot.slane %v514, 1
    %v529 = vsel %vm281, %v527, %v528
    %v530 = vrot.slane %v515, 1
    %v531 = vsel %vm281, %v528, %v530
    %532 = vrot.lane.b32.xlu0 %v524, 123
    %v533 = vpop.permute.xlu0 %532
    %534 = vrot.lane.b32.xlu0 %v526, 123
    %v535 = vpop.permute.xlu0 %534
    %536 = vrot.lane.b32.xlu0 %v529, 123
    %v537 = vpop.permute.xlu0 %536
    %538 = vrot.lane.b32.xlu0 %v531, 123
    %v539 = vpop.permute.xlu0 %538
    %v544 = vadd.f32 %v384, %v533
    %v545 = vadd.f32 %v385, %v535
    %v546 = vadd.f32 %v386, %v537
    %v547 = vadd.f32 %v387, %v539
    %s548 = sld [smem:[#allocation4 + $0xe]]
    %v549 = vstv %s548
    %v550 = vmul.f32 %v549, %v143
    %v551 = vmul.f32 %v549, %v144
    %v552 = vmul.f32 %v549, %v145
    %v553 = vmul.f32 %v549, %v146
    %v554 = vmul.f32 %v549, %v147
    %v555 = vmul.f32 %v549, %v148
    %vm562 = vcmask 1045504
    %v563 = vrot.slane %v550, 2
    %v564 = vrot.slane %v551, 2
    %v565 = vsel %vm562, %v563, %v564
    %v566 = vrot.slane %v552, 2
    %v567 = vsel %vm562, %v564, %v566
    %v568 = vrot.slane %v553, 2
    %v569 = vrot.slane %v554, 2
    %v570 = vsel %vm562, %v568, %v569
    %v571 = vrot.slane %v555, 2
    %v572 = vsel %vm562, %v569, %v571
    %573 = vrot.lane.b32.xlu0 %v565, 2
    %v574 = vpop.permute.xlu0 %573
    %575 = vrot.lane.b32.xlu0 %v567, 2
    %v576 = vpop.permute.xlu0 %575
    %577 = vrot.lane.b32.xlu0 %v570, 2
    %v578 = vpop.permute.xlu0 %577
    %579 = vrot.lane.b32.xlu0 %v572, 2
    %v580 = vpop.permute.xlu0 %579
    %v585 = vadd.f32 %v424, %v574
    %v586 = vadd.f32 %v425, %v576
    %v587 = vadd.f32 %v426, %v578
    %v588 = vadd.f32 %v427, %v580
    %s589 = sld [smem:[#allocation4 + $0xf]]
    %v590 = vstv %s589
    %v591 = vmul.f32 %v590, %v143
    %v592 = vmul.f32 %v590, %v144
    %v593 = vmul.f32 %v590, %v145
    %v594 = vmul.f32 %v590, %v146
    %v595 = vmul.f32 %v590, %v147
    %v596 = vmul.f32 %v590, %v148
    %v603 = vrot.slane %v591, 2
    %v604 = vrot.slane %v592, 2
    %v605 = vsel %vm562, %v603, %v604
    %v606 = vrot.slane %v593, 2
    %v607 = vsel %vm562, %v604, %v606
    %v608 = vrot.slane %v594, 2
    %v609 = vrot.slane %v595, 2
    %v610 = vsel %vm562, %v608, %v609
    %v611 = vrot.slane %v596, 2
    %v612 = vsel %vm562, %v609, %v611
    %613 = vrot.lane.b32.xlu0 %v605, 2
    %v614 = vpop.permute.xlu0 %613
    %615 = vrot.lane.b32.xlu0 %v607, 2
    %v616 = vpop.permute.xlu0 %615
    %617 = vrot.lane.b32.xlu0 %v610, 2
    %v618 = vpop.permute.xlu0 %617
    %619 = vrot.lane.b32.xlu0 %v612, 2
    %v620 = vpop.permute.xlu0 %619
    %v625 = vadd.f32 %v464, %v614
    %v626 = vadd.f32 %v465, %v616
    %v627 = vadd.f32 %v466, %v618
    %v628 = vadd.f32 %v467, %v620
    %s629 = sld [smem:[#allocation4 + $0x10]]
    %v630 = vstv %s629
    %v631 = vmul.f32 %v630, %v143
    %v632 = vmul.f32 %v630, %v144
    %v633 = vmul.f32 %v630, %v145
    %v634 = vmul.f32 %v630, %v146
    %v635 = vmul.f32 %v630, %v147
    %v636 = vmul.f32 %v630, %v148
    %v643 = vrot.slane %v631, 2
    %v644 = vrot.slane %v632, 2
    %v645 = vsel %vm562, %v643, %v644
    %v646 = vrot.slane %v633, 2
    %v647 = vsel %vm562, %v644, %v646
    %v648 = vrot.slane %v634, 2
    %v649 = vrot.slane %v635, 2
    %v650 = vsel %vm562, %v648, %v649
    %v651 = vrot.slane %v636, 2
    %v652 = vsel %vm562, %v649, %v651
    %653 = vrot.lane.b32.xlu0 %v645, 126
    %v654 = vpop.permute.xlu0 %653
    %655 = vrot.lane.b32.xlu0 %v647, 126
    %v656 = vpop.permute.xlu0 %655
    %657 = vrot.lane.b32.xlu0 %v650, 126
    %v658 = vpop.permute.xlu0 %657
    %659 = vrot.lane.b32.xlu0 %v652, 126
    %v660 = vpop.permute.xlu0 %659
    %v665 = vadd.f32 %v504, %v654
    %v666 = vadd.f32 %v505, %v656
    %v667 = vadd.f32 %v506, %v658
    %v668 = vadd.f32 %v507, %v660
    %s669 = sld [smem:[#allocation4 + $0x11]]
    %v670 = vstv %s669
    %v671 = vmul.f32 %v670, %v143
    %v672 = vmul.f32 %v670, %v144
    %v673 = vmul.f32 %v670, %v145
    %v674 = vmul.f32 %v670, %v146
    %v675 = vmul.f32 %v670, %v147
    %v676 = vmul.f32 %v670, %v148
    %v683 = vrot.slane %v671, 2
    %v684 = vrot.slane %v672, 2
    %v685 = vsel %vm562, %v683, %v684
    %v686 = vrot.slane %v673, 2
    %v687 = vsel %vm562, %v684, %v686
    %v688 = vrot.slane %v674, 2
    %v689 = vrot.slane %v675, 2
    %v690 = vsel %vm562, %v688, %v689
    %v691 = vrot.slane %v676, 2
    %v692 = vsel %vm562, %v689, %v691
    %693 = vrot.lane.b32.xlu0 %v685, 126
    %v694 = vpop.permute.xlu0 %693
    %695 = vrot.lane.b32.xlu0 %v687, 126
    %v696 = vpop.permute.xlu0 %695
    %697 = vrot.lane.b32.xlu0 %v690, 126
    %v698 = vpop.permute.xlu0 %697
    %699 = vrot.lane.b32.xlu0 %v692, 126
    %v700 = vpop.permute.xlu0 %699
    %v705 = vadd.f32 %v544, %v694
    %v706 = vadd.f32 %v545, %v696
    %v707 = vadd.f32 %v546, %v698
    %v708 = vadd.f32 %v547, %v700
    %s709 = sld [smem:[#allocation4 + $0x12]]
    %v710 = vstv %s709
    %v711 = vmul.f32 %v710, %v143
    %v712 = vmul.f32 %v710, %v144
    %v713 = vmul.f32 %v710, %v145
    %v714 = vmul.f32 %v710, %v146
    %v715 = vmul.f32 %v710, %v147
    %v716 = vmul.f32 %v710, %v148
    %v723 = vrot.slane %v711, 2
    %v724 = vrot.slane %v712, 2
    %v725 = vsel %vm562, %v723, %v724
    %v726 = vrot.slane %v713, 2
    %v727 = vsel %vm562, %v724, %v726
    %v728 = vrot.slane %v714, 2
    %v729 = vrot.slane %v715, 2
    %v730 = vsel %vm562, %v728, %v729
    %v731 = vrot.slane %v716, 2
    %v732 = vsel %vm562, %v729, %v731
    %733 = vrot.lane.b32.xlu0 %v725, 126
    %v734 = vpop.permute.xlu0 %733
    %735 = vrot.lane.b32.xlu0 %v727, 126
    %v736 = vpop.permute.xlu0 %735
    %737 = vrot.lane.b32.xlu0 %v730, 126
    %v738 = vpop.permute.xlu0 %737
    %739 = vrot.lane.b32.xlu0 %v732, 126
    %v740 = vpop.permute.xlu0 %739
    %v745 = vadd.f32 %v585, %v734
    %v746 = vadd.f32 %v586, %v736
    %v747 = vadd.f32 %v587, %v738
    %v748 = vadd.f32 %v588, %v740
    %s749 = sld [smem:[#allocation4 + $0x13]]
    %v750 = vstv %s749
    %v751 = vmul.f32 %v750, %v143
    %v752 = vmul.f32 %v750, %v144
    %v753 = vmul.f32 %v750, %v145
    %v754 = vmul.f32 %v750, %v146
    %v755 = vmul.f32 %v750, %v147
    %v756 = vmul.f32 %v750, %v148
    %v763 = vrot.slane %v751, 2
    %v764 = vrot.slane %v752, 2
    %v765 = vsel %vm562, %v763, %v764
    %v766 = vrot.slane %v753, 2
    %v767 = vsel %vm562, %v764, %v766
    %v768 = vrot.slane %v754, 2
    %v769 = vrot.slane %v755, 2
    %v770 = vsel %vm562, %v768, %v769
    %v771 = vrot.slane %v756, 2
    %v772 = vsel %vm562, %v769, %v771
    %773 = vrot.lane.b32.xlu0 %v765, 126
    %v774 = vpop.permute.xlu0 %773
    %775 = vrot.lane.b32.xlu0 %v767, 126
    %v776 = vpop.permute.xlu0 %775
    %777 = vrot.lane.b32.xlu0 %v770, 126
    %v778 = vpop.permute.xlu0 %777
    %779 = vrot.lane.b32.xlu0 %v772, 126
    %v780 = vpop.permute.xlu0 %779
    %v785 = vadd.f32 %v625, %v774
    %v786 = vadd.f32 %v626, %v776
    %v787 = vadd.f32 %v627, %v778
    %v788 = vadd.f32 %v628, %v780
    %s789 = sld [smem:[#allocation4 + $0x14]]
    %v790 = vstv %s789
    %v791 = vmul.f32 %v790, %v143
    %v792 = vmul.f32 %v790, %v144
    %v793 = vmul.f32 %v790, %v145
    %v794 = vmul.f32 %v790, %v146
    %v795 = vmul.f32 %v790, %v147
    %v796 = vmul.f32 %v790, %v148
    %v803 = vrot.slane %v791, 2
    %v804 = vrot.slane %v792, 2
    %v805 = vsel %vm562, %v803, %v804
    %v806 = vrot.slane %v793, 2
    %v807 = vsel %vm562, %v804, %v806
    %v808 = vrot.slane %v794, 2
    %v809 = vrot.slane %v795, 2
    %v810 = vsel %vm562, %v808, %v809
    %v811 = vrot.slane %v796, 2
    %v812 = vsel %vm562, %v809, %v811
    %813 = vrot.lane.b32.xlu0 %v805, 122
    %v814 = vpop.permute.xlu0 %813
    %815 = vrot.lane.b32.xlu0 %v807, 122
    %v816 = vpop.permute.xlu0 %815
    %817 = vrot.lane.b32.xlu0 %v810, 122
    %v818 = vpop.permute.xlu0 %817
    %819 = vrot.lane.b32.xlu0 %v812, 122
    %v820 = vpop.permute.xlu0 %819
    %v825 = vadd.f32 %v665, %v814
    %v826 = vadd.f32 %v666, %v816
    %v827 = vadd.f32 %v667, %v818
    %v828 = vadd.f32 %v668, %v820
    %s829 = sld [smem:[#allocation4 + $0x15]]
    %v830 = vstv %s829
    %v831 = vmul.f32 %v830, %v143
    %v832 = vmul.f32 %v830, %v144
    %v833 = vmul.f32 %v830, %v145
    %v834 = vmul.f32 %v830, %v146
    %v835 = vmul.f32 %v830, %v147
    %v836 = vmul.f32 %v830, %v148
    %vm843 = vcmask 1044480
    %v844 = vrot.slane %v831, 3
    %v845 = vrot.slane %v832, 3
    %v846 = vsel %vm843, %v844, %v845
    %v847 = vrot.slane %v833, 3
    %v848 = vsel %vm843, %v845, %v847
    %v849 = vrot.slane %v834, 3
    %v850 = vrot.slane %v835, 3
    %v851 = vsel %vm843, %v849, %v850
    %v852 = vrot.slane %v836, 3
    %v853 = vsel %vm843, %v850, %v852
    %854 = vrot.lane.b32.xlu0 %v846, 1
    %v855 = vpop.permute.xlu0 %854
    %856 = vrot.lane.b32.xlu0 %v848, 1
    %v857 = vpop.permute.xlu0 %856
    %858 = vrot.lane.b32.xlu0 %v851, 1
    %v859 = vpop.permute.xlu0 %858
    %860 = vrot.lane.b32.xlu0 %v853, 1
    %v861 = vpop.permute.xlu0 %860
    %v866 = vadd.f32 %v705, %v855
    %v867 = vadd.f32 %v706, %v857
    %v868 = vadd.f32 %v707, %v859
    %v869 = vadd.f32 %v708, %v861
    %s870 = sld [smem:[#allocation4 + $0x16]]
    %v871 = vstv %s870
    %v872 = vmul.f32 %v871, %v143
    %v873 = vmul.f32 %v871, %v144
    %v874 = vmul.f32 %v871, %v145
    %v875 = vmul.f32 %v871, %v146
    %v876 = vmul.f32 %v871, %v147
    %v877 = vmul.f32 %v871, %v148
    %v884 = vrot.slane %v872, 3
    %v885 = vrot.slane %v873, 3
    %v886 = vsel %vm843, %v884, %v885
    %v887 = vrot.slane %v874, 3
    %v888 = vsel %vm843, %v885, %v887
    %v889 = vrot.slane %v875, 3
    %v890 = vrot.slane %v876, 3
    %v891 = vsel %vm843, %v889, %v890
    %v892 = vrot.slane %v877, 3
    %v893 = vsel %vm843, %v890, %v892
    %894 = vrot.lane.b32.xlu0 %v886, 1
    %v895 = vpop.permute.xlu0 %894
    %896 = vrot.lane.b32.xlu0 %v888, 1
    %v897 = vpop.permute.xlu0 %896
    %898 = vrot.lane.b32.xlu0 %v891, 1
    %v899 = vpop.permute.xlu0 %898
    %900 = vrot.lane.b32.xlu0 %v893, 1
    %v901 = vpop.permute.xlu0 %900
    %v906 = vadd.f32 %v745, %v895
    %v907 = vadd.f32 %v746, %v897
    %v908 = vadd.f32 %v747, %v899
    %v909 = vadd.f32 %v748, %v901
    %s910 = sld [smem:[#allocation4 + $0x17]]
    %v911 = vstv %s910
    %v912 = vmul.f32 %v911, %v143
    %v913 = vmul.f32 %v911, %v144
    %v914 = vmul.f32 %v911, %v145
    %v915 = vmul.f32 %v911, %v146
    %v916 = vmul.f32 %v911, %v147
    %v917 = vmul.f32 %v911, %v148
    %v924 = vrot.slane %v912, 3
    %v925 = vrot.slane %v913, 3
    %v926 = vsel %vm843, %v924, %v925
    %v927 = vrot.slane %v914, 3
    %v928 = vsel %vm843, %v925, %v927
    %v929 = vrot.slane %v915, 3
    %v930 = vrot.slane %v916, 3
    %v931 = vsel %vm843, %v929, %v930
    %v932 = vrot.slane %v917, 3
    %v933 = vsel %vm843, %v930, %v932
    %934 = vrot.lane.b32.xlu0 %v926, 1
    %v935 = vpop.permute.xlu0 %934
    %936 = vrot.lane.b32.xlu0 %v928, 1
    %v937 = vpop.permute.xlu0 %936
    %938 = vrot.lane.b32.xlu0 %v931, 1
    %v939 = vpop.permute.xlu0 %938
    %940 = vrot.lane.b32.xlu0 %v933, 1
    %v941 = vpop.permute.xlu0 %940
    %v946 = vadd.f32 %v785, %v935
    %v947 = vadd.f32 %v786, %v937
    %v948 = vadd.f32 %v787, %v939
    %v949 = vadd.f32 %v788, %v941
    %s950 = sld [smem:[#allocation4 + $0x18]]
    %v951 = vstv %s950
    %v952 = vmul.f32 %v951, %v143
    %v953 = vmul.f32 %v951, %v144
    %v954 = vmul.f32 %v951, %v145
    %v955 = vmul.f32 %v951, %v146
    %v956 = vmul.f32 %v951, %v147
    %v957 = vmul.f32 %v951, %v148
    %v964 = vrot.slane %v952, 3
    %v965 = vrot.slane %v953, 3
    %v966 = vsel %vm843, %v964, %v965
    %v967 = vrot.slane %v954, 3
    %v968 = vsel %vm843, %v965, %v967
    %v969 = vrot.slane %v955, 3
    %v970 = vrot.slane %v956, 3
    %v971 = vsel %vm843, %v969, %v970
    %v972 = vrot.slane %v957, 3
    %v973 = vsel %vm843, %v970, %v972
    %974 = vrot.lane.b32.xlu0 %v966, 125
    %v975 = vpop.permute.xlu0 %974
    %976 = vrot.lane.b32.xlu0 %v968, 125
    %v977 = vpop.permute.xlu0 %976
    %978 = vrot.lane.b32.xlu0 %v971, 125
    %v979 = vpop.permute.xlu0 %978
    %980 = vrot.lane.b32.xlu0 %v973, 125
    %v981 = vpop.permute.xlu0 %980
    %v986 = vadd.f32 %v825, %v975
    %v987 = vadd.f32 %v826, %v977
    %v988 = vadd.f32 %v827, %v979
    %v989 = vadd.f32 %v828, %v981
    %s990 = sld [smem:[#allocation4 + $0x19]]
    %v991 = vstv %s990
    %v992 = vmul.f32 %v991, %v143
    %v993 = vmul.f32 %v991, %v144
    %v994 = vmul.f32 %v991, %v145
    %v995 = vmul.f32 %v991, %v146
    %v996 = vmul.f32 %v991, %v147
    %v997 = vmul.f32 %v991, %v148
    %v1004 = vrot.slane %v992, 3
    %v1005 = vrot.slane %v993, 3
    %v1006 = vsel %vm843, %v1004, %v1005
    %v1007 = vrot.slane %v994, 3
    %v1008 = vsel %vm843, %v1005, %v1007
    %v1009 = vrot.slane %v995, 3
    %v1010 = vrot.slane %v996, 3
    %v1011 = vsel %vm843, %v1009, %v1010
    %v1012 = vrot.slane %v997, 3
    %v1013 = vsel %vm843, %v1010, %v1012
    %1014 = vrot.lane.b32.xlu0 %v1006, 125
    %v1015 = vpop.permute.xlu0 %1014
    %1016 = vrot.lane.b32.xlu0 %v1008, 125
    %v1017 = vpop.permute.xlu0 %1016
    %1018 = vrot.lane.b32.xlu0 %v1011, 125
    %v1019 = vpop.permute.xlu0 %1018
    %1020 = vrot.lane.b32.xlu0 %v1013, 125
    %v1021 = vpop.permute.xlu0 %1020
    %v1026 = vadd.f32 %v866, %v1015
    %v1027 = vadd.f32 %v867, %v1017
    %v1028 = vadd.f32 %v868, %v1019
    %v1029 = vadd.f32 %v869, %v1021
    %s1030 = sld [smem:[#allocation4 + $0x1a]]
    %v1031 = vstv %s1030
    %v1032 = vmul.f32 %v1031, %v143
    %v1033 = vmul.f32 %v1031, %v144
    %v1034 = vmul.f32 %v1031, %v145
    %v1035 = vmul.f32 %v1031, %v146
    %v1036 = vmul.f32 %v1031, %v147
    %v1037 = vmul.f32 %v1031, %v148
    %v1044 = vrot.slane %v1032, 3
    %v1045 = vrot.slane %v1033, 3
    %v1046 = vsel %vm843, %v1044, %v1045
    %v1047 = vrot.slane %v1034, 3
    %v1048 = vsel %vm843, %v1045, %v1047
    %v1049 = vrot.slane %v1035, 3
    %v1050 = vrot.slane %v1036, 3
    %v1051 = vsel %vm843, %v1049, %v1050
    %v1052 = vrot.slane %v1037, 3
    %v1053 = vsel %vm843, %v1050, %v1052
    %1054 = vrot.lane.b32.xlu0 %v1046, 125
    %v1055 = vpop.permute.xlu0 %1054
    %1056 = vrot.lane.b32.xlu0 %v1048, 125
    %v1057 = vpop.permute.xlu0 %1056
    %1058 = vrot.lane.b32.xlu0 %v1051, 125
    %v1059 = vpop.permute.xlu0 %1058
    %1060 = vrot.lane.b32.xlu0 %v1053, 125
    %v1061 = vpop.permute.xlu0 %1060
    %v1066 = vadd.f32 %v906, %v1055
    %v1067 = vadd.f32 %v907, %v1057
    %v1068 = vadd.f32 %v908, %v1059
    %v1069 = vadd.f32 %v909, %v1061
    %s1070 = sld [smem:[#allocation4 + $0x1b]]
    %v1071 = vstv %s1070
    %v1072 = vmul.f32 %v1071, %v143
    %v1073 = vmul.f32 %v1071, %v144
    %v1074 = vmul.f32 %v1071, %v145
    %v1075 = vmul.f32 %v1071, %v146
    %v1076 = vmul.f32 %v1071, %v147
    %v1077 = vmul.f32 %v1071, %v148
    %v1084 = vrot.slane %v1072, 3
    %v1085 = vrot.slane %v1073, 3
    %v1086 = vsel %vm843, %v1084, %v1085
    %v1087 = vrot.slane %v1074, 3
    %v1088 = vsel %vm843, %v1085, %v1087
    %v1089 = vrot.slane %v1075, 3
    %v1090 = vrot.slane %v1076, 3
    %v1091 = vsel %vm843, %v1089, %v1090
    %v1092 = vrot.slane %v1077, 3
    %v1093 = vsel %vm843, %v1090, %v1092
    %1094 = vrot.lane.b32.xlu0 %v1086, 125
    %v1095 = vpop.permute.xlu0 %1094
    %1096 = vrot.lane.b32.xlu0 %v1088, 125
    %v1097 = vpop.permute.xlu0 %1096
    %1098 = vrot.lane.b32.xlu0 %v1091, 125
    %v1099 = vpop.permute.xlu0 %1098
    %1100 = vrot.lane.b32.xlu0 %v1093, 125
    %v1101 = vpop.permute.xlu0 %1100
    %v1106 = vadd.f32 %v946, %v1095
    %v1107 = vadd.f32 %v947, %v1097
    %v1108 = vadd.f32 %v948, %v1099
    %v1109 = vadd.f32 %v949, %v1101
    %s1110 = sld [smem:[#allocation4 + $0x1c]]
    %v1111 = vstv %s1110
    %v1112 = vmul.f32 %v1111, %v143
    %v1113 = vmul.f32 %v1111, %v144
    %v1114 = vmul.f32 %v1111, %v145
    %v1115 = vmul.f32 %v1111, %v146
    %v1116 = vmul.f32 %v1111, %v147
    %v1117 = vmul.f32 %v1111, %v148
    %vm1124 = vcmask 1043456
    %v1125 = vrot.slane %v1112, 4
    %v1126 = vrot.slane %v1113, 4
    %v1127 = vsel %vm1124, %v1125, %v1126
    %v1128 = vrot.slane %v1114, 4
    %v1129 = vsel %vm1124, %v1126, %v1128
    %v1130 = vrot.slane %v1115, 4
    %v1131 = vrot.slane %v1116, 4
    %v1132 = vsel %vm1124, %v1130, %v1131
    %v1133 = vrot.slane %v1117, 4
    %v1134 = vsel %vm1124, %v1131, %v1133
    %v1139 = vadd.f32 %v986, %v1127
    %v1140 = vadd.f32 %v987, %v1129
    %v1141 = vadd.f32 %v988, %v1132
    %v1142 = vadd.f32 %v989, %v1134
    %s1143 = sld [smem:[#allocation4 + $0x1d]]
    %v1144 = vstv %s1143
    %v1145 = vmul.f32 %v1144, %v143
    %v1146 = vmul.f32 %v1144, %v144
    %v1147 = vmul.f32 %v1144, %v145
    %v1148 = vmul.f32 %v1144, %v146
    %v1149 = vmul.f32 %v1144, %v147
    %v1150 = vmul.f32 %v1144, %v148
    %v1157 = vrot.slane %v1145, 4
    %v1158 = vrot.slane %v1146, 4
    %v1159 = vsel %vm1124, %v1157, %v1158
    %v1160 = vrot.slane %v1147, 4
    %v1161 = vsel %vm1124, %v1158, %v1160
    %v1162 = vrot.slane %v1148, 4
    %v1163 = vrot.slane %v1149, 4
    %v1164 = vsel %vm1124, %v1162, %v1163
    %v1165 = vrot.slane %v1150, 4
    %v1166 = vsel %vm1124, %v1163, %v1165
    %v1171 = vadd.f32 %v1026, %v1159
    %v1172 = vadd.f32 %v1027, %v1161
    %v1173 = vadd.f32 %v1028, %v1164
    %v1174 = vadd.f32 %v1029, %v1166
    %s1175 = sld [smem:[#allocation4 + $0x1e]]
    %v1176 = vstv %s1175
    %v1177 = vmul.f32 %v1176, %v143
    %v1178 = vmul.f32 %v1176, %v144
    %v1179 = vmul.f32 %v1176, %v145
    %v1180 = vmul.f32 %v1176, %v146
    %v1181 = vmul.f32 %v1176, %v147
    %v1182 = vmul.f32 %v1176, %v148
    %v1189 = vrot.slane %v1177, 4
    %v1190 = vrot.slane %v1178, 4
    %v1191 = vsel %vm1124, %v1189, %v1190
    %v1192 = vrot.slane %v1179, 4
    %v1193 = vsel %vm1124, %v1190, %v1192
    %v1194 = vrot.slane %v1180, 4
    %v1195 = vrot.slane %v1181, 4
    %v1196 = vsel %vm1124, %v1194, %v1195
    %v1197 = vrot.slane %v1182, 4
    %v1198 = vsel %vm1124, %v1195, %v1197
    %v1203 = vadd.f32 %v1066, %v1191
    %v1204 = vadd.f32 %v1067, %v1193
    %v1205 = vadd.f32 %v1068, %v1196
    %v1206 = vadd.f32 %v1069, %v1198
    %s1207 = sld [smem:[#allocation4 + $0x1f]]
    %v1208 = vstv %s1207
    %v1209 = vmul.f32 %v1208, %v143
    %v1210 = vmul.f32 %v1208, %v144
    %v1211 = vmul.f32 %v1208, %v145
    %v1212 = vmul.f32 %v1208, %v146
    %v1213 = vmul.f32 %v1208, %v147
    %v1214 = vmul.f32 %v1208, %v148
    %v1221 = vrot.slane %v1209, 4
    %v1222 = vrot.slane %v1210, 4
    %v1223 = vsel %vm1124, %v1221, %v1222
    %v1224 = vrot.slane %v1211, 4
    %v1225 = vsel %vm1124, %v1222, %v1224
    %v1226 = vrot.slane %v1212, 4
    %v1227 = vrot.slane %v1213, 4
    %v1228 = vsel %vm1124, %v1226, %v1227
    %v1229 = vrot.slane %v1214, 4
    %v1230 = vsel %vm1124, %v1227, %v1229
    %v1235 = vadd.f32 %v1106, %v1223
    %v1236 = vadd.f32 %v1107, %v1225
    %v1237 = vadd.f32 %v1108, %v1228
    %v1238 = vadd.f32 %v1109, %v1230
    %s1239 = sld [smem:[#allocation4 + $0x20]]
    %v1240 = vstv %s1239
    %v1241 = vmul.f32 %v1240, %v143
    %v1242 = vmul.f32 %v1240, %v144
    %v1243 = vmul.f32 %v1240, %v145
    %v1244 = vmul.f32 %v1240, %v146
    %v1245 = vmul.f32 %v1240, %v147
    %v1246 = vmul.f32 %v1240, %v148
    %v1253 = vrot.slane %v1241, 4
    %v1254 = vrot.slane %v1242, 4
    %v1255 = vsel %vm1124, %v1253, %v1254
    %v1256 = vrot.slane %v1243, 4
    %v1257 = vsel %vm1124, %v1254, %v1256
    %v1258 = vrot.slane %v1244, 4
    %v1259 = vrot.slane %v1245, 4
    %v1260 = vsel %vm1124, %v1258, %v1259
    %v1261 = vrot.slane %v1246, 4
    %v1262 = vsel %vm1124, %v1259, %v1261
    %1263 = vrot.lane.b32.xlu0 %v1255, 124
    %v1264 = vpop.permute.xlu0 %1263
    %1265 = vrot.lane.b32.xlu0 %v1257, 124
    %v1266 = vpop.permute.xlu0 %1265
    %1267 = vrot.lane.b32.xlu0 %v1260, 124
    %v1268 = vpop.permute.xlu0 %1267
    %1269 = vrot.lane.b32.xlu0 %v1262, 124
    %v1270 = vpop.permute.xlu0 %1269
    %v1275 = vadd.f32 %v1139, %v1264
    %v1276 = vadd.f32 %v1140, %v1266
    %v1277 = vadd.f32 %v1141, %v1268
    %v1278 = vadd.f32 %v1142, %v1270
    %s1279 = sld [smem:[#allocation4 + $0x21]]
    %v1280 = vstv %s1279
    %v1281 = vmul.f32 %v1280, %v143
    %v1282 = vmul.f32 %v1280, %v144
    %v1283 = vmul.f32 %v1280, %v145
    %v1284 = vmul.f32 %v1280, %v146
    %v1285 = vmul.f32 %v1280, %v147
    %v1286 = vmul.f32 %v1280, %v148
    %v1293 = vrot.slane %v1281, 4
    %v1294 = vrot.slane %v1282, 4
    %v1295 = vsel %vm1124, %v1293, %v1294
    %v1296 = vrot.slane %v1283, 4
    %v1297 = vsel %vm1124, %v1294, %v1296
    %v1298 = vrot.slane %v1284, 4
    %v1299 = vrot.slane %v1285, 4
    %v1300 = vsel %vm1124, %v1298, %v1299
    %v1301 = vrot.slane %v1286, 4
    %v1302 = vsel %vm1124, %v1299, %v1301
    %1303 = vrot.lane.b32.xlu0 %v1295, 124
    %v1304 = vpop.permute.xlu0 %1303
    %1305 = vrot.lane.b32.xlu0 %v1297, 124
    %v1306 = vpop.permute.xlu0 %1305
    %1307 = vrot.lane.b32.xlu0 %v1300, 124
    %v1308 = vpop.permute.xlu0 %1307
    %1309 = vrot.lane.b32.xlu0 %v1302, 124
    %v1310 = vpop.permute.xlu0 %1309
    %v1315 = vadd.f32 %v1171, %v1304
    %v1316 = vadd.f32 %v1172, %v1306
    %v1317 = vadd.f32 %v1173, %v1308
    %v1318 = vadd.f32 %v1174, %v1310
    %s1319 = sld [smem:[#allocation4 + $0x22]]
    %v1320 = vstv %s1319
    %v1321 = vmul.f32 %v1320, %v143
    %v1322 = vmul.f32 %v1320, %v144
    %v1323 = vmul.f32 %v1320, %v145
    %v1324 = vmul.f32 %v1320, %v146
    %v1325 = vmul.f32 %v1320, %v147
    %v1326 = vmul.f32 %v1320, %v148
    %v1333 = vrot.slane %v1321, 4
    %v1334 = vrot.slane %v1322, 4
    %v1335 = vsel %vm1124, %v1333, %v1334
    %v1336 = vrot.slane %v1323, 4
    %v1337 = vsel %vm1124, %v1334, %v1336
    %v1338 = vrot.slane %v1324, 4
    %v1339 = vrot.slane %v1325, 4
    %v1340 = vsel %vm1124, %v1338, %v1339
    %v1341 = vrot.slane %v1326, 4
    %v1342 = vsel %vm1124, %v1339, %v1341
    %1343 = vrot.lane.b32.xlu0 %v1335, 124
    %v1344 = vpop.permute.xlu0 %1343
    %1345 = vrot.lane.b32.xlu0 %v1337, 124
    %v1346 = vpop.permute.xlu0 %1345
    %1347 = vrot.lane.b32.xlu0 %v1340, 124
    %v1348 = vpop.permute.xlu0 %1347
    %1349 = vrot.lane.b32.xlu0 %v1342, 124
    %v1350 = vpop.permute.xlu0 %1349
    %v1355 = vadd.f32 %v1203, %v1344
    %v1356 = vadd.f32 %v1204, %v1346
    %v1357 = vadd.f32 %v1205, %v1348
    %v1358 = vadd.f32 %v1206, %v1350
    %s1359 = sld [smem:[#allocation4 + $0x23]]
    %v1360 = vstv %s1359
    %v1361 = vmul.f32 %v1360, %v143
    %v1362 = vmul.f32 %v1360, %v144
    %v1363 = vmul.f32 %v1360, %v145
    %v1364 = vmul.f32 %v1360, %v146
    %v1365 = vmul.f32 %v1360, %v147
    %v1366 = vmul.f32 %v1360, %v148
    %vm1373 = vcmask 1042432
    %v1374 = vrot.slane %v1361, 5
    %v1375 = vrot.slane %v1362, 5
    %v1376 = vsel %vm1373, %v1374, %v1375
    %v1377 = vrot.slane %v1363, 5
    %v1378 = vsel %vm1373, %v1375, %v1377
    %v1379 = vrot.slane %v1364, 5
    %v1380 = vrot.slane %v1365, 5
    %v1381 = vsel %vm1373, %v1379, %v1380
    %v1382 = vrot.slane %v1366, 5
    %v1383 = vsel %vm1373, %v1380, %v1382
    %1384 = vrot.lane.b32.xlu0 %v1376, 3
    %v1385 = vpop.permute.xlu0 %1384
    %1386 = vrot.lane.b32.xlu0 %v1378, 3
    %v1387 = vpop.permute.xlu0 %1386
    %1388 = vrot.lane.b32.xlu0 %v1381, 3
    %v1389 = vpop.permute.xlu0 %1388
    %1390 = vrot.lane.b32.xlu0 %v1383, 3
    %v1391 = vpop.permute.xlu0 %1390
    %v1396 = vadd.f32 %v1235, %v1385
    %v1397 = vadd.f32 %v1236, %v1387
    %v1398 = vadd.f32 %v1237, %v1389
    %v1399 = vadd.f32 %v1238, %v1391
    %s1400 = sld [smem:[#allocation4 + $0x24]]
    %v1401 = vstv %s1400
    %v1402 = vmul.f32 %v1401, %v143
    %v1403 = vmul.f32 %v1401, %v144
    %v1404 = vmul.f32 %v1401, %v145
    %v1405 = vmul.f32 %v1401, %v146
    %v1406 = vmul.f32 %v1401, %v147
    %v1407 = vmul.f32 %v1401, %v148
    %v1414 = vrot.slane %v1402, 5
    %v1415 = vrot.slane %v1403, 5
    %v1416 = vsel %vm1373, %v1414, %v1415
    %v1417 = vrot.slane %v1404, 5
    %v1418 = vsel %vm1373, %v1415, %v1417
    %v1419 = vrot.slane %v1405, 5
    %v1420 = vrot.slane %v1406, 5
    %v1421 = vsel %vm1373, %v1419, %v1420
    %v1422 = vrot.slane %v1407, 5
    %v1423 = vsel %vm1373, %v1420, %v1422
    %1424 = vrot.lane.b32.xlu0 %v1416, 127
    %v1425 = vpop.permute.xlu0 %1424
    %1426 = vrot.lane.b32.xlu0 %v1418, 127
    %v1427 = vpop.permute.xlu0 %1426
    %1428 = vrot.lane.b32.xlu0 %v1421, 127
    %v1429 = vpop.permute.xlu0 %1428
    %1430 = vrot.lane.b32.xlu0 %v1423, 127
    %v1431 = vpop.permute.xlu0 %1430
    %v1436 = vadd.f32 %v1275, %v1425
    %v1437 = vadd.f32 %v1276, %v1427
    %v1438 = vadd.f32 %v1277, %v1429
    %v1439 = vadd.f32 %v1278, %v1431
    %s1440 = sld [smem:[#allocation4 + $0x25]]
    %v1441 = vstv %s1440
    %v1442 = vmul.f32 %v1441, %v143
    %v1443 = vmul.f32 %v1441, %v144
    %v1444 = vmul.f32 %v1441, %v145
    %v1445 = vmul.f32 %v1441, %v146
    %v1446 = vmul.f32 %v1441, %v147
    %v1447 = vmul.f32 %v1441, %v148
    %v1454 = vrot.slane %v1442, 5
    %v1455 = vrot.slane %v1443, 5
    %v1456 = vsel %vm1373, %v1454, %v1455
    %v1457 = vrot.slane %v1444, 5
    %v1458 = vsel %vm1373, %v1455, %v1457
    %v1459 = vrot.slane %v1445, 5
    %v1460 = vrot.slane %v1446, 5
    %v1461 = vsel %vm1373, %v1459, %v1460
    %v1462 = vrot.slane %v1447, 5
    %v1463 = vsel %vm1373, %v1460, %v1462
    %1464 = vrot.lane.b32.xlu0 %v1456, 127
    %v1465 = vpop.permute.xlu0 %1464
    %1466 = vrot.lane.b32.xlu0 %v1458, 127
    %v1467 = vpop.permute.xlu0 %1466
    %1468 = vrot.lane.b32.xlu0 %v1461, 127
    %v1469 = vpop.permute.xlu0 %1468
    %1470 = vrot.lane.b32.xlu0 %v1463, 127
    %v1471 = vpop.permute.xlu0 %1470
    %v1476 = vadd.f32 %v1315, %v1465
    %v1477 = vadd.f32 %v1316, %v1467
    %v1478 = vadd.f32 %v1317, %v1469
    %v1479 = vadd.f32 %v1318, %v1471
    %s1480 = sld [smem:[#allocation4 + $0x26]]
    %v1481 = vstv %s1480
    %v1482 = vmul.f32 %v1481, %v143
    %v1483 = vmul.f32 %v1481, %v144
    %v1484 = vmul.f32 %v1481, %v145
    %v1485 = vmul.f32 %v1481, %v146
    %v1486 = vmul.f32 %v1481, %v147
    %v1487 = vmul.f32 %v1481, %v148
    %v1494 = vrot.slane %v1482, 5
    %v1495 = vrot.slane %v1483, 5
    %v1496 = vsel %vm1373, %v1494, %v1495
    %v1497 = vrot.slane %v1484, 5
    %v1498 = vsel %vm1373, %v1495, %v1497
    %v1499 = vrot.slane %v1485, 5
    %v1500 = vrot.slane %v1486, 5
    %v1501 = vsel %vm1373, %v1499, %v1500
    %v1502 = vrot.slane %v1487, 5
    %v1503 = vsel %vm1373, %v1500, %v1502
    %1504 = vrot.lane.b32.xlu0 %v1496, 127
    %v1505 = vpop.permute.xlu0 %1504
    %1506 = vrot.lane.b32.xlu0 %v1498, 127
    %v1507 = vpop.permute.xlu0 %1506
    %1508 = vrot.lane.b32.xlu0 %v1501, 127
    %v1509 = vpop.permute.xlu0 %1508
    %1510 = vrot.lane.b32.xlu0 %v1503, 127
    %v1511 = vpop.permute.xlu0 %1510
    %v1516 = vadd.f32 %v1355, %v1505
    %v1517 = vadd.f32 %v1356, %v1507
    %v1518 = vadd.f32 %v1357, %v1509
    %v1519 = vadd.f32 %v1358, %v1511
    %s1520 = sld [smem:[#allocation4 + $0x27]]
    %v1521 = vstv %s1520
    %v1522 = vmul.f32 %v1521, %v143
    %v1523 = vmul.f32 %v1521, %v144
    %v1524 = vmul.f32 %v1521, %v145
    %v1525 = vmul.f32 %v1521, %v146
    %v1526 = vmul.f32 %v1521, %v147
    %v1527 = vmul.f32 %v1521, %v148
    %v1534 = vrot.slane %v1522, 5
    %v1535 = vrot.slane %v1523, 5
    %v1536 = vsel %vm1373, %v1534, %v1535
    %v1537 = vrot.slane %v1524, 5
    %v1538 = vsel %vm1373, %v1535, %v1537
    %v1539 = vrot.slane %v1525, 5
    %v1540 = vrot.slane %v1526, 5
    %v1541 = vsel %vm1373, %v1539, %v1540
    %v1542 = vrot.slane %v1527, 5
    %v1543 = vsel %vm1373, %v1540, %v1542
    %1544 = vrot.lane.b32.xlu0 %v1536, 127
    %v1545 = vpop.permute.xlu0 %1544
    %1546 = vrot.lane.b32.xlu0 %v1538, 127
    %v1547 = vpop.permute.xlu0 %1546
    %1548 = vrot.lane.b32.xlu0 %v1541, 127
    %v1549 = vpop.permute.xlu0 %1548
    %1550 = vrot.lane.b32.xlu0 %v1543, 127
    %v1551 = vpop.permute.xlu0 %1550
    %v1556 = vadd.f32 %v1396, %v1545
    %v1557 = vadd.f32 %v1397, %v1547
    %v1558 = vadd.f32 %v1398, %v1549
    %v1559 = vadd.f32 %v1399, %v1551
    %s1560 = sld [smem:[#allocation4 + $0x28]]
    %v1561 = vstv %s1560
    %v1562 = vmul.f32 %v1561, %v143
    %v1563 = vmul.f32 %v1561, %v144
    %v1564 = vmul.f32 %v1561, %v145
    %v1565 = vmul.f32 %v1561, %v146
    %v1566 = vmul.f32 %v1561, %v147
    %v1567 = vmul.f32 %v1561, %v148
    %v1574 = vrot.slane %v1562, 5
    %v1575 = vrot.slane %v1563, 5
    %v1576 = vsel %vm1373, %v1574, %v1575
    %v1577 = vrot.slane %v1564, 5
    %v1578 = vsel %vm1373, %v1575, %v1577
    %v1579 = vrot.slane %v1565, 5
    %v1580 = vrot.slane %v1566, 5
    %v1581 = vsel %vm1373, %v1579, %v1580
    %v1582 = vrot.slane %v1567, 5
    %v1583 = vsel %vm1373, %v1580, %v1582
    %1584 = vrot.lane.b32.xlu0 %v1576, 123
    %v1585 = vpop.permute.xlu0 %1584
    %1586 = vrot.lane.b32.xlu0 %v1578, 123
    %v1587 = vpop.permute.xlu0 %1586
    %1588 = vrot.lane.b32.xlu0 %v1581, 123
    %v1589 = vpop.permute.xlu0 %1588
    %1590 = vrot.lane.b32.xlu0 %v1583, 123
    %v1591 = vpop.permute.xlu0 %1590
    %v1596 = vadd.f32 %v1436, %v1585
    %v1597 = vadd.f32 %v1437, %v1587
    %v1598 = vadd.f32 %v1438, %v1589
    %v1599 = vadd.f32 %v1439, %v1591
    %s1600 = sld [smem:[#allocation4 + $0x29]]
    %v1601 = vstv %s1600
    %v1602 = vmul.f32 %v1601, %v143
    %v1603 = vmul.f32 %v1601, %v144
    %v1604 = vmul.f32 %v1601, %v145
    %v1605 = vmul.f32 %v1601, %v146
    %v1606 = vmul.f32 %v1601, %v147
    %v1607 = vmul.f32 %v1601, %v148
    %v1614 = vrot.slane %v1602, 5
    %v1615 = vrot.slane %v1603, 5
    %v1616 = vsel %vm1373, %v1614, %v1615
    %v1617 = vrot.slane %v1604, 5
    %v1618 = vsel %vm1373, %v1615, %v1617
    %v1619 = vrot.slane %v1605, 5
    %v1620 = vrot.slane %v1606, 5
    %v1621 = vsel %vm1373, %v1619, %v1620
    %v1622 = vrot.slane %v1607, 5
    %v1623 = vsel %vm1373, %v1620, %v1622
    %1624 = vrot.lane.b32.xlu0 %v1616, 123
    %v1625 = vpop.permute.xlu0 %1624
    %1626 = vrot.lane.b32.xlu0 %v1618, 123
    %v1627 = vpop.permute.xlu0 %1626
    %1628 = vrot.lane.b32.xlu0 %v1621, 123
    %v1629 = vpop.permute.xlu0 %1628
    %1630 = vrot.lane.b32.xlu0 %v1623, 123
    %v1631 = vpop.permute.xlu0 %1630
    %v1636 = vadd.f32 %v1476, %v1625
    %v1637 = vadd.f32 %v1477, %v1627
    %v1638 = vadd.f32 %v1478, %v1629
    %v1639 = vadd.f32 %v1479, %v1631
    %s1640 = sld [smem:[#allocation4 + $0x2a]]
    %v1641 = vstv %s1640
    %v1642 = vmul.f32 %v1641, %v143
    %v1643 = vmul.f32 %v1641, %v144
    %v1644 = vmul.f32 %v1641, %v145
    %v1645 = vmul.f32 %v1641, %v146
    %v1646 = vmul.f32 %v1641, %v147
    %v1647 = vmul.f32 %v1641, %v148
    %vm1654 = vcmask 1041408
    %v1655 = vrot.slane %v1642, 6
    %v1656 = vrot.slane %v1643, 6
    %v1657 = vsel %vm1654, %v1655, %v1656
    %v1658 = vrot.slane %v1644, 6
    %v1659 = vsel %vm1654, %v1656, %v1658
    %v1660 = vrot.slane %v1645, 6
    %v1661 = vrot.slane %v1646, 6
    %v1662 = vsel %vm1654, %v1660, %v1661
    %v1663 = vrot.slane %v1647, 6
    %v1664 = vsel %vm1654, %v1661, %v1663
    %1665 = vrot.lane.b32.xlu0 %v1657, 2
    %v1666 = vpop.permute.xlu0 %1665
    %1667 = vrot.lane.b32.xlu0 %v1659, 2
    %v1668 = vpop.permute.xlu0 %1667
    %1669 = vrot.lane.b32.xlu0 %v1662, 2
    %v1670 = vpop.permute.xlu0 %1669
    %1671 = vrot.lane.b32.xlu0 %v1664, 2
    %v1672 = vpop.permute.xlu0 %1671
    %v1677 = vadd.f32 %v1516, %v1666
    %v1678 = vadd.f32 %v1517, %v1668
    %v1679 = vadd.f32 %v1518, %v1670
    %v1680 = vadd.f32 %v1519, %v1672
    %s1681 = sld [smem:[#allocation4 + $0x2b]]
    %v1682 = vstv %s1681
    %v1683 = vmul.f32 %v1682, %v143
    %v1684 = vmul.f32 %v1682, %v144
    %v1685 = vmul.f32 %v1682, %v145
    %v1686 = vmul.f32 %v1682, %v146
    %v1687 = vmul.f32 %v1682, %v147
    %v1688 = vmul.f32 %v1682, %v148
    %v1695 = vrot.slane %v1683, 6
    %v1696 = vrot.slane %v1684, 6
    %v1697 = vsel %vm1654, %v1695, %v1696
    %v1698 = vrot.slane %v1685, 6
    %v1699 = vsel %vm1654, %v1696, %v1698
    %v1700 = vrot.slane %v1686, 6
    %v1701 = vrot.slane %v1687, 6
    %v1702 = vsel %vm1654, %v1700, %v1701
    %v1703 = vrot.slane %v1688, 6
    %v1704 = vsel %vm1654, %v1701, %v1703
    %1705 = vrot.lane.b32.xlu0 %v1697, 2
    %v1706 = vpop.permute.xlu0 %1705
    %1707 = vrot.lane.b32.xlu0 %v1699, 2
    %v1708 = vpop.permute.xlu0 %1707
    %1709 = vrot.lane.b32.xlu0 %v1702, 2
    %v1710 = vpop.permute.xlu0 %1709
    %1711 = vrot.lane.b32.xlu0 %v1704, 2
    %v1712 = vpop.permute.xlu0 %1711
    %v1717 = vadd.f32 %v1556, %v1706
    %v1718 = vadd.f32 %v1557, %v1708
    %v1719 = vadd.f32 %v1558, %v1710
    %v1720 = vadd.f32 %v1559, %v1712
    %s1721 = sld [smem:[#allocation4 + $0x2c]]
    %v1722 = vstv %s1721
    %v1723 = vmul.f32 %v1722, %v143
    %v1724 = vmul.f32 %v1722, %v144
    %v1725 = vmul.f32 %v1722, %v145
    %v1726 = vmul.f32 %v1722, %v146
    %v1727 = vmul.f32 %v1722, %v147
    %v1728 = vmul.f32 %v1722, %v148
    %v1735 = vrot.slane %v1723, 6
    %v1736 = vrot.slane %v1724, 6
    %v1737 = vsel %vm1654, %v1735, %v1736
    %v1738 = vrot.slane %v1725, 6
    %v1739 = vsel %vm1654, %v1736, %v1738
    %v1740 = vrot.slane %v1726, 6
    %v1741 = vrot.slane %v1727, 6
    %v1742 = vsel %vm1654, %v1740, %v1741
    %v1743 = vrot.slane %v1728, 6
    %v1744 = vsel %vm1654, %v1741, %v1743
    %1745 = vrot.lane.b32.xlu0 %v1737, 126
    %v1746 = vpop.permute.xlu0 %1745
    %1747 = vrot.lane.b32.xlu0 %v1739, 126
    %v1748 = vpop.permute.xlu0 %1747
    %1749 = vrot.lane.b32.xlu0 %v1742, 126
    %v1750 = vpop.permute.xlu0 %1749
    %1751 = vrot.lane.b32.xlu0 %v1744, 126
    %v1752 = vpop.permute.xlu0 %1751
    %v1757 = vadd.f32 %v1596, %v1746
    %v1758 = vadd.f32 %v1597, %v1748
    %v1759 = vadd.f32 %v1598, %v1750
    %v1760 = vadd.f32 %v1599, %v1752
    %s1761 = sld [smem:[#allocation4 + $0x2d]]
    %v1762 = vstv %s1761
    %v1763 = vmul.f32 %v1762, %v143
    %v1764 = vmul.f32 %v1762, %v144
    %v1765 = vmul.f32 %v1762, %v145
    %v1766 = vmul.f32 %v1762, %v146
    %v1767 = vmul.f32 %v1762, %v147
    %v1768 = vmul.f32 %v1762, %v148
    %v1775 = vrot.slane %v1763, 6
    %v1776 = vrot.slane %v1764, 6
    %v1777 = vsel %vm1654, %v1775, %v1776
    %v1778 = vrot.slane %v1765, 6
    %v1779 = vsel %vm1654, %v1776, %v1778
    %v1780 = vrot.slane %v1766, 6
    %v1781 = vrot.slane %v1767, 6
    %v1782 = vsel %vm1654, %v1780, %v1781
    %v1783 = vrot.slane %v1768, 6
    %v1784 = vsel %vm1654, %v1781, %v1783
    %1785 = vrot.lane.b32.xlu0 %v1777, 126
    %v1786 = vpop.permute.xlu0 %1785
    %1787 = vrot.lane.b32.xlu0 %v1779, 126
    %v1788 = vpop.permute.xlu0 %1787
    %1789 = vrot.lane.b32.xlu0 %v1782, 126
    %v1790 = vpop.permute.xlu0 %1789
    %1791 = vrot.lane.b32.xlu0 %v1784, 126
    %v1792 = vpop.permute.xlu0 %1791
    %v1797 = vadd.f32 %v1636, %v1786
    %v1798 = vadd.f32 %v1637, %v1788
    %v1799 = vadd.f32 %v1638, %v1790
    %v1800 = vadd.f32 %v1639, %v1792
    %s1801 = sld [smem:[#allocation4 + $0x2e]]
    %v1802 = vstv %s1801
    %v1803 = vmul.f32 %v1802, %v143
    %v1804 = vmul.f32 %v1802, %v144
    %v1805 = vmul.f32 %v1802, %v145
    %v1806 = vmul.f32 %v1802, %v146
    %v1807 = vmul.f32 %v1802, %v147
    %v1808 = vmul.f32 %v1802, %v148
    %v1815 = vrot.slane %v1803, 6
    %v1816 = vrot.slane %v1804, 6
    %v1817 = vsel %vm1654, %v1815, %v1816
    %v1818 = vrot.slane %v1805, 6
    %v1819 = vsel %vm1654, %v1816, %v1818
    %v1820 = vrot.slane %v1806, 6
    %v1821 = vrot.slane %v1807, 6
    %v1822 = vsel %vm1654, %v1820, %v1821
    %v1823 = vrot.slane %v1808, 6
    %v1824 = vsel %vm1654, %v1821, %v1823
    %1825 = vrot.lane.b32.xlu0 %v1817, 126
    %v1826 = vpop.permute.xlu0 %1825
    %1827 = vrot.lane.b32.xlu0 %v1819, 126
    %v1828 = vpop.permute.xlu0 %1827
    %1829 = vrot.lane.b32.xlu0 %v1822, 126
    %v1830 = vpop.permute.xlu0 %1829
    %1831 = vrot.lane.b32.xlu0 %v1824, 126
    %v1832 = vpop.permute.xlu0 %1831
    %v1837 = vadd.f32 %v1677, %v1826
    %v1838 = vadd.f32 %v1678, %v1828
    %v1839 = vadd.f32 %v1679, %v1830
    %v1840 = vadd.f32 %v1680, %v1832
    %s1841 = sld [smem:[#allocation4 + $0x2f]]
    %v1842 = vstv %s1841
    %v1843 = vmul.f32 %v1842, %v143
    %v1844 = vmul.f32 %v1842, %v144
    %v1845 = vmul.f32 %v1842, %v145
    %v1846 = vmul.f32 %v1842, %v146
    %v1847 = vmul.f32 %v1842, %v147
    %v1848 = vmul.f32 %v1842, %v148
    %v1855 = vrot.slane %v1843, 6
    %v1856 = vrot.slane %v1844, 6
    %v1857 = vsel %vm1654, %v1855, %v1856
    %v1858 = vrot.slane %v1845, 6
    %v1859 = vsel %vm1654, %v1856, %v1858
    %v1860 = vrot.slane %v1846, 6
    %v1861 = vrot.slane %v1847, 6
    %v1862 = vsel %vm1654, %v1860, %v1861
    %v1863 = vrot.slane %v1848, 6
    %v1864 = vsel %vm1654, %v1861, %v1863
    %1865 = vrot.lane.b32.xlu0 %v1857, 126
    %v1866 = vpop.permute.xlu0 %1865
    %1867 = vrot.lane.b32.xlu0 %v1859, 126
    %v1868 = vpop.permute.xlu0 %1867
    %1869 = vrot.lane.b32.xlu0 %v1862, 126
    %v1870 = vpop.permute.xlu0 %1869
    %1871 = vrot.lane.b32.xlu0 %v1864, 126
    %v1872 = vpop.permute.xlu0 %1871
    %v1877 = vadd.f32 %v1717, %v1866
    %v1878 = vadd.f32 %v1718, %v1868
    %v1879 = vadd.f32 %v1719, %v1870
    %v1880 = vadd.f32 %v1720, %v1872
    %s1881 = sld [smem:[#allocation4 + $0x30]]
    %v1882 = vstv %s1881
    %v1883 = vmul.f32 %v1882, %v143
    %v1884 = vmul.f32 %v1882, %v144
    %v1885 = vmul.f32 %v1882, %v145
    %v1886 = vmul.f32 %v1882, %v146
    %v1887 = vmul.f32 %v1882, %v147
    %v1888 = vmul.f32 %v1882, %v148
    %v1895 = vrot.slane %v1883, 6
    %v1896 = vrot.slane %v1884, 6
    %v1897 = vsel %vm1654, %v1895, %v1896
    %v1898 = vrot.slane %v1885, 6
    %v1899 = vsel %vm1654, %v1896, %v1898
    %v1900 = vrot.slane %v1886, 6
    %v1901 = vrot.slane %v1887, 6
    %v1902 = vsel %vm1654, %v1900, %v1901
    %v1903 = vrot.slane %v1888, 6
    %v1904 = vsel %vm1654, %v1901, %v1903
    %1905 = vrot.lane.b32.xlu0 %v1897, 122
    %v1906 = vpop.permute.xlu0 %1905
    %1907 = vrot.lane.b32.xlu0 %v1899, 122
    %v1908 = vpop.permute.xlu0 %1907
    %1909 = vrot.lane.b32.xlu0 %v1902, 122
    %v1910 = vpop.permute.xlu0 %1909
    %1911 = vrot.lane.b32.xlu0 %v1904, 122
    %v1912 = vpop.permute.xlu0 %1911
    %v1917 = vadd.f32 %v1757, %v1906
    %v1918 = vadd.f32 %v1758, %v1908
    %v1919 = vadd.f32 %v1759, %v1910
    %v1920 = vadd.f32 %v1760, %v1912
    %v1921 = vld [vmem:[#allocation3] sm:$0xff]
    %v1922 = vld [vmem:[#allocation3 + $0x8] sm:$0xff]
    %v1923 = vld [vmem:[#allocation3 + $0x10] sm:$0x3f]
    %v1924 = vld [vmem:[#allocation3 + $0x18] sm:$0xff]
    %v1925 = vld [vmem:[#allocation3 + $0x20] sm:$0xff]
    %v1926 = vld [vmem:[#allocation3 + $0x28] sm:$0x3f]
    %s1927 = sld [smem:[#allocation4 + $0x31]]
    %v1928 = vstv %s1927
    %v1929 = vmul.f32 %v1928, %v1921
    %v1930 = vmul.f32 %v1928, %v1922
    %v1931 = vmul.f32 %v1928, %v1924
    %v1932 = vmul.f32 %v1928, %v1925
    %1937 = vrot.lane.b32.xlu0 %v1929, 1
    %v1938 = vpop.permute.xlu0 %1937
    %1939 = vrot.lane.b32.xlu0 %v1930, 1
    %v1940 = vpop.permute.xlu0 %1939
    %1941 = vrot.lane.b32.xlu0 %v1931, 1
    %v1942 = vpop.permute.xlu0 %1941
    %1943 = vrot.lane.b32.xlu0 %v1932, 1
    %v1944 = vpop.permute.xlu0 %1943
    %v1949 = vadd.f32 %v1797, %v1938
    %v1950 = vadd.f32 %v1798, %v1940
    %v1951 = vadd.f32 %v1799, %v1942
    %v1952 = vadd.f32 %v1800, %v1944
    %s1953 = sld [smem:[#allocation4 + $0x32]]
    %v1954 = vstv %s1953
    %v1955 = vmul.f32 %v1954, %v1921
    %v1956 = vmul.f32 %v1954, %v1922
    %v1957 = vmul.f32 %v1954, %v1924
    %v1958 = vmul.f32 %v1954, %v1925
    %1963 = vrot.lane.b32.xlu0 %v1955, 1
    %v1964 = vpop.permute.xlu0 %1963
    %1965 = vrot.lane.b32.xlu0 %v1956, 1
    %v1966 = vpop.permute.xlu0 %1965
    %1967 = vrot.lane.b32.xlu0 %v1957, 1
    %v1968 = vpop.permute.xlu0 %1967
    %1969 = vrot.lane.b32.xlu0 %v1958, 1
    %v1970 = vpop.permute.xlu0 %1969
    %v1975 = vadd.f32 %v1837, %v1964
    %v1976 = vadd.f32 %v1838, %v1966
    %v1977 = vadd.f32 %v1839, %v1968
    %v1978 = vadd.f32 %v1840, %v1970
    %s1979 = sld [smem:[#allocation4 + $0x33]]
    %v1980 = vstv %s1979
    %v1981 = vmul.f32 %v1980, %v1921
    %v1982 = vmul.f32 %v1980, %v1922
    %v1983 = vmul.f32 %v1980, %v1924
    %v1984 = vmul.f32 %v1980, %v1925
    %1989 = vrot.lane.b32.xlu0 %v1981, 1
    %v1990 = vpop.permute.xlu0 %1989
    %1991 = vrot.lane.b32.xlu0 %v1982, 1
    %v1992 = vpop.permute.xlu0 %1991
    %1993 = vrot.lane.b32.xlu0 %v1983, 1
    %v1994 = vpop.permute.xlu0 %1993
    %1995 = vrot.lane.b32.xlu0 %v1984, 1
    %v1996 = vpop.permute.xlu0 %1995
    %v2001 = vadd.f32 %v1877, %v1990
    %v2002 = vadd.f32 %v1878, %v1992
    %v2003 = vadd.f32 %v1879, %v1994
    %v2004 = vadd.f32 %v1880, %v1996
    %s2005 = sld [smem:[#allocation4 + $0x34]]
    %v2006 = vstv %s2005
    %v2007 = vmul.f32 %v2006, %v1921
    %v2008 = vmul.f32 %v2006, %v1922
    %v2009 = vmul.f32 %v2006, %v1924
    %v2010 = vmul.f32 %v2006, %v1925
    %2015 = vrot.lane.b32.xlu0 %v2007, 125
    %v2016 = vpop.permute.xlu0 %2015
    %2017 = vrot.lane.b32.xlu0 %v2008, 125
    %v2018 = vpop.permute.xlu0 %2017
    %2019 = vrot.lane.b32.xlu0 %v2009, 125
    %v2020 = vpop.permute.xlu0 %2019
    %2021 = vrot.lane.b32.xlu0 %v2010, 125
    %v2022 = vpop.permute.xlu0 %2021
    %v2027 = vadd.f32 %v1917, %v2016
    %v2028 = vadd.f32 %v1918, %v2018
    %v2029 = vadd.f32 %v1919, %v2020
    %v2030 = vadd.f32 %v1920, %v2022
    %s2031 = sld [smem:[#allocation4 + $0x35]]
    %v2032 = vstv %s2031
    %v2033 = vmul.f32 %v2032, %v1921
    %v2034 = vmul.f32 %v2032, %v1922
    %v2035 = vmul.f32 %v2032, %v1924
    %v2036 = vmul.f32 %v2032, %v1925
    %2041 = vrot.lane.b32.xlu0 %v2033, 125
    %v2042 = vpop.permute.xlu0 %2041
    %2043 = vrot.lane.b32.xlu0 %v2034, 125
    %v2044 = vpop.permute.xlu0 %2043
    %2045 = vrot.lane.b32.xlu0 %v2035, 125
    %v2046 = vpop.permute.xlu0 %2045
    %2047 = vrot.lane.b32.xlu0 %v2036, 125
    %v2048 = vpop.permute.xlu0 %2047
    %v2053 = vadd.f32 %v1949, %v2042
    %v2054 = vadd.f32 %v1950, %v2044
    %v2055 = vadd.f32 %v1951, %v2046
    %v2056 = vadd.f32 %v1952, %v2048
    %s2057 = sld [smem:[#allocation4 + $0x36]]
    %v2058 = vstv %s2057
    %v2059 = vmul.f32 %v2058, %v1921
    %v2060 = vmul.f32 %v2058, %v1922
    %v2061 = vmul.f32 %v2058, %v1924
    %v2062 = vmul.f32 %v2058, %v1925
    %2067 = vrot.lane.b32.xlu0 %v2059, 125
    %v2068 = vpop.permute.xlu0 %2067
    %2069 = vrot.lane.b32.xlu0 %v2060, 125
    %v2070 = vpop.permute.xlu0 %2069
    %2071 = vrot.lane.b32.xlu0 %v2061, 125
    %v2072 = vpop.permute.xlu0 %2071
    %2073 = vrot.lane.b32.xlu0 %v2062, 125
    %v2074 = vpop.permute.xlu0 %2073
    %v2079 = vadd.f32 %v1975, %v2068
    %v2080 = vadd.f32 %v1976, %v2070
    %v2081 = vadd.f32 %v1977, %v2072
    %v2082 = vadd.f32 %v1978, %v2074
    %s2083 = sld [smem:[#allocation4 + $0x37]]
    %v2084 = vstv %s2083
    %v2085 = vmul.f32 %v2084, %v1921
    %v2086 = vmul.f32 %v2084, %v1922
    %v2087 = vmul.f32 %v2084, %v1924
    %v2088 = vmul.f32 %v2084, %v1925
    %2093 = vrot.lane.b32.xlu0 %v2085, 125
    %v2094 = vpop.permute.xlu0 %2093
    %2095 = vrot.lane.b32.xlu0 %v2086, 125
    %v2096 = vpop.permute.xlu0 %2095
    %2097 = vrot.lane.b32.xlu0 %v2087, 125
    %v2098 = vpop.permute.xlu0 %2097
    %2099 = vrot.lane.b32.xlu0 %v2088, 125
    %v2100 = vpop.permute.xlu0 %2099
    %v2105 = vadd.f32 %v2001, %v2094
    %v2106 = vadd.f32 %v2002, %v2096
    %v2107 = vadd.f32 %v2003, %v2098
    %v2108 = vadd.f32 %v2004, %v2100
    %s2109 = sld [smem:[#allocation4 + $0x38]]
    %v2110 = vstv %s2109
    %v2111 = vmul.f32 %v2110, %v1921
    %v2112 = vmul.f32 %v2110, %v1922
    %v2113 = vmul.f32 %v2110, %v1923
    %v2114 = vmul.f32 %v2110, %v1924
    %v2115 = vmul.f32 %v2110, %v1925
    %v2116 = vmul.f32 %v2110, %v1926
    %v2123 = vrot.slane %v2111, 1
    %v2124 = vrot.slane %v2112, 1
    %v2125 = vsel %vm281, %v2123, %v2124
    %v2126 = vrot.slane %v2113, 1
    %v2127 = vsel %vm281, %v2124, %v2126
    %v2128 = vrot.slane %v2114, 1
    %v2129 = vrot.slane %v2115, 1
    %v2130 = vsel %vm281, %v2128, %v2129
    %v2131 = vrot.slane %v2116, 1
    %v2132 = vsel %vm281, %v2129, %v2131
    %v2137 = vadd.f32 %v2027, %v2125
    %v2138 = vadd.f32 %v2028, %v2127
    %v2139 = vadd.f32 %v2029, %v2130
    %v2140 = vadd.f32 %v2030, %v2132
    %s2141 = sld [smem:[#allocation4 + $0x39]]
    %v2142 = vstv %s2141
    %v2143 = vmul.f32 %v2142, %v1921
    %v2144 = vmul.f32 %v2142, %v1922
    %v2145 = vmul.f32 %v2142, %v1923
    %v2146 = vmul.f32 %v2142, %v1924
    %v2147 = vmul.f32 %v2142, %v1925
    %v2148 = vmul.f32 %v2142, %v1926
    %v2155 = vrot.slane %v2143, 1
    %v2156 = vrot.slane %v2144, 1
    %v2157 = vsel %vm281, %v2155, %v2156
    %v2158 = vrot.slane %v2145, 1
    %v2159 = vsel %vm281, %v2156, %v2158
    %v2160 = vrot.slane %v2146, 1
    %v2161 = vrot.slane %v2147, 1
    %v2162 = vsel %vm281, %v2160, %v2161
    %v2163 = vrot.slane %v2148, 1
    %v2164 = vsel %vm281, %v2161, %v2163
    %v2169 = vadd.f32 %v2053, %v2157
    %v2170 = vadd.f32 %v2054, %v2159
    %v2171 = vadd.f32 %v2055, %v2162
    %v2172 = vadd.f32 %v2056, %v2164
    %s2173 = sld [smem:[#allocation4 + $0x3a]]
    %v2174 = vstv %s2173
    %v2175 = vmul.f32 %v2174, %v1921
    %v2176 = vmul.f32 %v2174, %v1922
    %v2177 = vmul.f32 %v2174, %v1923
    %v2178 = vmul.f32 %v2174, %v1924
    %v2179 = vmul.f32 %v2174, %v1925
    %v2180 = vmul.f32 %v2174, %v1926
    %v2187 = vrot.slane %v2175, 1
    %v2188 = vrot.slane %v2176, 1
    %v2189 = vsel %vm281, %v2187, %v2188
    %v2190 = vrot.slane %v2177, 1
    %v2191 = vsel %vm281, %v2188, %v2190
    %v2192 = vrot.slane %v2178, 1
    %v2193 = vrot.slane %v2179, 1
    %v2194 = vsel %vm281, %v2192, %v2193
    %v2195 = vrot.slane %v2180, 1
    %v2196 = vsel %vm281, %v2193, %v2195
    %v2201 = vadd.f32 %v2079, %v2189
    %v2202 = vadd.f32 %v2080, %v2191
    %v2203 = vadd.f32 %v2081, %v2194
    %v2204 = vadd.f32 %v2082, %v2196
    %s2205 = sld [smem:[#allocation4 + $0x3b]]
    %v2206 = vstv %s2205
    %v2207 = vmul.f32 %v2206, %v1921
    %v2208 = vmul.f32 %v2206, %v1922
    %v2209 = vmul.f32 %v2206, %v1923
    %v2210 = vmul.f32 %v2206, %v1924
    %v2211 = vmul.f32 %v2206, %v1925
    %v2212 = vmul.f32 %v2206, %v1926
    %v2219 = vrot.slane %v2207, 1
    %v2220 = vrot.slane %v2208, 1
    %v2221 = vsel %vm281, %v2219, %v2220
    %v2222 = vrot.slane %v2209, 1
    %v2223 = vsel %vm281, %v2220, %v2222
    %v2224 = vrot.slane %v2210, 1
    %v2225 = vrot.slane %v2211, 1
    %v2226 = vsel %vm281, %v2224, %v2225
    %v2227 = vrot.slane %v2212, 1
    %v2228 = vsel %vm281, %v2225, %v2227
    %v2233 = vadd.f32 %v2105, %v2221
    %v2234 = vadd.f32 %v2106, %v2223
    %v2235 = vadd.f32 %v2107, %v2226
    %v2236 = vadd.f32 %v2108, %v2228
    %s2237 = sld [smem:[#allocation4 + $0x3c]]
    %v2238 = vstv %s2237
    %v2239 = vmul.f32 %v2238, %v1921
    %v2240 = vmul.f32 %v2238, %v1922
    %v2241 = vmul.f32 %v2238, %v1923
    %v2242 = vmul.f32 %v2238, %v1924
    %v2243 = vmul.f32 %v2238, %v1925
    %v2244 = vmul.f32 %v2238, %v1926
    %v2251 = vrot.slane %v2239, 1
    %v2252 = vrot.slane %v2240, 1
    %v2253 = vsel %vm281, %v2251, %v2252
    %v2254 = vrot.slane %v2241, 1
    %v2255 = vsel %vm281, %v2252, %v2254
    %v2256 = vrot.slane %v2242, 1
    %v2257 = vrot.slane %v2243, 1
    %v2258 = vsel %vm281, %v2256, %v2257
    %v2259 = vrot.slane %v2244, 1
    %v2260 = vsel %vm281, %v2257, %v2259
    %2261 = vrot.lane.b32.xlu0 %v2253, 124
    %v2262 = vpop.permute.xlu0 %2261
    %2263 = vrot.lane.b32.xlu0 %v2255, 124
    %v2264 = vpop.permute.xlu0 %2263
    %2265 = vrot.lane.b32.xlu0 %v2258, 124
    %v2266 = vpop.permute.xlu0 %2265
    %2267 = vrot.lane.b32.xlu0 %v2260, 124
    %v2268 = vpop.permute.xlu0 %2267
    %v2273 = vadd.f32 %v2137, %v2262
    %v2274 = vadd.f32 %v2138, %v2264
    %v2275 = vadd.f32 %v2139, %v2266
    %v2276 = vadd.f32 %v2140, %v2268
    %s2277 = sld [smem:[#allocation4 + $0x3d]]
    %v2278 = vstv %s2277
    %v2279 = vmul.f32 %v2278, %v1921
    %v2280 = vmul.f32 %v2278, %v1922
    %v2281 = vmul.f32 %v2278, %v1923
    %v2282 = vmul.f32 %v2278, %v1924
    %v2283 = vmul.f32 %v2278, %v1925
    %v2284 = vmul.f32 %v2278, %v1926
    %v2291 = vrot.slane %v2279, 1
    %v2292 = vrot.slane %v2280, 1
    %v2293 = vsel %vm281, %v2291, %v2292
    %v2294 = vrot.slane %v2281, 1
    %v2295 = vsel %vm281, %v2292, %v2294
    %v2296 = vrot.slane %v2282, 1
    %v2297 = vrot.slane %v2283, 1
    %v2298 = vsel %vm281, %v2296, %v2297
    %v2299 = vrot.slane %v2284, 1
    %v2300 = vsel %vm281, %v2297, %v2299
    %2301 = vrot.lane.b32.xlu0 %v2293, 124
    %v2302 = vpop.permute.xlu0 %2301
    %2303 = vrot.lane.b32.xlu0 %v2295, 124
    %v2304 = vpop.permute.xlu0 %2303
    %2305 = vrot.lane.b32.xlu0 %v2298, 124
    %v2306 = vpop.permute.xlu0 %2305
    %2307 = vrot.lane.b32.xlu0 %v2300, 124
    %v2308 = vpop.permute.xlu0 %2307
    %v2313 = vadd.f32 %v2169, %v2302
    %v2314 = vadd.f32 %v2170, %v2304
    %v2315 = vadd.f32 %v2171, %v2306
    %v2316 = vadd.f32 %v2172, %v2308
    %s2317 = sld [smem:[#allocation4 + $0x3e]]
    %v2318 = vstv %s2317
    %v2319 = vmul.f32 %v2318, %v1921
    %v2320 = vmul.f32 %v2318, %v1922
    %v2321 = vmul.f32 %v2318, %v1923
    %v2322 = vmul.f32 %v2318, %v1924
    %v2323 = vmul.f32 %v2318, %v1925
    %v2324 = vmul.f32 %v2318, %v1926
    %v2331 = vrot.slane %v2319, 1
    %v2332 = vrot.slane %v2320, 1
    %v2333 = vsel %vm281, %v2331, %v2332
    %v2334 = vrot.slane %v2321, 1
    %v2335 = vsel %vm281, %v2332, %v2334
    %v2336 = vrot.slane %v2322, 1
    %v2337 = vrot.slane %v2323, 1
    %v2338 = vsel %vm281, %v2336, %v2337
    %v2339 = vrot.slane %v2324, 1
    %v2340 = vsel %vm281, %v2337, %v2339
    %2341 = vrot.lane.b32.xlu0 %v2333, 124
    %v2342 = vpop.permute.xlu0 %2341
    %2343 = vrot.lane.b32.xlu0 %v2335, 124
    %v2344 = vpop.permute.xlu0 %2343
    %2345 = vrot.lane.b32.xlu0 %v2338, 124
    %v2346 = vpop.permute.xlu0 %2345
    %2347 = vrot.lane.b32.xlu0 %v2340, 124
    %v2348 = vpop.permute.xlu0 %2347
    %v2353 = vadd.f32 %v2201, %v2342
    %v2354 = vadd.f32 %v2202, %v2344
    %v2355 = vadd.f32 %v2203, %v2346
    %v2356 = vadd.f32 %v2204, %v2348
    %s2357 = sld [smem:[#allocation4 + $0x3f]]
    %v2358 = vstv %s2357
    %v2359 = vmul.f32 %v2358, %v1921
    %v2360 = vmul.f32 %v2358, %v1922
    %v2361 = vmul.f32 %v2358, %v1923
    %v2362 = vmul.f32 %v2358, %v1924
    %v2363 = vmul.f32 %v2358, %v1925
    %v2364 = vmul.f32 %v2358, %v1926
    %v2371 = vrot.slane %v2359, 2
    %v2372 = vrot.slane %v2360, 2
    %v2373 = vsel %vm562, %v2371, %v2372
    %v2374 = vrot.slane %v2361, 2
    %v2375 = vsel %vm562, %v2372, %v2374
    %v2376 = vrot.slane %v2362, 2
    %v2377 = vrot.slane %v2363, 2
    %v2378 = vsel %vm562, %v2376, %v2377
    %v2379 = vrot.slane %v2364, 2
    %v2380 = vsel %vm562, %v2377, %v2379
    %2381 = vrot.lane.b32.xlu0 %v2373, 3
    %v2382 = vpop.permute.xlu0 %2381
    %2383 = vrot.lane.b32.xlu0 %v2375, 3
    %v2384 = vpop.permute.xlu0 %2383
    %2385 = vrot.lane.b32.xlu0 %v2378, 3
    %v2386 = vpop.permute.xlu0 %2385
    %2387 = vrot.lane.b32.xlu0 %v2380, 3
    %v2388 = vpop.permute.xlu0 %2387
    %v2393 = vadd.f32 %v2233, %v2382
    %v2394 = vadd.f32 %v2234, %v2384
    %v2395 = vadd.f32 %v2235, %v2386
    %v2396 = vadd.f32 %v2236, %v2388
    %s2397 = sld [smem:[#allocation4 + $0x40]]
    %v2398 = vstv %s2397
    %v2399 = vmul.f32 %v2398, %v1921
    %v2400 = vmul.f32 %v2398, %v1922
    %v2401 = vmul.f32 %v2398, %v1923
    %v2402 = vmul.f32 %v2398, %v1924
    %v2403 = vmul.f32 %v2398, %v1925
    %v2404 = vmul.f32 %v2398, %v1926
    %v2411 = vrot.slane %v2399, 2
    %v2412 = vrot.slane %v2400, 2
    %v2413 = vsel %vm562, %v2411, %v2412
    %v2414 = vrot.slane %v2401, 2
    %v2415 = vsel %vm562, %v2412, %v2414
    %v2416 = vrot.slane %v2402, 2
    %v2417 = vrot.slane %v2403, 2
    %v2418 = vsel %vm562, %v2416, %v2417
    %v2419 = vrot.slane %v2404, 2
    %v2420 = vsel %vm562, %v2417, %v2419
    %2421 = vrot.lane.b32.xlu0 %v2413, 127
    %v2422 = vpop.permute.xlu0 %2421
    %2423 = vrot.lane.b32.xlu0 %v2415, 127
    %v2424 = vpop.permute.xlu0 %2423
    %2425 = vrot.lane.b32.xlu0 %v2418, 127
    %v2426 = vpop.permute.xlu0 %2425
    %2427 = vrot.lane.b32.xlu0 %v2420, 127
    %v2428 = vpop.permute.xlu0 %2427
    %v2433 = vadd.f32 %v2273, %v2422
    %v2434 = vadd.f32 %v2274, %v2424
    %v2435 = vadd.f32 %v2275, %v2426
    %v2436 = vadd.f32 %v2276, %v2428
    %s2437 = sld [smem:[#allocation4 + $0x41]]
    %v2438 = vstv %s2437
    %v2439 = vmul.f32 %v2438, %v1921
    %v2440 = vmul.f32 %v2438, %v1922
    %v2441 = vmul.f32 %v2438, %v1923
    %v2442 = vmul.f32 %v2438, %v1924
    %v2443 = vmul.f32 %v2438, %v1925
    %v2444 = vmul.f32 %v2438, %v1926
    %v2451 = vrot.slane %v2439, 2
    %v2452 = vrot.slane %v2440, 2
    %v2453 = vsel %vm562, %v2451, %v2452
    %v2454 = vrot.slane %v2441, 2
    %v2455 = vsel %vm562, %v2452, %v2454
    %v2456 = vrot.slane %v2442, 2
    %v2457 = vrot.slane %v2443, 2
    %v2458 = vsel %vm562, %v2456, %v2457
    %v2459 = vrot.slane %v2444, 2
    %v2460 = vsel %vm562, %v2457, %v2459
    %2461 = vrot.lane.b32.xlu0 %v2453, 127
    %v2462 = vpop.permute.xlu0 %2461
    %2463 = vrot.lane.b32.xlu0 %v2455, 127
    %v2464 = vpop.permute.xlu0 %2463
    %2465 = vrot.lane.b32.xlu0 %v2458, 127
    %v2466 = vpop.permute.xlu0 %2465
    %2467 = vrot.lane.b32.xlu0 %v2460, 127
    %v2468 = vpop.permute.xlu0 %2467
    %v2473 = vadd.f32 %v2313, %v2462
    %v2474 = vadd.f32 %v2314, %v2464
    %v2475 = vadd.f32 %v2315, %v2466
    %v2476 = vadd.f32 %v2316, %v2468
    %s2477 = sld [smem:[#allocation4 + $0x42]]
    %v2478 = vstv %s2477
    %v2479 = vmul.f32 %v2478, %v1921
    %v2480 = vmul.f32 %v2478, %v1922
    %v2481 = vmul.f32 %v2478, %v1923
    %v2482 = vmul.f32 %v2478, %v1924
    %v2483 = vmul.f32 %v2478, %v1925
    %v2484 = vmul.f32 %v2478, %v1926
    %v2491 = vrot.slane %v2479, 2
    %v2492 = vrot.slane %v2480, 2
    %v2493 = vsel %vm562, %v2491, %v2492
    %v2494 = vrot.slane %v2481, 2
    %v2495 = vsel %vm562, %v2492, %v2494
    %v2496 = vrot.slane %v2482, 2
    %v2497 = vrot.slane %v2483, 2
    %v2498 = vsel %vm562, %v2496, %v2497
    %v2499 = vrot.slane %v2484, 2
    %v2500 = vsel %vm562, %v2497, %v2499
    %2501 = vrot.lane.b32.xlu0 %v2493, 127
    %v2502 = vpop.permute.xlu0 %2501
    %2503 = vrot.lane.b32.xlu0 %v2495, 127
    %v2504 = vpop.permute.xlu0 %2503
    %2505 = vrot.lane.b32.xlu0 %v2498, 127
    %v2506 = vpop.permute.xlu0 %2505
    %2507 = vrot.lane.b32.xlu0 %v2500, 127
    %v2508 = vpop.permute.xlu0 %2507
    %v2513 = vadd.f32 %v2353, %v2502
    %v2514 = vadd.f32 %v2354, %v2504
    %v2515 = vadd.f32 %v2355, %v2506
    %v2516 = vadd.f32 %v2356, %v2508
    %s2517 = sld [smem:[#allocation4 + $0x43]]
    %v2518 = vstv %s2517
    %v2519 = vmul.f32 %v2518, %v1921
    %v2520 = vmul.f32 %v2518, %v1922
    %v2521 = vmul.f32 %v2518, %v1923
    %v2522 = vmul.f32 %v2518, %v1924
    %v2523 = vmul.f32 %v2518, %v1925
    %v2524 = vmul.f32 %v2518, %v1926
    %v2531 = vrot.slane %v2519, 2
    %v2532 = vrot.slane %v2520, 2
    %v2533 = vsel %vm562, %v2531, %v2532
    %v2534 = vrot.slane %v2521, 2
    %v2535 = vsel %vm562, %v2532, %v2534
    %v2536 = vrot.slane %v2522, 2
    %v2537 = vrot.slane %v2523, 2
    %v2538 = vsel %vm562, %v2536, %v2537
    %v2539 = vrot.slane %v2524, 2
    %v2540 = vsel %vm562, %v2537, %v2539
    %2541 = vrot.lane.b32.xlu0 %v2533, 127
    %v2542 = vpop.permute.xlu0 %2541
    %2543 = vrot.lane.b32.xlu0 %v2535, 127
    %v2544 = vpop.permute.xlu0 %2543
    %2545 = vrot.lane.b32.xlu0 %v2538, 127
    %v2546 = vpop.permute.xlu0 %2545
    %2547 = vrot.lane.b32.xlu0 %v2540, 127
    %v2548 = vpop.permute.xlu0 %2547
    %v2553 = vadd.f32 %v2393, %v2542
    %v2554 = vadd.f32 %v2394, %v2544
    %v2555 = vadd.f32 %v2395, %v2546
    %v2556 = vadd.f32 %v2396, %v2548
    %s2557 = sld [smem:[#allocation4 + $0x44]]
    %v2558 = vstv %s2557
    %v2559 = vmul.f32 %v2558, %v1921
    %v2560 = vmul.f32 %v2558, %v1922
    %v2561 = vmul.f32 %v2558, %v1923
    %v2562 = vmul.f32 %v2558, %v1924
    %v2563 = vmul.f32 %v2558, %v1925
    %v2564 = vmul.f32 %v2558, %v1926
    %v2571 = vrot.slane %v2559, 2
    %v2572 = vrot.slane %v2560, 2
    %v2573 = vsel %vm562, %v2571, %v2572
    %v2574 = vrot.slane %v2561, 2
    %v2575 = vsel %vm562, %v2572, %v2574
    %v2576 = vrot.slane %v2562, 2
    %v2577 = vrot.slane %v2563, 2
    %v2578 = vsel %vm562, %v2576, %v2577
    %v2579 = vrot.slane %v2564, 2
    %v2580 = vsel %vm562, %v2577, %v2579
    %2581 = vrot.lane.b32.xlu0 %v2573, 123
    %v2582 = vpop.permute.xlu0 %2581
    %2583 = vrot.lane.b32.xlu0 %v2575, 123
    %v2584 = vpop.permute.xlu0 %2583
    %2585 = vrot.lane.b32.xlu0 %v2578, 123
    %v2586 = vpop.permute.xlu0 %2585
    %2587 = vrot.lane.b32.xlu0 %v2580, 123
    %v2588 = vpop.permute.xlu0 %2587
    %v2593 = vadd.f32 %v2433, %v2582
    %v2594 = vadd.f32 %v2434, %v2584
    %v2595 = vadd.f32 %v2435, %v2586
    %v2596 = vadd.f32 %v2436, %v2588
    %s2597 = sld [smem:[#allocation4 + $0x45]]
    %v2598 = vstv %s2597
    %v2599 = vmul.f32 %v2598, %v1921
    %v2600 = vmul.f32 %v2598, %v1922
    %v2601 = vmul.f32 %v2598, %v1923
    %v2602 = vmul.f32 %v2598, %v1924
    %v2603 = vmul.f32 %v2598, %v1925
    %v2604 = vmul.f32 %v2598, %v1926
    %v2611 = vrot.slane %v2599, 2
    %v2612 = vrot.slane %v2600, 2
    %v2613 = vsel %vm562, %v2611, %v2612
    %v2614 = vrot.slane %v2601, 2
    %v2615 = vsel %vm562, %v2612, %v2614
    %v2616 = vrot.slane %v2602, 2
    %v2617 = vrot.slane %v2603, 2
    %v2618 = vsel %vm562, %v2616, %v2617
    %v2619 = vrot.slane %v2604, 2
    %v2620 = vsel %vm562, %v2617, %v2619
    %2621 = vrot.lane.b32.xlu0 %v2613, 123
    %v2622 = vpop.permute.xlu0 %2621
    %2623 = vrot.lane.b32.xlu0 %v2615, 123
    %v2624 = vpop.permute.xlu0 %2623
    %2625 = vrot.lane.b32.xlu0 %v2618, 123
    %v2626 = vpop.permute.xlu0 %2625
    %2627 = vrot.lane.b32.xlu0 %v2620, 123
    %v2628 = vpop.permute.xlu0 %2627
    %v2633 = vadd.f32 %v2473, %v2622
    %v2634 = vadd.f32 %v2474, %v2624
    %v2635 = vadd.f32 %v2475, %v2626
    %v2636 = vadd.f32 %v2476, %v2628
    %s2637 = sld [smem:[#allocation4 + $0x46]]
    %v2638 = vstv %s2637
    %v2639 = vmul.f32 %v2638, %v1921
    %v2640 = vmul.f32 %v2638, %v1922
    %v2641 = vmul.f32 %v2638, %v1923
    %v2642 = vmul.f32 %v2638, %v1924
    %v2643 = vmul.f32 %v2638, %v1925
    %v2644 = vmul.f32 %v2638, %v1926
    %v2651 = vrot.slane %v2639, 3
    %v2652 = vrot.slane %v2640, 3
    %v2653 = vsel %vm843, %v2651, %v2652
    %v2654 = vrot.slane %v2641, 3
    %v2655 = vsel %vm843, %v2652, %v2654
    %v2656 = vrot.slane %v2642, 3
    %v2657 = vrot.slane %v2643, 3
    %v2658 = vsel %vm843, %v2656, %v2657
    %v2659 = vrot.slane %v2644, 3
    %v2660 = vsel %vm843, %v2657, %v2659
    %2661 = vrot.lane.b32.xlu0 %v2653, 2
    %v2662 = vpop.permute.xlu0 %2661
    %2663 = vrot.lane.b32.xlu0 %v2655, 2
    %v2664 = vpop.permute.xlu0 %2663
    %2665 = vrot.lane.b32.xlu0 %v2658, 2
    %v2666 = vpop.permute.xlu0 %2665
    %2667 = vrot.lane.b32.xlu0 %v2660, 2
    %v2668 = vpop.permute.xlu0 %2667
    %v2673 = vadd.f32 %v2513, %v2662
    %v2674 = vadd.f32 %v2514, %v2664
    %v2675 = vadd.f32 %v2515, %v2666
    %v2676 = vadd.f32 %v2516, %v2668
    %s2677 = sld [smem:[#allocation4 + $0x47]]
    %v2678 = vstv %s2677
    %v2679 = vmul.f32 %v2678, %v1921
    %v2680 = vmul.f32 %v2678, %v1922
    %v2681 = vmul.f32 %v2678, %v1923
    %v2682 = vmul.f32 %v2678, %v1924
    %v2683 = vmul.f32 %v2678, %v1925
    %v2684 = vmul.f32 %v2678, %v1926
    %v2691 = vrot.slane %v2679, 3
    %v2692 = vrot.slane %v2680, 3
    %v2693 = vsel %vm843, %v2691, %v2692
    %v2694 = vrot.slane %v2681, 3
    %v2695 = vsel %vm843, %v2692, %v2694
    %v2696 = vrot.slane %v2682, 3
    %v2697 = vrot.slane %v2683, 3
    %v2698 = vsel %vm843, %v2696, %v2697
    %v2699 = vrot.slane %v2684, 3
    %v2700 = vsel %vm843, %v2697, %v2699
    %2701 = vrot.lane.b32.xlu0 %v2693, 2
    %v2702 = vpop.permute.xlu0 %2701
    %2703 = vrot.lane.b32.xlu0 %v2695, 2
    %v2704 = vpop.permute.xlu0 %2703
    %2705 = vrot.lane.b32.xlu0 %v2698, 2
    %v2706 = vpop.permute.xlu0 %2705
    %2707 = vrot.lane.b32.xlu0 %v2700, 2
    %v2708 = vpop.permute.xlu0 %2707
    %v2713 = vadd.f32 %v2553, %v2702
    %v2714 = vadd.f32 %v2554, %v2704
    %v2715 = vadd.f32 %v2555, %v2706
    %v2716 = vadd.f32 %v2556, %v2708
    %s2717 = sld [smem:[#allocation4 + $0x48]]
    %v2718 = vstv %s2717
    %v2719 = vmul.f32 %v2718, %v1921
    %v2720 = vmul.f32 %v2718, %v1922
    %v2721 = vmul.f32 %v2718, %v1923
    %v2722 = vmul.f32 %v2718, %v1924
    %v2723 = vmul.f32 %v2718, %v1925
    %v2724 = vmul.f32 %v2718, %v1926
    %v2731 = vrot.slane %v2719, 3
    %v2732 = vrot.slane %v2720, 3
    %v2733 = vsel %vm843, %v2731, %v2732
    %v2734 = vrot.slane %v2721, 3
    %v2735 = vsel %vm843, %v2732, %v2734
    %v2736 = vrot.slane %v2722, 3
    %v2737 = vrot.slane %v2723, 3
    %v2738 = vsel %vm843, %v2736, %v2737
    %v2739 = vrot.slane %v2724, 3
    %v2740 = vsel %vm843, %v2737, %v2739
    %2741 = vrot.lane.b32.xlu0 %v2733, 126
    %v2742 = vpop.permute.xlu0 %2741
    %2743 = vrot.lane.b32.xlu0 %v2735, 126
    %v2744 = vpop.permute.xlu0 %2743
    %2745 = vrot.lane.b32.xlu0 %v2738, 126
    %v2746 = vpop.permute.xlu0 %2745
    %2747 = vrot.lane.b32.xlu0 %v2740, 126
    %v2748 = vpop.permute.xlu0 %2747
    %v2753 = vadd.f32 %v2593, %v2742
    %v2754 = vadd.f32 %v2594, %v2744
    %v2755 = vadd.f32 %v2595, %v2746
    %v2756 = vadd.f32 %v2596, %v2748
    %s2757 = sld [smem:[#allocation4 + $0x49]]
    %v2758 = vstv %s2757
    %v2759 = vmul.f32 %v2758, %v1921
    %v2760 = vmul.f32 %v2758, %v1922
    %v2761 = vmul.f32 %v2758, %v1923
    %v2762 = vmul.f32 %v2758, %v1924
    %v2763 = vmul.f32 %v2758, %v1925
    %v2764 = vmul.f32 %v2758, %v1926
    %v2771 = vrot.slane %v2759, 3
    %v2772 = vrot.slane %v2760, 3
    %v2773 = vsel %vm843, %v2771, %v2772
    %v2774 = vrot.slane %v2761, 3
    %v2775 = vsel %vm843, %v2772, %v2774
    %v2776 = vrot.slane %v2762, 3
    %v2777 = vrot.slane %v2763, 3
    %v2778 = vsel %vm843, %v2776, %v2777
    %v2779 = vrot.slane %v2764, 3
    %v2780 = vsel %vm843, %v2777, %v2779
    %2781 = vrot.lane.b32.xlu0 %v2773, 126
    %v2782 = vpop.permute.xlu0 %2781
    %2783 = vrot.lane.b32.xlu0 %v2775, 126
    %v2784 = vpop.permute.xlu0 %2783
    %2785 = vrot.lane.b32.xlu0 %v2778, 126
    %v2786 = vpop.permute.xlu0 %2785
    %2787 = vrot.lane.b32.xlu0 %v2780, 126
    %v2788 = vpop.permute.xlu0 %2787
    %v2793 = vadd.f32 %v2633, %v2782
    %v2794 = vadd.f32 %v2634, %v2784
    %v2795 = vadd.f32 %v2635, %v2786
    %v2796 = vadd.f32 %v2636, %v2788
    %s2797 = sld [smem:[#allocation4 + $0x4a]]
    %v2798 = vstv %s2797
    %v2799 = vmul.f32 %v2798, %v1921
    %v2800 = vmul.f32 %v2798, %v1922
    %v2801 = vmul.f32 %v2798, %v1923
    %v2802 = vmul.f32 %v2798, %v1924
    %v2803 = vmul.f32 %v2798, %v1925
    %v2804 = vmul.f32 %v2798, %v1926
    %v2811 = vrot.slane %v2799, 3
    %v2812 = vrot.slane %v2800, 3
    %v2813 = vsel %vm843, %v2811, %v2812
    %v2814 = vrot.slane %v2801, 3
    %v2815 = vsel %vm843, %v2812, %v2814
    %v2816 = vrot.slane %v2802, 3
    %v2817 = vrot.slane %v2803, 3
    %v2818 = vsel %vm843, %v2816, %v2817
    %v2819 = vrot.slane %v2804, 3
    %v2820 = vsel %vm843, %v2817, %v2819
    %2821 = vrot.lane.b32.xlu0 %v2813, 126
    %v2822 = vpop.permute.xlu0 %2821
    %2823 = vrot.lane.b32.xlu0 %v2815, 126
    %v2824 = vpop.permute.xlu0 %2823
    %2825 = vrot.lane.b32.xlu0 %v2818, 126
    %v2826 = vpop.permute.xlu0 %2825
    %2827 = vrot.lane.b32.xlu0 %v2820, 126
    %v2828 = vpop.permute.xlu0 %2827
    %v2833 = vadd.f32 %v2673, %v2822
    %v2834 = vadd.f32 %v2674, %v2824
    %v2835 = vadd.f32 %v2675, %v2826
    %v2836 = vadd.f32 %v2676, %v2828
    %s2837 = sld [smem:[#allocation4 + $0x4b]]
    %v2838 = vstv %s2837
    %v2839 = vmul.f32 %v2838, %v1921
    %v2840 = vmul.f32 %v2838, %v1922
    %v2841 = vmul.f32 %v2838, %v1923
    %v2842 = vmul.f32 %v2838, %v1924
    %v2843 = vmul.f32 %v2838, %v1925
    %v2844 = vmul.f32 %v2838, %v1926
    %v2851 = vrot.slane %v2839, 3
    %v2852 = vrot.slane %v2840, 3
    %v2853 = vsel %vm843, %v2851, %v2852
    %v2854 = vrot.slane %v2841, 3
    %v2855 = vsel %vm843, %v2852, %v2854
    %v2856 = vrot.slane %v2842, 3
    %v2857 = vrot.slane %v2843, 3
    %v2858 = vsel %vm843, %v2856, %v2857
    %v2859 = vrot.slane %v2844, 3
    %v2860 = vsel %vm843, %v2857, %v2859
    %2861 = vrot.lane.b32.xlu0 %v2853, 126
    %v2862 = vpop.permute.xlu0 %2861
    %2863 = vrot.lane.b32.xlu0 %v2855, 126
    %v2864 = vpop.permute.xlu0 %2863
    %2865 = vrot.lane.b32.xlu0 %v2858, 126
    %v2866 = vpop.permute.xlu0 %2865
    %2867 = vrot.lane.b32.xlu0 %v2860, 126
    %v2868 = vpop.permute.xlu0 %2867
    %v2873 = vadd.f32 %v2713, %v2862
    %v2874 = vadd.f32 %v2714, %v2864
    %v2875 = vadd.f32 %v2715, %v2866
    %v2876 = vadd.f32 %v2716, %v2868
    %s2877 = sld [smem:[#allocation4 + $0x4c]]
    %v2878 = vstv %s2877
    %v2879 = vmul.f32 %v2878, %v1921
    %v2880 = vmul.f32 %v2878, %v1922
    %v2881 = vmul.f32 %v2878, %v1923
    %v2882 = vmul.f32 %v2878, %v1924
    %v2883 = vmul.f32 %v2878, %v1925
    %v2884 = vmul.f32 %v2878, %v1926
    %v2891 = vrot.slane %v2879, 3
    %v2892 = vrot.slane %v2880, 3
    %v2893 = vsel %vm843, %v2891, %v2892
    %v2894 = vrot.slane %v2881, 3
    %v2895 = vsel %vm843, %v2892, %v2894
    %v2896 = vrot.slane %v2882, 3
    %v2897 = vrot.slane %v2883, 3
    %v2898 = vsel %vm843, %v2896, %v2897
    %v2899 = vrot.slane %v2884, 3
    %v2900 = vsel %vm843, %v2897, %v2899
    %2901 = vrot.lane.b32.xlu0 %v2893, 122
    %v2902 = vpop.permute.xlu0 %2901
    %2903 = vrot.lane.b32.xlu0 %v2895, 122
    %v2904 = vpop.permute.xlu0 %2903
    %2905 = vrot.lane.b32.xlu0 %v2898, 122
    %v2906 = vpop.permute.xlu0 %2905
    %2907 = vrot.lane.b32.xlu0 %v2900, 122
    %v2908 = vpop.permute.xlu0 %2907
    %v2913 = vadd.f32 %v2753, %v2902
    %v2914 = vadd.f32 %v2754, %v2904
    %v2915 = vadd.f32 %v2755, %v2906
    %v2916 = vadd.f32 %v2756, %v2908
    %s2917 = sld [smem:[#allocation4 + $0x4d]]
    %v2918 = vstv %s2917
    %v2919 = vmul.f32 %v2918, %v1921
    %v2920 = vmul.f32 %v2918, %v1922
    %v2921 = vmul.f32 %v2918, %v1923
    %v2922 = vmul.f32 %v2918, %v1924
    %v2923 = vmul.f32 %v2918, %v1925
    %v2924 = vmul.f32 %v2918, %v1926
    %v2931 = vrot.slane %v2919, 4
    %v2932 = vrot.slane %v2920, 4
    %v2933 = vsel %vm1124, %v2931, %v2932
    %v2934 = vrot.slane %v2921, 4
    %v2935 = vsel %vm1124, %v2932, %v2934
    %v2936 = vrot.slane %v2922, 4
    %v2937 = vrot.slane %v2923, 4
    %v2938 = vsel %vm1124, %v2936, %v2937
    %v2939 = vrot.slane %v2924, 4
    %v2940 = vsel %vm1124, %v2937, %v2939
    %2941 = vrot.lane.b32.xlu0 %v2933, 1
    %v2942 = vpop.permute.xlu0 %2941
    %2943 = vrot.lane.b32.xlu0 %v2935, 1
    %v2944 = vpop.permute.xlu0 %2943
    %2945 = vrot.lane.b32.xlu0 %v2938, 1
    %v2946 = vpop.permute.xlu0 %2945
    %2947 = vrot.lane.b32.xlu0 %v2940, 1
    %v2948 = vpop.permute.xlu0 %2947
    %v2953 = vadd.f32 %v2793, %v2942
    %v2954 = vadd.f32 %v2794, %v2944
    %v2955 = vadd.f32 %v2795, %v2946
    %v2956 = vadd.f32 %v2796, %v2948
    %s2957 = sld [smem:[#allocation4 + $0x4e]]
    %v2958 = vstv %s2957
    %v2959 = vmul.f32 %v2958, %v1921
    %v2960 = vmul.f32 %v2958, %v1922
    %v2961 = vmul.f32 %v2958, %v1923
    %v2962 = vmul.f32 %v2958, %v1924
    %v2963 = vmul.f32 %v2958, %v1925
    %v2964 = vmul.f32 %v2958, %v1926
    %v2971 = vrot.slane %v2959, 4
    %v2972 = vrot.slane %v2960, 4
    %v2973 = vsel %vm1124, %v2971, %v2972
    %v2974 = vrot.slane %v2961, 4
    %v2975 = vsel %vm1124, %v2972, %v2974
    %v2976 = vrot.slane %v2962, 4
    %v2977 = vrot.slane %v2963, 4
    %v2978 = vsel %vm1124, %v2976, %v2977
    %v2979 = vrot.slane %v2964, 4
    %v2980 = vsel %vm1124, %v2977, %v2979
    %2981 = vrot.lane.b32.xlu0 %v2973, 1
    %v2982 = vpop.permute.xlu0 %2981
    %2983 = vrot.lane.b32.xlu0 %v2975, 1
    %v2984 = vpop.permute.xlu0 %2983
    %2985 = vrot.lane.b32.xlu0 %v2978, 1
    %v2986 = vpop.permute.xlu0 %2985
    %2987 = vrot.lane.b32.xlu0 %v2980, 1
    %v2988 = vpop.permute.xlu0 %2987
    %v2993 = vadd.f32 %v2833, %v2982
    %v2994 = vadd.f32 %v2834, %v2984
    %v2995 = vadd.f32 %v2835, %v2986
    %v2996 = vadd.f32 %v2836, %v2988
    %s2997 = sld [smem:[#allocation4 + $0x4f]]
    %v2998 = vstv %s2997
    %v2999 = vmul.f32 %v2998, %v1921
    %v3000 = vmul.f32 %v2998, %v1922
    %v3001 = vmul.f32 %v2998, %v1923
    %v3002 = vmul.f32 %v2998, %v1924
    %v3003 = vmul.f32 %v2998, %v1925
    %v3004 = vmul.f32 %v2998, %v1926
    %v3011 = vrot.slane %v2999, 4
    %v3012 = vrot.slane %v3000, 4
    %v3013 = vsel %vm1124, %v3011, %v3012
    %v3014 = vrot.slane %v3001, 4
    %v3015 = vsel %vm1124, %v3012, %v3014
    %v3016 = vrot.slane %v3002, 4
    %v3017 = vrot.slane %v3003, 4
    %v3018 = vsel %vm1124, %v3016, %v3017
    %v3019 = vrot.slane %v3004, 4
    %v3020 = vsel %vm1124, %v3017, %v3019
    %3021 = vrot.lane.b32.xlu0 %v3013, 1
    %v3022 = vpop.permute.xlu0 %3021
    %3023 = vrot.lane.b32.xlu0 %v3015, 1
    %v3024 = vpop.permute.xlu0 %3023
    %3025 = vrot.lane.b32.xlu0 %v3018, 1
    %v3026 = vpop.permute.xlu0 %3025
    %3027 = vrot.lane.b32.xlu0 %v3020, 1
    %v3028 = vpop.permute.xlu0 %3027
    %v3033 = vadd.f32 %v2873, %v3022
    %v3034 = vadd.f32 %v2874, %v3024
    %v3035 = vadd.f32 %v2875, %v3026
    %v3036 = vadd.f32 %v2876, %v3028
    %s3037 = sld [smem:[#allocation4 + $0x50]]
    %v3038 = vstv %s3037
    %v3039 = vmul.f32 %v3038, %v1921
    %v3040 = vmul.f32 %v3038, %v1922
    %v3041 = vmul.f32 %v3038, %v1923
    %v3042 = vmul.f32 %v3038, %v1924
    %v3043 = vmul.f32 %v3038, %v1925
    %v3044 = vmul.f32 %v3038, %v1926
    %v3051 = vrot.slane %v3039, 4
    %v3052 = vrot.slane %v3040, 4
    %v3053 = vsel %vm1124, %v3051, %v3052
    %v3054 = vrot.slane %v3041, 4
    %v3055 = vsel %vm1124, %v3052, %v3054
    %v3056 = vrot.slane %v3042, 4
    %v3057 = vrot.slane %v3043, 4
    %v3058 = vsel %vm1124, %v3056, %v3057
    %v3059 = vrot.slane %v3044, 4
    %v3060 = vsel %vm1124, %v3057, %v3059
    %3061 = vrot.lane.b32.xlu0 %v3053, 125
    %v3062 = vpop.permute.xlu0 %3061
    %3063 = vrot.lane.b32.xlu0 %v3055, 125
    %v3064 = vpop.permute.xlu0 %3063
    %3065 = vrot.lane.b32.xlu0 %v3058, 125
    %v3066 = vpop.permute.xlu0 %3065
    %3067 = vrot.lane.b32.xlu0 %v3060, 125
    %v3068 = vpop.permute.xlu0 %3067
    %v3073 = vadd.f32 %v2913, %v3062
    %v3074 = vadd.f32 %v2914, %v3064
    %v3075 = vadd.f32 %v2915, %v3066
    %v3076 = vadd.f32 %v2916, %v3068
    %s3077 = sld [smem:[#allocation4 + $0x51]]
    %v3078 = vstv %s3077
    %v3079 = vmul.f32 %v3078, %v1921
    %v3080 = vmul.f32 %v3078, %v1922
    %v3081 = vmul.f32 %v3078, %v1923
    %v3082 = vmul.f32 %v3078, %v1924
    %v3083 = vmul.f32 %v3078, %v1925
    %v3084 = vmul.f32 %v3078, %v1926
    %v3091 = vrot.slane %v3079, 4
    %v3092 = vrot.slane %v3080, 4
    %v3093 = vsel %vm1124, %v3091, %v3092
    %v3094 = vrot.slane %v3081, 4
    %v3095 = vsel %vm1124, %v3092, %v3094
    %v3096 = vrot.slane %v3082, 4
    %v3097 = vrot.slane %v3083, 4
    %v3098 = vsel %vm1124, %v3096, %v3097
    %v3099 = vrot.slane %v3084, 4
    %v3100 = vsel %vm1124, %v3097, %v3099
    %3101 = vrot.lane.b32.xlu0 %v3093, 125
    %v3102 = vpop.permute.xlu0 %3101
    %3103 = vrot.lane.b32.xlu0 %v3095, 125
    %v3104 = vpop.permute.xlu0 %3103
    %3105 = vrot.lane.b32.xlu0 %v3098, 125
    %v3106 = vpop.permute.xlu0 %3105
    %3107 = vrot.lane.b32.xlu0 %v3100, 125
    %v3108 = vpop.permute.xlu0 %3107
    %v3113 = vadd.f32 %v2953, %v3102
    %v3114 = vadd.f32 %v2954, %v3104
    %v3115 = vadd.f32 %v2955, %v3106
    %v3116 = vadd.f32 %v2956, %v3108
    %s3117 = sld [smem:[#allocation4 + $0x52]]
    %v3118 = vstv %s3117
    %v3119 = vmul.f32 %v3118, %v1921
    %v3120 = vmul.f32 %v3118, %v1922
    %v3121 = vmul.f32 %v3118, %v1923
    %v3122 = vmul.f32 %v3118, %v1924
    %v3123 = vmul.f32 %v3118, %v1925
    %v3124 = vmul.f32 %v3118, %v1926
    %v3131 = vrot.slane %v3119, 4
    %v3132 = vrot.slane %v3120, 4
    %v3133 = vsel %vm1124, %v3131, %v3132
    %v3134 = vrot.slane %v3121, 4
    %v3135 = vsel %vm1124, %v3132, %v3134
    %v3136 = vrot.slane %v3122, 4
    %v3137 = vrot.slane %v3123, 4
    %v3138 = vsel %vm1124, %v3136, %v3137
    %v3139 = vrot.slane %v3124, 4
    %v3140 = vsel %vm1124, %v3137, %v3139
    %3141 = vrot.lane.b32.xlu0 %v3133, 125
    %v3142 = vpop.permute.xlu0 %3141
    %3143 = vrot.lane.b32.xlu0 %v3135, 125
    %v3144 = vpop.permute.xlu0 %3143
    %3145 = vrot.lane.b32.xlu0 %v3138, 125
    %v3146 = vpop.permute.xlu0 %3145
    %3147 = vrot.lane.b32.xlu0 %v3140, 125
    %v3148 = vpop.permute.xlu0 %3147
    %v3153 = vadd.f32 %v2993, %v3142
    %v3154 = vadd.f32 %v2994, %v3144
    %v3155 = vadd.f32 %v2995, %v3146
    %v3156 = vadd.f32 %v2996, %v3148
    %s3157 = sld [smem:[#allocation4 + $0x53]]
    %v3158 = vstv %s3157
    %v3159 = vmul.f32 %v3158, %v1921
    %v3160 = vmul.f32 %v3158, %v1922
    %v3161 = vmul.f32 %v3158, %v1923
    %v3162 = vmul.f32 %v3158, %v1924
    %v3163 = vmul.f32 %v3158, %v1925
    %v3164 = vmul.f32 %v3158, %v1926
    %v3171 = vrot.slane %v3159, 4
    %v3172 = vrot.slane %v3160, 4
    %v3173 = vsel %vm1124, %v3171, %v3172
    %v3174 = vrot.slane %v3161, 4
    %v3175 = vsel %vm1124, %v3172, %v3174
    %v3176 = vrot.slane %v3162, 4
    %v3177 = vrot.slane %v3163, 4
    %v3178 = vsel %vm1124, %v3176, %v3177
    %v3179 = vrot.slane %v3164, 4
    %v3180 = vsel %vm1124, %v3177, %v3179
    %3181 = vrot.lane.b32.xlu0 %v3173, 125
    %v3182 = vpop.permute.xlu0 %3181
    %3183 = vrot.lane.b32.xlu0 %v3175, 125
    %v3184 = vpop.permute.xlu0 %3183
    %3185 = vrot.lane.b32.xlu0 %v3178, 125
    %v3186 = vpop.permute.xlu0 %3185
    %3187 = vrot.lane.b32.xlu0 %v3180, 125
    %v3188 = vpop.permute.xlu0 %3187
    %v3193 = vadd.f32 %v3033, %v3182
    %v3194 = vadd.f32 %v3034, %v3184
    %v3195 = vadd.f32 %v3035, %v3186
    %v3196 = vadd.f32 %v3036, %v3188
    %s3197 = sld [smem:[#allocation4 + $0x54]]
    %v3198 = vstv %s3197
    %v3199 = vmul.f32 %v3198, %v1921
    %v3200 = vmul.f32 %v3198, %v1922
    %v3201 = vmul.f32 %v3198, %v1923
    %v3202 = vmul.f32 %v3198, %v1924
    %v3203 = vmul.f32 %v3198, %v1925
    %v3204 = vmul.f32 %v3198, %v1926
    %v3211 = vrot.slane %v3199, 5
    %v3212 = vrot.slane %v3200, 5
    %v3213 = vsel %vm1373, %v3211, %v3212
    %v3214 = vrot.slane %v3201, 5
    %v3215 = vsel %vm1373, %v3212, %v3214
    %v3216 = vrot.slane %v3202, 5
    %v3217 = vrot.slane %v3203, 5
    %v3218 = vsel %vm1373, %v3216, %v3217
    %v3219 = vrot.slane %v3204, 5
    %v3220 = vsel %vm1373, %v3217, %v3219
    %v3225 = vadd.f32 %v3073, %v3213
    %v3226 = vadd.f32 %v3074, %v3215
    %v3227 = vadd.f32 %v3075, %v3218
    %v3228 = vadd.f32 %v3076, %v3220
    %s3229 = sld [smem:[#allocation4 + $0x55]]
    %v3230 = vstv %s3229
    %v3231 = vmul.f32 %v3230, %v1921
    %v3232 = vmul.f32 %v3230, %v1922
    %v3233 = vmul.f32 %v3230, %v1923
    %v3234 = vmul.f32 %v3230, %v1924
    %v3235 = vmul.f32 %v3230, %v1925
    %v3236 = vmul.f32 %v3230, %v1926
    %v3243 = vrot.slane %v3231, 5
    %v3244 = vrot.slane %v3232, 5
    %v3245 = vsel %vm1373, %v3243, %v3244
    %v3246 = vrot.slane %v3233, 5
    %v3247 = vsel %vm1373, %v3244, %v3246
    %v3248 = vrot.slane %v3234, 5
    %v3249 = vrot.slane %v3235, 5
    %v3250 = vsel %vm1373, %v3248, %v3249
    %v3251 = vrot.slane %v3236, 5
    %v3252 = vsel %vm1373, %v3249, %v3251
    %v3257 = vadd.f32 %v3113, %v3245
    %v3258 = vadd.f32 %v3114, %v3247
    %v3259 = vadd.f32 %v3115, %v3250
    %v3260 = vadd.f32 %v3116, %v3252
    %s3261 = sld [smem:[#allocation4 + $0x56]]
    %v3262 = vstv %s3261
    %v3263 = vmul.f32 %v3262, %v1921
    %v3264 = vmul.f32 %v3262, %v1922
    %v3265 = vmul.f32 %v3262, %v1923
    %v3266 = vmul.f32 %v3262, %v1924
    %v3267 = vmul.f32 %v3262, %v1925
    %v3268 = vmul.f32 %v3262, %v1926
    %v3275 = vrot.slane %v3263, 5
    %v3276 = vrot.slane %v3264, 5
    %v3277 = vsel %vm1373, %v3275, %v3276
    %v3278 = vrot.slane %v3265, 5
    %v3279 = vsel %vm1373, %v3276, %v3278
    %v3280 = vrot.slane %v3266, 5
    %v3281 = vrot.slane %v3267, 5
    %v3282 = vsel %vm1373, %v3280, %v3281
    %v3283 = vrot.slane %v3268, 5
    %v3284 = vsel %vm1373, %v3281, %v3283
    %v3289 = vadd.f32 %v3153, %v3277
    %v3290 = vadd.f32 %v3154, %v3279
    %v3291 = vadd.f32 %v3155, %v3282
    %v3292 = vadd.f32 %v3156, %v3284
    %s3293 = sld [smem:[#allocation4 + $0x57]]
    %v3294 = vstv %s3293
    %v3295 = vmul.f32 %v3294, %v1921
    %v3296 = vmul.f32 %v3294, %v1922
    %v3297 = vmul.f32 %v3294, %v1923
    %v3298 = vmul.f32 %v3294, %v1924
    %v3299 = vmul.f32 %v3294, %v1925
    %v3300 = vmul.f32 %v3294, %v1926
    %v3307 = vrot.slane %v3295, 5
    %v3308 = vrot.slane %v3296, 5
    %v3309 = vsel %vm1373, %v3307, %v3308
    %v3310 = vrot.slane %v3297, 5
    %v3311 = vsel %vm1373, %v3308, %v3310
    %v3312 = vrot.slane %v3298, 5
    %v3313 = vrot.slane %v3299, 5
    %v3314 = vsel %vm1373, %v3312, %v3313
    %v3315 = vrot.slane %v3300, 5
    %v3316 = vsel %vm1373, %v3313, %v3315
    %v3321 = vadd.f32 %v3193, %v3309
    %v3322 = vadd.f32 %v3194, %v3311
    %v3323 = vadd.f32 %v3195, %v3314
    %v3324 = vadd.f32 %v3196, %v3316
    %s3325 = sld [smem:[#allocation4 + $0x58]]
    %v3326 = vstv %s3325
    %v3327 = vmul.f32 %v3326, %v1921
    %v3328 = vmul.f32 %v3326, %v1922
    %v3329 = vmul.f32 %v3326, %v1923
    %v3330 = vmul.f32 %v3326, %v1924
    %v3331 = vmul.f32 %v3326, %v1925
    %v3332 = vmul.f32 %v3326, %v1926
    %v3339 = vrot.slane %v3327, 5
    %v3340 = vrot.slane %v3328, 5
    %v3341 = vsel %vm1373, %v3339, %v3340
    %v3342 = vrot.slane %v3329, 5
    %v3343 = vsel %vm1373, %v3340, %v3342
    %v3344 = vrot.slane %v3330, 5
    %v3345 = vrot.slane %v3331, 5
    %v3346 = vsel %vm1373, %v3344, %v3345
    %v3347 = vrot.slane %v3332, 5
    %v3348 = vsel %vm1373, %v3345, %v3347
    %3349 = vrot.lane.b32.xlu0 %v3341, 124
    %v3350 = vpop.permute.xlu0 %3349
    %3351 = vrot.lane.b32.xlu0 %v3343, 124
    %v3352 = vpop.permute.xlu0 %3351
    %3353 = vrot.lane.b32.xlu0 %v3346, 124
    %v3354 = vpop.permute.xlu0 %3353
    %3355 = vrot.lane.b32.xlu0 %v3348, 124
    %v3356 = vpop.permute.xlu0 %3355
    %v3361 = vadd.f32 %v3225, %v3350
    %v3362 = vadd.f32 %v3226, %v3352
    %v3363 = vadd.f32 %v3227, %v3354
    %v3364 = vadd.f32 %v3228, %v3356
    %s3365 = sld [smem:[#allocation4 + $0x59]]
    %v3366 = vstv %s3365
    %v3367 = vmul.f32 %v3366, %v1921
    %v3368 = vmul.f32 %v3366, %v1922
    %v3369 = vmul.f32 %v3366, %v1923
    %v3370 = vmul.f32 %v3366, %v1924
    %v3371 = vmul.f32 %v3366, %v1925
    %v3372 = vmul.f32 %v3366, %v1926
    %v3379 = vrot.slane %v3367, 5
    %v3380 = vrot.slane %v3368, 5
    %v3381 = vsel %vm1373, %v3379, %v3380
    %v3382 = vrot.slane %v3369, 5
    %v3383 = vsel %vm1373, %v3380, %v3382
    %v3384 = vrot.slane %v3370, 5
    %v3385 = vrot.slane %v3371, 5
    %v3386 = vsel %vm1373, %v3384, %v3385
    %v3387 = vrot.slane %v3372, 5
    %v3388 = vsel %vm1373, %v3385, %v3387
    %3389 = vrot.lane.b32.xlu0 %v3381, 124
    %v3390 = vpop.permute.xlu0 %3389
    %3391 = vrot.lane.b32.xlu0 %v3383, 124
    %v3392 = vpop.permute.xlu0 %3391
    %3393 = vrot.lane.b32.xlu0 %v3386, 124
    %v3394 = vpop.permute.xlu0 %3393
    %3395 = vrot.lane.b32.xlu0 %v3388, 124
    %v3396 = vpop.permute.xlu0 %3395
    %v3401 = vadd.f32 %v3257, %v3390
    %v3402 = vadd.f32 %v3258, %v3392
    %v3403 = vadd.f32 %v3259, %v3394
    %v3404 = vadd.f32 %v3260, %v3396
    %s3405 = sld [smem:[#allocation4 + $0x5a]]
    %v3406 = vstv %s3405
    %v3407 = vmul.f32 %v3406, %v1921
    %v3408 = vmul.f32 %v3406, %v1922
    %v3409 = vmul.f32 %v3406, %v1923
    %v3410 = vmul.f32 %v3406, %v1924
    %v3411 = vmul.f32 %v3406, %v1925
    %v3412 = vmul.f32 %v3406, %v1926
    %v3419 = vrot.slane %v3407, 5
    %v3420 = vrot.slane %v3408, 5
    %v3421 = vsel %vm1373, %v3419, %v3420
    %v3422 = vrot.slane %v3409, 5
    %v3423 = vsel %vm1373, %v3420, %v3422
    %v3424 = vrot.slane %v3410, 5
    %v3425 = vrot.slane %v3411, 5
    %v3426 = vsel %vm1373, %v3424, %v3425
    %v3427 = vrot.slane %v3412, 5
    %v3428 = vsel %vm1373, %v3425, %v3427
    %3429 = vrot.lane.b32.xlu0 %v3421, 124
    %v3430 = vpop.permute.xlu0 %3429
    %3431 = vrot.lane.b32.xlu0 %v3423, 124
    %v3432 = vpop.permute.xlu0 %3431
    %3433 = vrot.lane.b32.xlu0 %v3426, 124
    %v3434 = vpop.permute.xlu0 %3433
    %3435 = vrot.lane.b32.xlu0 %v3428, 124
    %v3436 = vpop.permute.xlu0 %3435
    %v3441 = vadd.f32 %v3289, %v3430
    %v3442 = vadd.f32 %v3290, %v3432
    %v3443 = vadd.f32 %v3291, %v3434
    %v3444 = vadd.f32 %v3292, %v3436
    %s3445 = sld [smem:[#allocation4 + $0x5b]]
    %v3446 = vstv %s3445
    %v3447 = vmul.f32 %v3446, %v1921
    %v3448 = vmul.f32 %v3446, %v1922
    %v3449 = vmul.f32 %v3446, %v1923
    %v3450 = vmul.f32 %v3446, %v1924
    %v3451 = vmul.f32 %v3446, %v1925
    %v3452 = vmul.f32 %v3446, %v1926
    %v3459 = vrot.slane %v3447, 6
    %v3460 = vrot.slane %v3448, 6
    %v3461 = vsel %vm1654, %v3459, %v3460
    %v3462 = vrot.slane %v3449, 6
    %v3463 = vsel %vm1654, %v3460, %v3462
    %v3464 = vrot.slane %v3450, 6
    %v3465 = vrot.slane %v3451, 6
    %v3466 = vsel %vm1654, %v3464, %v3465
    %v3467 = vrot.slane %v3452, 6
    %v3468 = vsel %vm1654, %v3465, %v3467
    %3469 = vrot.lane.b32.xlu0 %v3461, 3
    %v3470 = vpop.permute.xlu0 %3469
    %3471 = vrot.lane.b32.xlu0 %v3463, 3
    %v3472 = vpop.permute.xlu0 %3471
    %3473 = vrot.lane.b32.xlu0 %v3466, 3
    %v3474 = vpop.permute.xlu0 %3473
    %3475 = vrot.lane.b32.xlu0 %v3468, 3
    %v3476 = vpop.permute.xlu0 %3475
    %v3481 = vadd.f32 %v3321, %v3470
    %v3482 = vadd.f32 %v3322, %v3472
    %v3483 = vadd.f32 %v3323, %v3474
    %v3484 = vadd.f32 %v3324, %v3476
    %s3485 = sld [smem:[#allocation4 + $0x5c]]
    %v3486 = vstv %s3485
    %v3487 = vmul.f32 %v3486, %v1921
    %v3488 = vmul.f32 %v3486, %v1922
    %v3489 = vmul.f32 %v3486, %v1923
    %v3490 = vmul.f32 %v3486, %v1924
    %v3491 = vmul.f32 %v3486, %v1925
    %v3492 = vmul.f32 %v3486, %v1926
    %v3499 = vrot.slane %v3487, 6
    %v3500 = vrot.slane %v3488, 6
    %v3501 = vsel %vm1654, %v3499, %v3500
    %v3502 = vrot.slane %v3489, 6
    %v3503 = vsel %vm1654, %v3500, %v3502
    %v3504 = vrot.slane %v3490, 6
    %v3505 = vrot.slane %v3491, 6
    %v3506 = vsel %vm1654, %v3504, %v3505
    %v3507 = vrot.slane %v3492, 6
    %v3508 = vsel %vm1654, %v3505, %v3507
    %3509 = vrot.lane.b32.xlu0 %v3501, 127
    %v3510 = vpop.permute.xlu0 %3509
    %3511 = vrot.lane.b32.xlu0 %v3503, 127
    %v3512 = vpop.permute.xlu0 %3511
    %3513 = vrot.lane.b32.xlu0 %v3506, 127
    %v3514 = vpop.permute.xlu0 %3513
    %3515 = vrot.lane.b32.xlu0 %v3508, 127
    %v3516 = vpop.permute.xlu0 %3515
    %v3521 = vadd.f32 %v3361, %v3510
    %v3522 = vadd.f32 %v3362, %v3512
    %v3523 = vadd.f32 %v3363, %v3514
    %v3524 = vadd.f32 %v3364, %v3516
    %s3525 = sld [smem:[#allocation4 + $0x5d]]
    %v3526 = vstv %s3525
    %v3527 = vmul.f32 %v3526, %v1921
    %v3528 = vmul.f32 %v3526, %v1922
    %v3529 = vmul.f32 %v3526, %v1923
    %v3530 = vmul.f32 %v3526, %v1924
    %v3531 = vmul.f32 %v3526, %v1925
    %v3532 = vmul.f32 %v3526, %v1926
    %v3539 = vrot.slane %v3527, 6
    %v3540 = vrot.slane %v3528, 6
    %v3541 = vsel %vm1654, %v3539, %v3540
    %v3542 = vrot.slane %v3529, 6
    %v3543 = vsel %vm1654, %v3540, %v3542
    %v3544 = vrot.slane %v3530, 6
    %v3545 = vrot.slane %v3531, 6
    %v3546 = vsel %vm1654, %v3544, %v3545
    %v3547 = vrot.slane %v3532, 6
    %v3548 = vsel %vm1654, %v3545, %v3547
    %3549 = vrot.lane.b32.xlu0 %v3541, 127
    %v3550 = vpop.permute.xlu0 %3549
    %3551 = vrot.lane.b32.xlu0 %v3543, 127
    %v3552 = vpop.permute.xlu0 %3551
    %3553 = vrot.lane.b32.xlu0 %v3546, 127
    %v3554 = vpop.permute.xlu0 %3553
    %3555 = vrot.lane.b32.xlu0 %v3548, 127
    %v3556 = vpop.permute.xlu0 %3555
    %v3561 = vadd.f32 %v3401, %v3550
    %v3562 = vadd.f32 %v3402, %v3552
    %v3563 = vadd.f32 %v3403, %v3554
    %v3564 = vadd.f32 %v3404, %v3556
    %s3565 = sld [smem:[#allocation4 + $0x5e]]
    %v3566 = vstv %s3565
    %v3567 = vmul.f32 %v3566, %v1921
    %v3568 = vmul.f32 %v3566, %v1922
    %v3569 = vmul.f32 %v3566, %v1923
    %v3570 = vmul.f32 %v3566, %v1924
    %v3571 = vmul.f32 %v3566, %v1925
    %v3572 = vmul.f32 %v3566, %v1926
    %v3579 = vrot.slane %v3567, 6
    %v3580 = vrot.slane %v3568, 6
    %v3581 = vsel %vm1654, %v3579, %v3580
    %v3582 = vrot.slane %v3569, 6
    %v3583 = vsel %vm1654, %v3580, %v3582
    %v3584 = vrot.slane %v3570, 6
    %v3585 = vrot.slane %v3571, 6
    %v3586 = vsel %vm1654, %v3584, %v3585
    %v3587 = vrot.slane %v3572, 6
    %v3588 = vsel %vm1654, %v3585, %v3587
    %3589 = vrot.lane.b32.xlu0 %v3581, 127
    %v3590 = vpop.permute.xlu0 %3589
    %3591 = vrot.lane.b32.xlu0 %v3583, 127
    %v3592 = vpop.permute.xlu0 %3591
    %3593 = vrot.lane.b32.xlu0 %v3586, 127
    %v3594 = vpop.permute.xlu0 %3593
    %3595 = vrot.lane.b32.xlu0 %v3588, 127
    %v3596 = vpop.permute.xlu0 %3595
    %v3601 = vadd.f32 %v3441, %v3590
    %v3602 = vadd.f32 %v3442, %v3592
    %v3603 = vadd.f32 %v3443, %v3594
    %v3604 = vadd.f32 %v3444, %v3596
    %s3605 = sld [smem:[#allocation4 + $0x5f]]
    %v3606 = vstv %s3605
    %v3607 = vmul.f32 %v3606, %v1921
    %v3608 = vmul.f32 %v3606, %v1922
    %v3609 = vmul.f32 %v3606, %v1923
    %v3610 = vmul.f32 %v3606, %v1924
    %v3611 = vmul.f32 %v3606, %v1925
    %v3612 = vmul.f32 %v3606, %v1926
    %v3619 = vrot.slane %v3607, 6
    %v3620 = vrot.slane %v3608, 6
    %v3621 = vsel %vm1654, %v3619, %v3620
    %v3622 = vrot.slane %v3609, 6
    %v3623 = vsel %vm1654, %v3620, %v3622
    %v3624 = vrot.slane %v3610, 6
    %v3625 = vrot.slane %v3611, 6
    %v3626 = vsel %vm1654, %v3624, %v3625
    %v3627 = vrot.slane %v3612, 6
    %v3628 = vsel %vm1654, %v3625, %v3627
    %3629 = vrot.lane.b32.xlu0 %v3621, 127
    %v3630 = vpop.permute.xlu0 %3629
    %3631 = vrot.lane.b32.xlu0 %v3623, 127
    %v3632 = vpop.permute.xlu0 %3631
    %3633 = vrot.lane.b32.xlu0 %v3626, 127
    %v3634 = vpop.permute.xlu0 %3633
    %3635 = vrot.lane.b32.xlu0 %v3628, 127
    %v3636 = vpop.permute.xlu0 %3635
    %v3641 = vadd.f32 %v3481, %v3630
    %v3642 = vadd.f32 %v3482, %v3632
    %v3643 = vadd.f32 %v3483, %v3634
    %v3644 = vadd.f32 %v3484, %v3636
    %s3645 = sld [smem:[#allocation4 + $0x60]]
    %v3646 = vstv %s3645
    %v3647 = vmul.f32 %v3646, %v1921
    %v3648 = vmul.f32 %v3646, %v1922
    %v3649 = vmul.f32 %v3646, %v1923
    %v3650 = vmul.f32 %v3646, %v1924
    %v3651 = vmul.f32 %v3646, %v1925
    %v3652 = vmul.f32 %v3646, %v1926
    %v3659 = vrot.slane %v3647, 6
    %v3660 = vrot.slane %v3648, 6
    %v3661 = vsel %vm1654, %v3659, %v3660
    %v3662 = vrot.slane %v3649, 6
    %v3663 = vsel %vm1654, %v3660, %v3662
    %v3664 = vrot.slane %v3650, 6
    %v3665 = vrot.slane %v3651, 6
    %v3666 = vsel %vm1654, %v3664, %v3665
    %v3667 = vrot.slane %v3652, 6
    %v3668 = vsel %vm1654, %v3665, %v3667
    %3669 = vrot.lane.b32.xlu0 %v3661, 123
    %v3670 = vpop.permute.xlu0 %3669
    %3671 = vrot.lane.b32.xlu0 %v3663, 123
    %v3672 = vpop.permute.xlu0 %3671
    %3673 = vrot.lane.b32.xlu0 %v3666, 123
    %v3674 = vpop.permute.xlu0 %3673
    %3675 = vrot.lane.b32.xlu0 %v3668, 123
    %v3676 = vpop.permute.xlu0 %3675
    %v3681 = vadd.f32 %v3521, %v3670
    %v3682 = vadd.f32 %v3522, %v3672
    %v3683 = vadd.f32 %v3523, %v3674
    %v3684 = vadd.f32 %v3524, %v3676
    %s3685 = sld [smem:[#allocation4 + $0x61]]
    %v3686 = vstv %s3685
    %v3687 = vmul.f32 %v3686, %v1921
    %v3688 = vmul.f32 %v3686, %v1922
    %v3689 = vmul.f32 %v3686, %v1923
    %v3690 = vmul.f32 %v3686, %v1924
    %v3691 = vmul.f32 %v3686, %v1925
    %v3692 = vmul.f32 %v3686, %v1926
    %v3699 = vrot.slane %v3687, 6
    %v3700 = vrot.slane %v3688, 6
    %v3701 = vsel %vm1654, %v3699, %v3700
    %v3702 = vrot.slane %v3689, 6
    %v3703 = vsel %vm1654, %v3700, %v3702
    %v3704 = vrot.slane %v3690, 6
    %v3705 = vrot.slane %v3691, 6
    %v3706 = vsel %vm1654, %v3704, %v3705
    %v3707 = vrot.slane %v3692, 6
    %v3708 = vsel %vm1654, %v3705, %v3707
    %3709 = vrot.lane.b32.xlu0 %v3701, 123
    %v3710 = vpop.permute.xlu0 %3709
    %3711 = vrot.lane.b32.xlu0 %v3703, 123
    %v3712 = vpop.permute.xlu0 %3711
    %3713 = vrot.lane.b32.xlu0 %v3706, 123
    %v3714 = vpop.permute.xlu0 %3713
    %3715 = vrot.lane.b32.xlu0 %v3708, 123
    %v3716 = vpop.permute.xlu0 %3715
    %v3721 = vadd.f32 %v3561, %v3710
    %v3722 = vadd.f32 %v3562, %v3712
    %v3723 = vadd.f32 %v3563, %v3714
    %v3724 = vadd.f32 %v3564, %v3716
    %3729 = vrot.lane.b32.xlu0 %v3721, 127
    %v3730 = vpop.permute.xlu0 %3729
    %3731 = vrot.lane.b32.xlu0 %v3722, 127
    %v3732 = vpop.permute.xlu0 %3731
    %3733 = vrot.lane.b32.xlu0 %v3723, 127
    %v3734 = vpop.permute.xlu0 %3733
    %3735 = vrot.lane.b32.xlu0 %v3724, 127
    %v3736 = vpop.permute.xlu0 %3735
    %v3741 = vadd.f32 %v3681, %v3730
    %v3742 = vadd.f32 %v3682, %v3732
    %v3743 = vadd.f32 %v3683, %v3734
    %v3744 = vadd.f32 %v3684, %v3736
    %3749 = vrot.lane.b32.xlu0 %v3641, 127
    %v3750 = vpop.permute.xlu0 %3749
    %3751 = vrot.lane.b32.xlu0 %v3642, 127
    %v3752 = vpop.permute.xlu0 %3751
    %3753 = vrot.lane.b32.xlu0 %v3643, 127
    %v3754 = vpop.permute.xlu0 %3753
    %3755 = vrot.lane.b32.xlu0 %v3644, 127
    %v3756 = vpop.permute.xlu0 %3755
    %v3761 = vadd.f32 %v3601, %v3750
    %v3762 = vadd.f32 %v3602, %v3752
    %v3763 = vadd.f32 %v3603, %v3754
    %v3764 = vadd.f32 %v3604, %v3756
    %3769 = vrot.lane.b32.xlu0 %v3761, 126
    %v3770 = vpop.permute.xlu0 %3769
    %3771 = vrot.lane.b32.xlu0 %v3762, 126
    %v3772 = vpop.permute.xlu0 %3771
    %3773 = vrot.lane.b32.xlu0 %v3763, 126
    %v3774 = vpop.permute.xlu0 %3773
    %3775 = vrot.lane.b32.xlu0 %v3764, 126
    %v3776 = vpop.permute.xlu0 %3775
    %v3781 = vadd.f32 %v3741, %v3770
    %v3782 = vadd.f32 %v3742, %v3772
    %v3783 = vadd.f32 %v3743, %v3774
    %v3784 = vadd.f32 %v3744, %v3776
    %v3785 = vxor.u32 %v3781, 2147483648
    %v3786 = vxor.u32 %v3782, 2147483648
    %v3787 = vxor.u32 %v3783, 2147483648
    %v3788 = vxor.u32 %v3784, 2147483648
    %v3789 = vmul.f32 %v3785, 1.442695
    %v3790 = vpow.pop %v3789
    %v3791 = vmul.f32 %v3786, 1.442695
    %v3792 = vpow.pop %v3791
    %v3793 = vmul.f32 %v3787, 1.442695
    %v3794 = vpow.pop %v3793
    %v3795 = vmul.f32 %v3788, 1.442695
    %v3796 = vpow.pop %v3795
    %v3797 = vadd.f32 %v3790, 1.0
    %v3798 = vadd.f32 %v3792, 1.0
    %v3799 = vadd.f32 %v3794, 1.0
    %v3800 = vadd.f32 %v3796, 1.0
    %v3801 = vrcp.pop %v3797
    %v3802 = vmul.f32 %v3797, %v3801
    %v3803 = vsub.f32 1.0, %v3802
    %v3804 = vmul.f32 %v3801, %v3803
    %v3805 = vadd.f32 %v3801, %v3804
    %vm3806 = vweird.f32 %v3797
    %vm3807 = vweird.f32 %v3801
    %vm3808 = vmor %vm3806, %vm3807
    %v3809 = vsel %vm3808, %v3801, %v3805
    %v3810 = vand.u32 2147483647, %v3797
    %vm3811 = vcmp.eq.f32.partialorder %v3810, 8.507059e+37
    %v3812 = vand.u32 %v3797, 2147483648
    %v3813 = vor.u32 1.1754944e-38, %v3812
    %v3814 = vsel %vm3811, %v3813, %v3809
    %v3815 = vmul.f32 1.0, %v3814
    %v3816 = vrcp.pop %v3798
    %v3817 = vmul.f32 %v3798, %v3816
    %v3818 = vsub.f32 1.0, %v3817
    %v3819 = vmul.f32 %v3816, %v3818
    %v3820 = vadd.f32 %v3816, %v3819
    %vm3821 = vweird.f32 %v3798
    %vm3822 = vweird.f32 %v3816
    %vm3823 = vmor %vm3821, %vm3822
    %v3824 = vsel %vm3823, %v3816, %v3820
    %v3825 = vand.u32 2147483647, %v3798
    %vm3826 = vcmp.eq.f32.partialorder %v3825, 8.507059e+37
    %v3827 = vand.u32 %v3798, 2147483648
    %v3828 = vor.u32 1.1754944e-38, %v3827
    %v3829 = vsel %vm3826, %v3828, %v3824
    %v3830 = vmul.f32 1.0, %v3829
    %v3831 = vrcp.pop %v3799
    %v3832 = vmul.f32 %v3799, %v3831
    %v3833 = vsub.f32 1.0, %v3832
    %v3834 = vmul.f32 %v3831, %v3833
    %v3835 = vadd.f32 %v3831, %v3834
    %vm3836 = vweird.f32 %v3799
    %vm3837 = vweird.f32 %v3831
    %vm3838 = vmor %vm3836, %vm3837
    %v3839 = vsel %vm3838, %v3831, %v3835
    %v3840 = vand.u32 2147483647, %v3799
    %vm3841 = vcmp.eq.f32.partialorder %v3840, 8.507059e+37
    %v3842 = vand.u32 %v3799, 2147483648
    %v3843 = vor.u32 1.1754944e-38, %v3842
    %v3844 = vsel %vm3841, %v3843, %v3839
    %v3845 = vmul.f32 1.0, %v3844
    %v3846 = vrcp.pop %v3800
    %v3847 = vmul.f32 %v3800, %v3846
    %v3848 = vsub.f32 1.0, %v3847
    %v3849 = vmul.f32 %v3846, %v3848
    %v3850 = vadd.f32 %v3846, %v3849
    %vm3851 = vweird.f32 %v3800
    %vm3852 = vweird.f32 %v3846
    %vm3853 = vmor %vm3851, %vm3852
    %v3854 = vsel %vm3853, %v3846, %v3850
    %v3855 = vand.u32 2147483647, %v3800
    %vm3856 = vcmp.eq.f32.partialorder %v3855, 8.507059e+37
    %v3857 = vand.u32 %v3800, 2147483648
    %v3858 = vor.u32 1.1754944e-38, %v3857
    %v3859 = vsel %vm3856, %v3858, %v3854
    %v3860 = vmul.f32 1.0, %v3859
    %vm3861 = vcmask 130048
    %3862 = vst.msk [vmem:[#allocation9] sm:$0xff] %vm3861, %v3815
    %3863 = vst.msk [vmem:[#allocation9 + $0x8] sm:$0xff] %vm3861, %v3830
    %3864 = vst.msk [vmem:[#allocation9 + $0x10] sm:$0xff] %vm3861, %v3845
    %3865 = vst.msk [vmem:[#allocation9 + $0x18] sm:$0xff] %vm3861, %v3860
    // Predicated region
    $region18: #{tpu_custom_call.1} parent=1 // pred_check
      _
    $region19: #{tpu_custom_call.1} parent=1 // pred_check_branch
      %3867 = sbr.rel (0) target = $region21
    $region20: #{tpu_custom_call.1} parent=1 // pred_region
      %3869 = vsyncadd [#allocation6], 0
      %s3870 = sshll.u32 [#allocation9], 4
      %s3871 = int_to_ptr.vmem [resolvable:$true] %s3870
      %s3872 = sshll.u32 %s2, 4
      %s3873 = int_to_ptr.hbm [resolvable:$true] %s3872
      %3878 = dma.vmem_to_hbm [thread:$0]  %s3871, 512, %s3873, [#allocation6], 128, 128, 8
    $region21: #{tpu_custom_call.1} parent=1 // pred_fallthru
      _
    // Predicated region
    $region22: #{tpu_custom_call.1} parent=1 // pred_check
      _
    $region23: #{tpu_custom_call.1} parent=1 // pred_check_branch
      %3880 = sbr.rel (0) target = $region25
    $region24: #{tpu_custom_call.1} parent=1 // pred_region
      %3882 = dma.done [#allocation6], 512
    $region25: #{tpu_custom_call.1} parent=1 // pred_fallthru
      _
    %3883 = vsyncpa [#allocation5], 1
    %3884 = vsyncpa [#allocation6], 1
    %3885 = vsyncpa [#allocation7], 1

</llo_original>
